<compile_context>
chip_gen: v6e
topology: v6e:2x2x1
jax: 0.10.0
libtpu: 0.0.40
codegen_flags: <defaults>
</compile_context>

<pallas_src>
import math
from functools import partial

import jax
import jax.numpy as jnp
from jax.experimental import pallas as pl
from jax.experimental.pallas import tpu as pltpu

F32 = jnp.float32
LN_EPS = 1e-5


# ----------------------------- in-kernel helpers -----------------------------

def _gelu_exact(x):
    # Exact (erf-based) GELU as used by PyTorch F.gelu / nn.GELU default.
    # erf via Abramowitz & Stegun 7.1.26 (|err| < 1.5e-7); exp-only, lowers cleanly.
    # TODO(synk): on v5e consider jax.lax.erf or tanh-approx GELU to cut VALU work.
    z = x * (1.0 / math.sqrt(2.0))
    s = jnp.where(z >= 0.0, 1.0, -1.0)
    a = jnp.abs(z)
    t = 1.0 / (1.0 + 0.3275911 * a)
    poly = t * (0.254829592 + t * (-0.284496736 + t * (1.421413741
              + t * (-1.453152027 + t * 1.061405429))))
    erf = s * (1.0 - poly * jnp.exp(-a * a))
    return 0.5 * x * (1.0 + erf)


def _layernorm(x, gamma, beta):
    mu = jnp.mean(x, axis=-1, keepdims=True)
    var = jnp.mean((x - mu) * (x - mu), axis=-1, keepdims=True)
    return (x - mu) * jax.lax.rsqrt(var + LN_EPS) * gamma + beta


# --------------------------------- fused kernel -------------------------------

def fused_forward_kernel(x_ref,
                         c1w_ref, c1b_ref, c2w_ref, c2b_ref,
                         pw_ref, pb_ref, pe_ref,
                         wqkv_ref, bqkv_ref, wo_ref, bo_ref,
                         g1_ref, be1_ref, fw1_ref, fb1_ref, fw2_ref, fb2_ref,
                         g2_ref, be2_ref,
                         hw1_ref, hb1_ref, hw2_ref, hb2_ref,
                         out_ref, *, num_heads):
    # One grid step == one batch element (sequence).
    _, S, _ = x_ref.shape
    Fc = c1b_ref.shape[1]
    D = pw_ref.shape[1]
    L = wqkv_ref.shape[0]
    H = num_heads
    hd = D // H
    scale = 1.0 / math.sqrt(hd)

    xf = x_ref[0]                                                     # (S, Cin)

    # ---- Conv1d (k=3, pad=1) as one fused (Cin, 3*Fc) matmul + shifted taps ----
    # Shifted taps are zero-padded sublane slices (zero-padding of the conv is
    # built in -> no boundary masks, no (BS,BS) one-hot matmuls).
    def conv_relu(inp, w_ref, b_ref):
        y = jnp.dot(inp, w_ref[...], preferred_element_type=F32)     # (S, 3*Fc)
        zrow = jnp.zeros((1, Fc), F32)
        prev_tap = jnp.concatenate([zrow, y[0:S - 1, 0:Fc]], axis=0)         # y_k0[s-1]
        next_tap = jnp.concatenate([y[1:S, 2 * Fc:3 * Fc], zrow], axis=0)    # y_k2[s+1]
        return jnp.maximum(prev_tap + y[:, Fc:2 * Fc] + next_tap + b_ref[...], 0.0)

    h1 = conv_relu(xf, c1w_ref, c1b_ref)                              # (S, Fc)
    h2 = conv_relu(h1, c2w_ref, c2b_ref)                              # (S, Fc)

    # ---- projection + positional encoding (pe passed as (S, D)) ----
    t_in = (jnp.dot(h2, pw_ref[...], preferred_element_type=F32)
            + pb_ref[...] + pe_ref[...])                              # (S, D)

    # ---- TransformerEncoder: post-norm layers, dropout = identity ----
    # TODO(synk): cast matmul operands to bf16 (f32 accumulate) when shapes grow
    # (v6e/v7x MXU); kept f32 here since every dim pads below one vreg anyway.
    t = t_in
    for l in range(L):
        qkv = jnp.dot(t, wqkv_ref[l], preferred_element_type=F32) + bqkv_ref[l]
        q = qkv[:, 0:D]
        k = qkv[:, D:2 * D]
        v = qkv[:, 2 * D:3 * D]

        # Head-batched attention on (H, S, hd); no cross-batch mask needed.
        qh = jnp.stack([q[:, h * hd:(h + 1) * hd] for h in range(H)], axis=0)
        kh = jnp.stack([k[:, h * hd:(h + 1) * hd] for h in range(H)], axis=0)
        vh = jnp.stack([v[:, h * hd:(h + 1) * hd] for h in range(H)], axis=0)

        s = jnp.einsum('hqd,hkd->hqk', qh, kh,
                       preferred_element_type=F32) * scale            # (H, S, S)
        s = s - jnp.max(s, axis=-1, keepdims=True)
        p = jnp.exp(s)
        denom = jnp.sum(p, axis=-1, keepdims=True)                    # (H, S, 1)
        o = jnp.einsum('hqk,hkd->hqd', p, vh,
                       preferred_element_type=F32)                    # (H, S, hd)
        # Normalize after PV: O(S*hd) multiplies, reciprocal on the EUP slot.
        o = o * pl.reciprocal(denom, approx=True)

        attn = jnp.concatenate([o[h] for h in range(H)], axis=-1)     # (S, D)
        attn = jnp.dot(attn, wo_ref[l], preferred_element_type=F32) + bo_ref[l]

        y = _layernorm(t + attn, g1_ref[l], be1_ref[l])               # norm1(x + sa)
        ff = jnp.dot(
            _gelu_exact(jnp.dot(y, fw1_ref[l], preferred_element_type=F32) + fb1_ref[l]),
            fw2_ref[l], preferred_element_type=F32) + fb2_ref[l]
        t = _layernorm(y + ff, g2_ref[l], be2_ref[l])                 # norm2(y + ff)

    # ---- residual (use_residual=True) + last-token (static row slice) + head ----
    t = t + t_in
    last = t[S - 1:S, :]                                              # (1, D)
    hh = _gelu_exact(jnp.dot(last, hw1_ref[...],
                             preferred_element_type=F32) + hb1_ref[...])
    out = jnp.dot(hh, hw2_ref[...], preferred_element_type=F32) + hb2_ref[...]
    out_ref[0] = out                                                  # (1, out_dim)


# --------------------------------- wrapper -------------------------------------

@partial(jax.jit, static_argnames=("num_heads",))
def hybrid_cnn_transformer_forward(x, fp, num_heads):
    B, S, Cin = x.shape
    out_dim = fp["head_w2"].shape[1]

    kern = partial(fused_forward_kernel, num_heads=num_heads)

    weights = (fp["conv1_w_cat"], fp["conv1_b"], fp["conv2_w_cat"], fp["conv2_b"],
               fp["proj_w"], fp["proj_b"], fp["pe"],
               fp["wqkv"], fp["bqkv"], fp["wo"], fp["bo"],
               fp["ln1_g"], fp["ln1_b"],
               fp["ffn_w1"], fp["ffn_b1"], fp["ffn_w2"], fp["ffn_b2"],
               fp["ln2_g"], fp["ln2_b"],
               fp["head_w1"], fp["head_b1"], fp["head_w2"], fp["head_b2"])

    def full_block(a):
        # Whole-array VMEM block, same block for every grid step.
        return pl.BlockSpec(a.shape, lambda b, _nd=a.ndim: (0,) * _nd)

    in_specs = ([pl.BlockSpec((1, S, Cin), lambda b: (b, 0, 0))]
                + [full_block(w) for w in weights])
    # Output kept 3-D so the block's trailing dims equal the array's trailing dims.
    out_spec = pl.BlockSpec((1, 1, out_dim), lambda b: (b, 0, 0))

    out = pl.pallas_call(
        kern,
        out_shape=jax.ShapeDtypeStruct((B, 1, out_dim), F32),
        grid_spec=pltpu.PrefetchScalarGridSpec(
            num_scalar_prefetch=0,
            grid=(B,),
            in_specs=in_specs,
            out_specs=out_spec),
        compiler_params=pltpu.CompilerParams(
            dimension_semantics=("parallel",)),      # 2 TCs on v7x; harmless on v5e/v6e
    )(x, *weights)
    return out.reshape(B, out_dim)


# ------------------------- params / positional encoding ------------------------

def make_positional_encoding(seq_len, d_model):
    pos = jnp.arange(seq_len, dtype=F32)[:, None]
    div = jnp.exp(jnp.arange(0, d_model, 2, dtype=F32) * (-math.log(10000.0) / d_model))
    pe = jnp.zeros((seq_len, d_model), F32)
    pe = pe.at[:, 0::2].set(jnp.sin(pos * div))
    pe = pe.at[:, 1::2].set(jnp.cos(pos * div))
    return pe


def init_params(key, input_dim, output_dim, cnn_filters, transformer_dim, n_layers):
    # Conv weights stored as (K, Cin, Cout) == PyTorch (Cout, Cin, K) transposed.
    D = transformer_dim
    keys = iter(jax.random.split(key, 128))

    def nrm(shape, scale=0.05):
        return scale * jax.random.normal(next(keys), shape, dtype=F32)

    params = {
        "conv1_w": nrm((3, input_dim, cnn_filters)),
        "conv1_b": nrm((1, cnn_filters)),
        "conv2_w": nrm((3, cnn_filters, cnn_filters)),
        "conv2_b": nrm((1, cnn_filters)),
        "proj_w": nrm((cnn_filters, D)),
        "proj_b": nrm((1, D)),
        "head_w1": nrm((D, D // 2)),
        "head_b1": nrm((1, D // 2)),
        "head_w2": nrm((D // 2, output_dim)),
        "head_b2": nrm((1, output_dim)),
        "layers": [],
    }
    for _ in range(n_layers):
        params["layers"].append({
            "wq": nrm((D, D)), "bq": nrm((1, D)),
            "wk": nrm((D, D)), "bk": nrm((1, D)),
            "wv": nrm((D, D)), "bv": nrm((1, D)),
            "wo": nrm((D, D)), "bo": nrm((1, D)),
            "ln1_g": jnp.ones((1, D), F32), "ln1_b": jnp.zeros((1, D), F32),
            "ffn_w1": nrm((D, 4 * D)), "ffn_b1": nrm((1, 4 * D)),
            "ffn_w2": nrm((4 * D, D)), "ffn_b2": nrm((1, D)),
            "ln2_g": jnp.ones((1, D), F32), "ln2_b": jnp.zeros((1, D), F32),
        })
    return params


def prep_params(params, pe):
    """Host-side fusion/stacking of weights for the fused kernel."""
    w1, w2 = params["conv1_w"], params["conv2_w"]
    layers = params["layers"]
    stack = lambda name: jnp.stack([lp[name] for lp in layers])
    return {
        "conv1_w_cat": jnp.concatenate([w1[0], w1[1], w1[2]], axis=1),   # (Cin, 3*Fc)
        "conv1_b": params["conv1_b"],
        "conv2_w_cat": jnp.concatenate([w2[0], w2[1], w2[2]], axis=1),   # (Fc, 3*Fc)
        "conv2_b": params["conv2_b"],
        "proj_w": params["proj_w"], "proj_b": params["proj_b"],
        "pe": pe,                                                        # (S, D)
        "wqkv": jnp.stack([jnp.concatenate([lp["wq"], lp["wk"], lp["wv"]], axis=1)
                           for lp in layers]),                           # (L, D, 3D)
        "bqkv": jnp.stack([jnp.concatenate([lp["bq"], lp["bk"], lp["bv"]], axis=1)
                           for lp in layers]),                           # (L, 1, 3D)
        "wo": stack("wo"), "bo": stack("bo"),
        "ln1_g": stack("ln1_g"), "ln1_b": stack("ln1_b"),
        "ffn_w1": stack("ffn_w1"), "ffn_b1": stack("ffn_b1"),
        "ffn_w2": stack("ffn_w2"), "ffn_b2": stack("ffn_b2"),
        "ln2_g": stack("ln2_g"), "ln2_b": stack("ln2_b"),
        "head_w1": params["head_w1"], "head_b1": params["head_b1"],
        "head_w2": params["head_w2"], "head_b2": params["head_b2"],
    }


# ----------------------------------- main --------------------------------------

if __name__ == "__main__":
    # Small shapes consistent with forward: x is [batch, seq, input_dim]
    B, S, IN_DIM, OUT_DIM = 2, 8, 4, 3
    CNN_FILTERS, D_MODEL, HEADS, LAYERS = 16, 32, 4, 2

    key = jax.random.PRNGKey(0)
    kx, kp = jax.random.split(key)
    x = jax.random.normal(kx, (B, S, IN_DIM), dtype=F32)
    params = init_params(kp, IN_DIM, OUT_DIM, CNN_FILTERS, D_MODEL, LAYERS)
    pe = make_positional_encoding(S, D_MODEL)
    fp = prep_params(params, pe)

    out = hybrid_cnn_transformer_forward(x, fp, num_heads=HEADS)
    out = jax.block_until_ready(out)

    assert out.shape == (B, OUT_DIM), out.shape
    assert bool(jnp.all(jnp.isfinite(out)))
    # TODO(synk): dropout layers are identity here (eval-mode semantics only).
    print("KERNEL_OK")
</pallas_src>

<mosaic_0001>
module attributes {stable_mosaic.version = 11 : i64} {
  func.func @fused_forward_kernel(%arg0: i32, %arg1: memref<1x8x4xf32, #tpu.memory_space<vmem>>, %arg2: memref<4x48xf32, #tpu.memory_space<vmem>>, %arg3: memref<1x16xf32, #tpu.memory_space<vmem>>, %arg4: memref<16x48xf32, #tpu.memory_space<vmem>>, %arg5: memref<1x16xf32, #tpu.memory_space<vmem>>, %arg6: memref<16x32xf32, #tpu.memory_space<vmem>>, %arg7: memref<1x32xf32, #tpu.memory_space<vmem>>, %arg8: memref<8x32xf32, #tpu.memory_space<vmem>>, %arg9: memref<2x32x96xf32, #tpu.memory_space<vmem>>, %arg10: memref<2x1x96xf32, #tpu.memory_space<vmem>>, %arg11: memref<2x32x32xf32, #tpu.memory_space<vmem>>, %arg12: memref<2x1x32xf32, #tpu.memory_space<vmem>>, %arg13: memref<2x1x32xf32, #tpu.memory_space<vmem>>, %arg14: memref<2x1x32xf32, #tpu.memory_space<vmem>>, %arg15: memref<2x32x128xf32, #tpu.memory_space<vmem>>, %arg16: memref<2x1x128xf32, #tpu.memory_space<vmem>>, %arg17: memref<2x128x32xf32, #tpu.memory_space<vmem>>, %arg18: memref<2x1x32xf32, #tpu.memory_space<vmem>>, %arg19: memref<2x1x32xf32, #tpu.memory_space<vmem>>, %arg20: memref<2x1x32xf32, #tpu.memory_space<vmem>>, %arg21: memref<32x16xf32, #tpu.memory_space<vmem>>, %arg22: memref<1x16xf32, #tpu.memory_space<vmem>>, %arg23: memref<16x3xf32, #tpu.memory_space<vmem>>, %arg24: memref<1x3xf32, #tpu.memory_space<vmem>>, %arg25: memref<1x1x3xf32, #tpu.memory_space<vmem>>) attributes {dimension_semantics = [#tpu.dimension_semantics<parallel>], iteration_bounds = array<i64: 2>, scalar_prefetch = 0 : i64, scratch_operands = 0 : i64, tpu.core_type = #tpu.core_type<tc>, window_params = [{transform_indices = @transform_0, window_bounds = array<i64: 1, 8, 4>}, {pipeline_mode = #tpu.pipeline_mode<synchronous>, transform_indices = @transform_1, window_bounds = array<i64: 4, 48>}, {pipeline_mode = #tpu.pipeline_mode<synchronous>, transform_indices = @transform_2, window_bounds = array<i64: 1, 16>}, {pipeline_mode = #tpu.pipeline_mode<synchronous>, transform_indices = @transform_3, window_bounds = array<i64: 16, 48>}, {pipeline_mode = #tpu.pipeline_mode<synchronous>, transform_indices = @transform_4, window_bounds = array<i64: 1, 16>}, {pipeline_mode = #tpu.pipeline_mode<synchronous>, transform_indices = @transform_5, window_bounds = array<i64: 16, 32>}, {pipeline_mode = #tpu.pipeline_mode<synchronous>, transform_indices = @transform_6, window_bounds = array<i64: 1, 32>}, {pipeline_mode = #tpu.pipeline_mode<synchronous>, transform_indices = @transform_7, window_bounds = array<i64: 8, 32>}, {pipeline_mode = #tpu.pipeline_mode<synchronous>, transform_indices = @transform_8, window_bounds = array<i64: 2, 32, 96>}, {pipeline_mode = #tpu.pipeline_mode<synchronous>, transform_indices = @transform_9, window_bounds = array<i64: 2, 1, 96>}, {pipeline_mode = #tpu.pipeline_mode<synchronous>, transform_indices = @transform_10, window_bounds = array<i64: 2, 32, 32>}, {pipeline_mode = #tpu.pipeline_mode<synchronous>, transform_indices = @transform_11, window_bounds = array<i64: 2, 1, 32>}, {pipeline_mode = #tpu.pipeline_mode<synchronous>, transform_indices = @transform_12, window_bounds = array<i64: 2, 1, 32>}, {pipeline_mode = #tpu.pipeline_mode<synchronous>, transform_indices = @transform_13, window_bounds = array<i64: 2, 1, 32>}, {pipeline_mode = #tpu.pipeline_mode<synchronous>, transform_indices = @transform_14, window_bounds = array<i64: 2, 32, 128>}, {pipeline_mode = #tpu.pipeline_mode<synchronous>, transform_indices = @transform_15, window_bounds = array<i64: 2, 1, 128>}, {pipeline_mode = #tpu.pipeline_mode<synchronous>, transform_indices = @transform_16, window_bounds = array<i64: 2, 128, 32>}, {pipeline_mode = #tpu.pipeline_mode<synchronous>, transform_indices = @transform_17, window_bounds = array<i64: 2, 1, 32>}, {pipeline_mode = #tpu.pipeline_mode<synchronous>, transform_indices = @transform_18, window_bounds = array<i64: 2, 1, 32>}, {pipeline_mode = #tpu.pipeline_mode<synchronous>, transform_indices = @transform_19, window_bounds = array<i64: 2, 1, 32>}, {pipeline_mode = #tpu.pipeline_mode<synchronous>, transform_indices = @transform_20, window_bounds = array<i64: 32, 16>}, {pipeline_mode = #tpu.pipeline_mode<synchronous>, transform_indices = @transform_21, window_bounds = array<i64: 1, 16>}, {pipeline_mode = #tpu.pipeline_mode<synchronous>, transform_indices = @transform_22, window_bounds = array<i64: 16, 3>}, {pipeline_mode = #tpu.pipeline_mode<synchronous>, transform_indices = @transform_23, window_bounds = array<i64: 1, 3>}, {transform_indices = @transform_24, window_bounds = array<i64: 1, 1, 3>}]} {
    %c0 = arith.constant 0 : index
    %c0_0 = arith.constant 0 : index
    %c0_1 = arith.constant 0 : index
    %0 = vector.load %arg1[%c0, %c0_0, %c0_1] : memref<1x8x4xf32, #tpu.memory_space<vmem>>, vector<1x8x4xf32>
    %1 = vector.shape_cast %0 : vector<1x8x4xf32> to vector<8x4xf32>
    %c0_2 = arith.constant 0 : index
    %c0_3 = arith.constant 0 : index
    %2 = vector.load %arg2[%c0_2, %c0_3] : memref<4x48xf32, #tpu.memory_space<vmem>>, vector<4x48xf32>
    %cst = arith.constant dense<0.000000e+00> : vector<8x48xf32>
    %3 = tpu.matmul %1, %2, %cst {dimension_numbers = #tpu.dot_dimension_numbers<[1], [0], [0], [1], [0, 0, 1, 1], [], []>} : vector<8x4xf32>, vector<4x48xf32>, vector<8x48xf32> -> vector<8x48xf32>
    %cst_4 = arith.constant 0.000000e+00 : f32
    %4 = vector.broadcast %cst_4 : f32 to vector<1x16xf32>
    %5 = vector.extract_strided_slice %3 {offsets = [0, 0], sizes = [7, 16], strides = [1, 1]} : vector<8x48xf32> to vector<7x16xf32>
    %6 = tpu.concatenate %4, %5 in 0 : vector<1x16xf32>, vector<7x16xf32> -> vector<8x16xf32>
    %7 = vector.extract_strided_slice %3 {offsets = [1, 32], sizes = [7, 16], strides = [1, 1]} : vector<8x48xf32> to vector<7x16xf32>
    %8 = tpu.concatenate %7, %4 in 0 : vector<7x16xf32>, vector<1x16xf32> -> vector<8x16xf32>
    %9 = vector.extract_strided_slice %3 {offsets = [0, 16], sizes = [8, 16], strides = [1, 1]} : vector<8x48xf32> to vector<8x16xf32>
    %10 = arith.addf %6, %9 : vector<8x16xf32>
    %11 = arith.addf %10, %8 : vector<8x16xf32>
    %c0_5 = arith.constant 0 : index
    %c0_6 = arith.constant 0 : index
    %12 = vector.load %arg3[%c0_5, %c0_6] : memref<1x16xf32, #tpu.memory_space<vmem>>, vector<1x16xf32>
    %13 = vector.broadcast %12 : vector<1x16xf32> to vector<8x16xf32>
    %14 = arith.addf %11, %13 : vector<8x16xf32>
    %cst_7 = arith.constant 0.000000e+00 : f32
    %15 = vector.broadcast %cst_7 : f32 to vector<8x16xf32>
    %16 = arith.maximumf %14, %15 : vector<8x16xf32>
    %c0_8 = arith.constant 0 : index
    %c0_9 = arith.constant 0 : index
    %17 = vector.load %arg4[%c0_8, %c0_9] : memref<16x48xf32, #tpu.memory_space<vmem>>, vector<16x48xf32>
    %cst_10 = arith.constant dense<0.000000e+00> : vector<8x48xf32>
    %18 = tpu.matmul %16, %17, %cst_10 {dimension_numbers = #tpu.dot_dimension_numbers<[1], [0], [0], [1], [0, 0, 1, 1], [], []>} : vector<8x16xf32>, vector<16x48xf32>, vector<8x48xf32> -> vector<8x48xf32>
    %cst_11 = arith.constant 0.000000e+00 : f32
    %19 = vector.broadcast %cst_11 : f32 to vector<1x16xf32>
    %20 = vector.extract_strided_slice %18 {offsets = [0, 0], sizes = [7, 16], strides = [1, 1]} : vector<8x48xf32> to vector<7x16xf32>
    %21 = tpu.concatenate %19, %20 in 0 : vector<1x16xf32>, vector<7x16xf32> -> vector<8x16xf32>
    %22 = vector.extract_strided_slice %18 {offsets = [1, 32], sizes = [7, 16], strides = [1, 1]} : vector<8x48xf32> to vector<7x16xf32>
    %23 = tpu.concatenate %22, %19 in 0 : vector<7x16xf32>, vector<1x16xf32> -> vector<8x16xf32>
    %24 = vector.extract_strided_slice %18 {offsets = [0, 16], sizes = [8, 16], strides = [1, 1]} : vector<8x48xf32> to vector<8x16xf32>
    %25 = arith.addf %21, %24 : vector<8x16xf32>
    %26 = arith.addf %25, %23 : vector<8x16xf32>
    %c0_12 = arith.constant 0 : index
    %c0_13 = arith.constant 0 : index
    %27 = vector.load %arg5[%c0_12, %c0_13] : memref<1x16xf32, #tpu.memory_space<vmem>>, vector<1x16xf32>
    %28 = vector.broadcast %27 : vector<1x16xf32> to vector<8x16xf32>
    %29 = arith.addf %26, %28 : vector<8x16xf32>
    %cst_14 = arith.constant 0.000000e+00 : f32
    %30 = vector.broadcast %cst_14 : f32 to vector<8x16xf32>
    %31 = arith.maximumf %29, %30 : vector<8x16xf32>
    %c0_15 = arith.constant 0 : index
    %c0_16 = arith.constant 0 : index
    %32 = vector.load %arg6[%c0_15, %c0_16] : memref<16x32xf32, #tpu.memory_space<vmem>>, vector<16x32xf32>
    %cst_17 = arith.constant dense<0.000000e+00> : vector<8x32xf32>
    %33 = tpu.matmul %31, %32, %cst_17 {dimension_numbers = #tpu.dot_dimension_numbers<[1], [0], [0], [1], [0, 0, 1, 1], [], []>} : vector<8x16xf32>, vector<16x32xf32>, vector<8x32xf32> -> vector<8x32xf32>
    %c0_18 = arith.constant 0 : index
    %c0_19 = arith.constant 0 : index
    %34 = vector.load %arg7[%c0_18, %c0_19] : memref<1x32xf32, #tpu.memory_space<vmem>>, vector<1x32xf32>
    %35 = vector.broadcast %34 : vector<1x32xf32> to vector<8x32xf32>
    %36 = arith.addf %33, %35 : vector<8x32xf32>
    %c0_20 = arith.constant 0 : index
    %c0_21 = arith.constant 0 : index
    %37 = vector.load %arg8[%c0_20, %c0_21] : memref<8x32xf32, #tpu.memory_space<vmem>>, vector<8x32xf32>
    %38 = arith.addf %36, %37 : vector<8x32xf32>
    %c0_22 = arith.constant 0 : index
    %c0_23 = arith.constant 0 : index
    %c0_24 = arith.constant 0 : index
    %39 = vector.load %arg9[%c0_22, %c0_23, %c0_24] : memref<2x32x96xf32, #tpu.memory_space<vmem>>, vector<1x32x96xf32>
    %40 = vector.shape_cast %39 : vector<1x32x96xf32> to vector<32x96xf32>
    %cst_25 = arith.constant dense<0.000000e+00> : vector<8x96xf32>
    %41 = tpu.matmul %38, %40, %cst_25 {dimension_numbers = #tpu.dot_dimension_numbers<[1], [0], [0], [1], [0, 0, 1, 1], [], []>} : vector<8x32xf32>, vector<32x96xf32>, vector<8x96xf32> -> vector<8x96xf32>
    %c0_26 = arith.constant 0 : index
    %c0_27 = arith.constant 0 : index
    %c0_28 = arith.constant 0 : index
    %42 = vector.load %arg10[%c0_26, %c0_27, %c0_28] : memref<2x1x96xf32, #tpu.memory_space<vmem>>, vector<1x1x96xf32>
    %43 = vector.shape_cast %42 : vector<1x1x96xf32> to vector<1x96xf32>
    %44 = vector.broadcast %43 : vector<1x96xf32> to vector<8x96xf32>
    %45 = arith.addf %41, %44 : vector<8x96xf32>
    %46 = vector.extract_strided_slice %45 {offsets = [0, 0], sizes = [8, 32], strides = [1, 1]} : vector<8x96xf32> to vector<8x32xf32>
    %47 = vector.extract_strided_slice %45 {offsets = [0, 32], sizes = [8, 32], strides = [1, 1]} : vector<8x96xf32> to vector<8x32xf32>
    %48 = vector.extract_strided_slice %45 {offsets = [0, 64], sizes = [8, 32], strides = [1, 1]} : vector<8x96xf32> to vector<8x32xf32>
    %49 = vector.extract_strided_slice %46 {offsets = [0, 0], sizes = [8, 8], strides = [1, 1]} : vector<8x32xf32> to vector<8x8xf32>
    %50 = vector.extract_strided_slice %46 {offsets = [0, 8], sizes = [8, 8], strides = [1, 1]} : vector<8x32xf32> to vector<8x8xf32>
    %51 = vector.extract_strided_slice %46 {offsets = [0, 16], sizes = [8, 8], strides = [1, 1]} : vector<8x32xf32> to vector<8x8xf32>
    %52 = vector.extract_strided_slice %46 {offsets = [0, 24], sizes = [8, 8], strides = [1, 1]} : vector<8x32xf32> to vector<8x8xf32>
    %53 = vector.shape_cast %49 : vector<8x8xf32> to vector<1x8x8xf32>
    %54 = vector.shape_cast %50 : vector<8x8xf32> to vector<1x8x8xf32>
    %55 = vector.shape_cast %51 : vector<8x8xf32> to vector<1x8x8xf32>
    %56 = vector.shape_cast %52 : vector<8x8xf32> to vector<1x8x8xf32>
    %57 = tpu.concatenate %53, %54, %55, %56 in 0 : vector<1x8x8xf32>, vector<1x8x8xf32>, vector<1x8x8xf32>, vector<1x8x8xf32> -> vector<4x8x8xf32>
    %58 = vector.extract_strided_slice %47 {offsets = [0, 0], sizes = [8, 8], strides = [1, 1]} : vector<8x32xf32> to vector<8x8xf32>
    %59 = vector.extract_strided_slice %47 {offsets = [0, 8], sizes = [8, 8], strides = [1, 1]} : vector<8x32xf32> to vector<8x8xf32>
    %60 = vector.extract_strided_slice %47 {offsets = [0, 16], sizes = [8, 8], strides = [1, 1]} : vector<8x32xf32> to vector<8x8xf32>
    %61 = vector.extract_strided_slice %47 {offsets = [0, 24], sizes = [8, 8], strides = [1, 1]} : vector<8x32xf32> to vector<8x8xf32>
    %62 = vector.shape_cast %58 : vector<8x8xf32> to vector<1x8x8xf32>
    %63 = vector.shape_cast %59 : vector<8x8xf32> to vector<1x8x8xf32>
    %64 = vector.shape_cast %60 : vector<8x8xf32> to vector<1x8x8xf32>
    %65 = vector.shape_cast %61 : vector<8x8xf32> to vector<1x8x8xf32>
    %66 = tpu.concatenate %62, %63, %64, %65 in 0 : vector<1x8x8xf32>, vector<1x8x8xf32>, vector<1x8x8xf32>, vector<1x8x8xf32> -> vector<4x8x8xf32>
    %67 = vector.extract_strided_slice %48 {offsets = [0, 0], sizes = [8, 8], strides = [1, 1]} : vector<8x32xf32> to vector<8x8xf32>
    %68 = vector.extract_strided_slice %48 {offsets = [0, 8], sizes = [8, 8], strides = [1, 1]} : vector<8x32xf32> to vector<8x8xf32>
    %69 = vector.extract_strided_slice %48 {offsets = [0, 16], sizes = [8, 8], strides = [1, 1]} : vector<8x32xf32> to vector<8x8xf32>
    %70 = vector.extract_strided_slice %48 {offsets = [0, 24], sizes = [8, 8], strides = [1, 1]} : vector<8x32xf32> to vector<8x8xf32>
    %71 = vector.shape_cast %67 : vector<8x8xf32> to vector<1x8x8xf32>
    %72 = vector.shape_cast %68 : vector<8x8xf32> to vector<1x8x8xf32>
    %73 = vector.shape_cast %69 : vector<8x8xf32> to vector<1x8x8xf32>
    %74 = vector.shape_cast %70 : vector<8x8xf32> to vector<1x8x8xf32>
    %75 = tpu.concatenate %71, %72, %73, %74 in 0 : vector<1x8x8xf32>, vector<1x8x8xf32>, vector<1x8x8xf32>, vector<1x8x8xf32> -> vector<4x8x8xf32>
    "tpu.trace_start"() <{level = 10 : i32, message = "hqd,hkd->hqk"}> : () -> ()
    %cst_29 = arith.constant dense<0.000000e+00> : vector<4x8x8xf32>
    %76 = tpu.matmul %57, %66, %cst_29 {dimension_numbers = #tpu.dot_dimension_numbers<[2], [2], [1], [1], [0, 0, 0, 1, 1, 1], [0], [0]>} : vector<4x8x8xf32>, vector<4x8x8xf32>, vector<4x8x8xf32> -> vector<4x8x8xf32>
    "tpu.trace_stop"() : () -> ()
    %cst_30 = arith.constant 0.353553385 : f32
    %77 = vector.broadcast %cst_30 : f32 to vector<4x8x8xf32>
    %78 = arith.mulf %76, %77 : vector<4x8x8xf32>
    %cst_31 = arith.constant dense<0xFF800000> : vector<4x8xf32>
    %79 = vector.multi_reduction <maximumf>, %78, %cst_31 [2] : vector<4x8x8xf32> to vector<4x8xf32>
    %80 = vector.shape_cast %79 : vector<4x8xf32> to vector<4x8x1xf32>
    %81 = vector.broadcast %80 : vector<4x8x1xf32> to vector<4x8x8xf32>
    %82 = arith.subf %78, %81 : vector<4x8x8xf32>
    %83 = math.exp %82 : vector<4x8x8xf32>
    %cst_32 = arith.constant dense<0.000000e+00> : vector<4x8xf32>
    %84 = vector.multi_reduction <add>, %83, %cst_32 [2] : vector<4x8x8xf32> to vector<4x8xf32>
    %85 = vector.shape_cast %84 : vector<4x8xf32> to vector<4x8x1xf32>
    "tpu.trace_start"() <{level = 10 : i32, message = "hqk,hkd->hqd"}> : () -> ()
    %cst_33 = arith.constant dense<0.000000e+00> : vector<4x8x8xf32>
    %86 = tpu.matmul %83, %75, %cst_33 {dimension_numbers = #tpu.dot_dimension_numbers<[2], [1], [1], [2], [0, 0, 0, 1, 1, 2], [0], [0]>} : vector<4x8x8xf32>, vector<4x8x8xf32>, vector<4x8x8xf32> -> vector<4x8x8xf32>
    "tpu.trace_stop"() : () -> ()
    %87 = tpu.reciprocal %85 {approx = true} : vector<4x8x1xf32> -> vector<4x8x1xf32>
    %88 = vector.broadcast %87 : vector<4x8x1xf32> to vector<4x8x8xf32>
    %89 = arith.mulf %86, %88 : vector<4x8x8xf32>
    %90 = vector.extract_strided_slice %89 {offsets = [0, 0, 0], sizes = [1, 8, 8], strides = [1, 1, 1]} : vector<4x8x8xf32> to vector<1x8x8xf32>
    %91 = vector.shape_cast %90 : vector<1x8x8xf32> to vector<8x8xf32>
    %92 = vector.extract_strided_slice %89 {offsets = [1, 0, 0], sizes = [1, 8, 8], strides = [1, 1, 1]} : vector<4x8x8xf32> to vector<1x8x8xf32>
    %93 = vector.shape_cast %92 : vector<1x8x8xf32> to vector<8x8xf32>
    %94 = vector.extract_strided_slice %89 {offsets = [2, 0, 0], sizes = [1, 8, 8], strides = [1, 1, 1]} : vector<4x8x8xf32> to vector<1x8x8xf32>
    %95 = vector.shape_cast %94 : vector<1x8x8xf32> to vector<8x8xf32>
    %96 = vector.extract_strided_slice %89 {offsets = [3, 0, 0], sizes = [1, 8, 8], strides = [1, 1, 1]} : vector<4x8x8xf32> to vector<1x8x8xf32>
    %97 = vector.shape_cast %96 : vector<1x8x8xf32> to vector<8x8xf32>
    %98 = tpu.concatenate %91, %93, %95, %97 in 1 : vector<8x8xf32>, vector<8x8xf32>, vector<8x8xf32>, vector<8x8xf32> -> vector<8x32xf32>
    %c0_34 = arith.constant 0 : index
    %c0_35 = arith.constant 0 : index
    %c0_36 = arith.constant 0 : index
    %99 = vector.load %arg11[%c0_34, %c0_35, %c0_36] : memref<2x32x32xf32, #tpu.memory_space<vmem>>, vector<1x32x32xf32>
    %100 = vector.shape_cast %99 : vector<1x32x32xf32> to vector<32x32xf32>
    %cst_37 = arith.constant dense<0.000000e+00> : vector<8x32xf32>
    %101 = tpu.matmul %98, %100, %cst_37 {dimension_numbers = #tpu.dot_dimension_numbers<[1], [0], [0], [1], [0, 0, 1, 1], [], []>} : vector<8x32xf32>, vector<32x32xf32>, vector<8x32xf32> -> vector<8x32xf32>
    %c0_38 = arith.constant 0 : index
    %c0_39 = arith.constant 0 : index
    %c0_40 = arith.constant 0 : index
    %102 = vector.load %arg12[%c0_38, %c0_39, %c0_40] : memref<2x1x32xf32, #tpu.memory_space<vmem>>, vector<1x1x32xf32>
    %103 = vector.shape_cast %102 : vector<1x1x32xf32> to vector<1x32xf32>
    %104 = vector.broadcast %103 : vector<1x32xf32> to vector<8x32xf32>
    %105 = arith.addf %101, %104 : vector<8x32xf32>
    %106 = arith.addf %38, %105 : vector<8x32xf32>
    %c0_41 = arith.constant 0 : index
    %c0_42 = arith.constant 0 : index
    %c0_43 = arith.constant 0 : index
    %107 = vector.load %arg13[%c0_41, %c0_42, %c0_43] : memref<2x1x32xf32, #tpu.memory_space<vmem>>, vector<1x1x32xf32>
    %108 = vector.shape_cast %107 : vector<1x1x32xf32> to vector<1x32xf32>
    %c0_44 = arith.constant 0 : index
    %c0_45 = arith.constant 0 : index
    %c0_46 = arith.constant 0 : index
    %109 = vector.load %arg14[%c0_44, %c0_45, %c0_46] : memref<2x1x32xf32, #tpu.memory_space<vmem>>, vector<1x1x32xf32>
    %110 = vector.shape_cast %109 : vector<1x1x32xf32> to vector<1x32xf32>
    %cst_47 = arith.constant dense<0.000000e+00> : vector<8xf32>
    %111 = vector.multi_reduction <add>, %106, %cst_47 [1] : vector<8x32xf32> to vector<8xf32>
    %112 = vector.shape_cast %111 : vector<8xf32> to vector<8x1xf32>
    %cst_48 = arith.constant 3.200000e+01 : f32
    %113 = vector.broadcast %cst_48 : f32 to vector<8x1xf32>
    %114 = arith.divf %112, %113 : vector<8x1xf32>
    %115 = vector.broadcast %114 : vector<8x1xf32> to vector<8x32xf32>
    %116 = arith.subf %106, %115 : vector<8x32xf32>
    %117 = vector.broadcast %114 : vector<8x1xf32> to vector<8x32xf32>
    %118 = arith.subf %106, %117 : vector<8x32xf32>
    %119 = arith.mulf %116, %118 : vector<8x32xf32>
    %cst_49 = arith.constant dense<0.000000e+00> : vector<8xf32>
    %120 = vector.multi_reduction <add>, %119, %cst_49 [1] : vector<8x32xf32> to vector<8xf32>
    %121 = vector.shape_cast %120 : vector<8xf32> to vector<8x1xf32>
    %cst_50 = arith.constant 3.200000e+01 : f32
    %122 = vector.broadcast %cst_50 : f32 to vector<8x1xf32>
    %123 = arith.divf %121, %122 : vector<8x1xf32>
    %124 = vector.broadcast %114 : vector<8x1xf32> to vector<8x32xf32>
    %125 = arith.subf %106, %124 : vector<8x32xf32>
    %cst_51 = arith.constant 9.99999974E-6 : f32
    %126 = vector.broadcast %cst_51 : f32 to vector<8x1xf32>
    %127 = arith.addf %123, %126 : vector<8x1xf32>
    %128 = math.rsqrt %127 : vector<8x1xf32>
    %129 = vector.broadcast %128 : vector<8x1xf32> to vector<8x32xf32>
    %130 = arith.mulf %125, %129 : vector<8x32xf32>
    %131 = vector.broadcast %108 : vector<1x32xf32> to vector<8x32xf32>
    %132 = arith.mulf %130, %131 : vector<8x32xf32>
    %133 = vector.broadcast %110 : vector<1x32xf32> to vector<8x32xf32>
    %134 = arith.addf %132, %133 : vector<8x32xf32>
    %c0_52 = arith.constant 0 : index
    %c0_53 = arith.constant 0 : index
    %c0_54 = arith.constant 0 : index
    %135 = vector.load %arg15[%c0_52, %c0_53, %c0_54] : memref<2x32x128xf32, #tpu.memory_space<vmem>>, vector<1x32x128xf32>
    %136 = vector.shape_cast %135 : vector<1x32x128xf32> to vector<32x128xf32>
    %cst_55 = arith.constant dense<0.000000e+00> : vector<8x128xf32>
    %137 = tpu.matmul %134, %136, %cst_55 {dimension_numbers = #tpu.dot_dimension_numbers<[1], [0], [0], [1], [0, 0, 1, 1], [], []>} : vector<8x32xf32>, vector<32x128xf32>, vector<8x128xf32> -> vector<8x128xf32>
    %c0_56 = arith.constant 0 : index
    %c0_57 = arith.constant 0 : index
    %c0_58 = arith.constant 0 : index
    %138 = vector.load %arg16[%c0_56, %c0_57, %c0_58] : memref<2x1x128xf32, #tpu.memory_space<vmem>>, vector<1x1x128xf32>
    %139 = vector.shape_cast %138 : vector<1x1x128xf32> to vector<1x128xf32>
    %140 = vector.broadcast %139 : vector<1x128xf32> to vector<8x128xf32>
    %141 = arith.addf %137, %140 : vector<8x128xf32>
    %cst_59 = arith.constant 0.707106769 : f32
    %142 = vector.broadcast %cst_59 : f32 to vector<8x128xf32>
    %143 = arith.mulf %141, %142 : vector<8x128xf32>
    %cst_60 = arith.constant 0.000000e+00 : f32
    %144 = vector.broadcast %cst_60 : f32 to vector<8x128xf32>
    %145 = arith.cmpf oge, %143, %144 : vector<8x128xf32>
    %cst_61 = arith.constant 1.000000e+00 : f32
    %cst_62 = arith.constant -1.000000e+00 : f32
    %146 = vector.broadcast %cst_61 : f32 to vector<8x128xf32>
    %147 = vector.broadcast %cst_62 : f32 to vector<8x128xf32>
    %148 = arith.select %145, %146, %147 : vector<8x128xi1>, vector<8x128xf32>
    %149 = math.absf %143 : vector<8x128xf32>
    %cst_63 = arith.constant 0.327591091 : f32
    %150 = vector.broadcast %cst_63 : f32 to vector<8x128xf32>
    %151 = arith.mulf %150, %149 : vector<8x128xf32>
    %cst_64 = arith.constant 1.000000e+00 : f32
    %152 = vector.broadcast %cst_64 : f32 to vector<8x128xf32>
    %153 = arith.addf %152, %151 : vector<8x128xf32>
    %cst_65 = arith.constant 1.000000e+00 : f32
    %154 = vector.broadcast %cst_65 : f32 to vector<8x128xf32>
    %155 = arith.divf %154, %153 : vector<8x128xf32>
    %cst_66 = arith.constant 1.06140542 : f32
    %156 = vector.broadcast %cst_66 : f32 to vector<8x128xf32>
    %157 = arith.mulf %155, %156 : vector<8x128xf32>
    %cst_67 = arith.constant -1.45315206 : f32
    %158 = vector.broadcast %cst_67 : f32 to vector<8x128xf32>
    %159 = arith.addf %158, %157 : vector<8x128xf32>
    %160 = arith.mulf %155, %159 : vector<8x128xf32>
    %cst_68 = arith.constant 1.42141378 : f32
    %161 = vector.broadcast %cst_68 : f32 to vector<8x128xf32>
    %162 = arith.addf %161, %160 : vector<8x128xf32>
    %163 = arith.mulf %155, %162 : vector<8x128xf32>
    %cst_69 = arith.constant -0.284496725 : f32
    %164 = vector.broadcast %cst_69 : f32 to vector<8x128xf32>
    %165 = arith.addf %164, %163 : vector<8x128xf32>
    %166 = arith.mulf %155, %165 : vector<8x128xf32>
    %cst_70 = arith.constant 0.254829586 : f32
    %167 = vector.broadcast %cst_70 : f32 to vector<8x128xf32>
    %168 = arith.addf %167, %166 : vector<8x128xf32>
    %169 = arith.mulf %155, %168 : vector<8x128xf32>
    %cst_71 = arith.constant 0.000000e+00 : f32
    %170 = vector.broadcast %cst_71 : f32 to vector<8x128xf32>
    %171 = arith.subf %170, %149 : vector<8x128xf32>
    %172 = arith.mulf %171, %149 : vector<8x128xf32>
    %173 = math.exp %172 : vector<8x128xf32>
    %174 = arith.mulf %169, %173 : vector<8x128xf32>
    %cst_72 = arith.constant 1.000000e+00 : f32
    %175 = vector.broadcast %cst_72 : f32 to vector<8x128xf32>
    %176 = arith.subf %175, %174 : vector<8x128xf32>
    %177 = arith.mulf %148, %176 : vector<8x128xf32>
    %cst_73 = arith.constant 5.000000e-01 : f32
    %178 = vector.broadcast %cst_73 : f32 to vector<8x128xf32>
    %179 = arith.mulf %178, %141 : vector<8x128xf32>
    %cst_74 = arith.constant 1.000000e+00 : f32
    %180 = vector.broadcast %cst_74 : f32 to vector<8x128xf32>
    %181 = arith.addf %180, %177 : vector<8x128xf32>
    %182 = arith.mulf %179, %181 : vector<8x128xf32>
    %c0_75 = arith.constant 0 : index
    %c0_76 = arith.constant 0 : index
    %c0_77 = arith.constant 0 : index
    %183 = vector.load %arg17[%c0_75, %c0_76, %c0_77] : memref<2x128x32xf32, #tpu.memory_space<vmem>>, vector<1x128x32xf32>
    %184 = vector.shape_cast %183 : vector<1x128x32xf32> to vector<128x32xf32>
    %cst_78 = arith.constant dense<0.000000e+00> : vector<8x32xf32>
    %185 = tpu.matmul %182, %184, %cst_78 {dimension_numbers = #tpu.dot_dimension_numbers<[1], [0], [0], [1], [0, 0, 1, 1], [], []>} : vector<8x128xf32>, vector<128x32xf32>, vector<8x32xf32> -> vector<8x32xf32>
    %c0_79 = arith.constant 0 : index
    %c0_80 = arith.constant 0 : index
    %c0_81 = arith.constant 0 : index
    %186 = vector.load %arg18[%c0_79, %c0_80, %c0_81] : memref<2x1x32xf32, #tpu.memory_space<vmem>>, vector<1x1x32xf32>
    %187 = vector.shape_cast %186 : vector<1x1x32xf32> to vector<1x32xf32>
    %188 = vector.broadcast %187 : vector<1x32xf32> to vector<8x32xf32>
    %189 = arith.addf %185, %188 : vector<8x32xf32>
    %190 = arith.addf %134, %189 : vector<8x32xf32>
    %c0_82 = arith.constant 0 : index
    %c0_83 = arith.constant 0 : index
    %c0_84 = arith.constant 0 : index
    %191 = vector.load %arg19[%c0_82, %c0_83, %c0_84] : memref<2x1x32xf32, #tpu.memory_space<vmem>>, vector<1x1x32xf32>
    %192 = vector.shape_cast %191 : vector<1x1x32xf32> to vector<1x32xf32>
    %c0_85 = arith.constant 0 : index
    %c0_86 = arith.constant 0 : index
    %c0_87 = arith.constant 0 : index
    %193 = vector.load %arg20[%c0_85, %c0_86, %c0_87] : memref<2x1x32xf32, #tpu.memory_space<vmem>>, vector<1x1x32xf32>
    %194 = vector.shape_cast %193 : vector<1x1x32xf32> to vector<1x32xf32>
    %cst_88 = arith.constant dense<0.000000e+00> : vector<8xf32>
    %195 = vector.multi_reduction <add>, %190, %cst_88 [1] : vector<8x32xf32> to vector<8xf32>
    %196 = vector.shape_cast %195 : vector<8xf32> to vector<8x1xf32>
    %cst_89 = arith.constant 3.200000e+01 : f32
    %197 = vector.broadcast %cst_89 : f32 to vector<8x1xf32>
    %198 = arith.divf %196, %197 : vector<8x1xf32>
    %199 = vector.broadcast %198 : vector<8x1xf32> to vector<8x32xf32>
    %200 = arith.subf %190, %199 : vector<8x32xf32>
    %201 = vector.broadcast %198 : vector<8x1xf32> to vector<8x32xf32>
    %202 = arith.subf %190, %201 : vector<8x32xf32>
    %203 = arith.mulf %200, %202 : vector<8x32xf32>
    %cst_90 = arith.constant dense<0.000000e+00> : vector<8xf32>
    %204 = vector.multi_reduction <add>, %203, %cst_90 [1] : vector<8x32xf32> to vector<8xf32>
    %205 = vector.shape_cast %204 : vector<8xf32> to vector<8x1xf32>
    %cst_91 = arith.constant 3.200000e+01 : f32
    %206 = vector.broadcast %cst_91 : f32 to vector<8x1xf32>
    %207 = arith.divf %205, %206 : vector<8x1xf32>
    %208 = vector.broadcast %198 : vector<8x1xf32> to vector<8x32xf32>
    %209 = arith.subf %190, %208 : vector<8x32xf32>
    %cst_92 = arith.constant 9.99999974E-6 : f32
    %210 = vector.broadcast %cst_92 : f32 to vector<8x1xf32>
    %211 = arith.addf %207, %210 : vector<8x1xf32>
    %212 = math.rsqrt %211 : vector<8x1xf32>
    %213 = vector.broadcast %212 : vector<8x1xf32> to vector<8x32xf32>
    %214 = arith.mulf %209, %213 : vector<8x32xf32>
    %215 = vector.broadcast %192 : vector<1x32xf32> to vector<8x32xf32>
    %216 = arith.mulf %214, %215 : vector<8x32xf32>
    %217 = vector.broadcast %194 : vector<1x32xf32> to vector<8x32xf32>
    %218 = arith.addf %216, %217 : vector<8x32xf32>
    %c1 = arith.constant 1 : index
    %c0_93 = arith.constant 0 : index
    %c0_94 = arith.constant 0 : index
    %219 = vector.load %arg9[%c1, %c0_93, %c0_94] : memref<2x32x96xf32, #tpu.memory_space<vmem>>, vector<1x32x96xf32>
    %220 = vector.shape_cast %219 : vector<1x32x96xf32> to vector<32x96xf32>
    %cst_95 = arith.constant dense<0.000000e+00> : vector<8x96xf32>
    %221 = tpu.matmul %218, %220, %cst_95 {dimension_numbers = #tpu.dot_dimension_numbers<[1], [0], [0], [1], [0, 0, 1, 1], [], []>} : vector<8x32xf32>, vector<32x96xf32>, vector<8x96xf32> -> vector<8x96xf32>
    %c1_96 = arith.constant 1 : index
    %c0_97 = arith.constant 0 : index
    %c0_98 = arith.constant 0 : index
    %222 = vector.load %arg10[%c1_96, %c0_97, %c0_98] : memref<2x1x96xf32, #tpu.memory_space<vmem>>, vector<1x1x96xf32>
    %223 = vector.shape_cast %222 : vector<1x1x96xf32> to vector<1x96xf32>
    %224 = vector.broadcast %223 : vector<1x96xf32> to vector<8x96xf32>
    %225 = arith.addf %221, %224 : vector<8x96xf32>
    %226 = vector.extract_strided_slice %225 {offsets = [0, 0], sizes = [8, 32], strides = [1, 1]} : vector<8x96xf32> to vector<8x32xf32>
    %227 = vector.extract_strided_slice %225 {offsets = [0, 32], sizes = [8, 32], strides = [1, 1]} : vector<8x96xf32> to vector<8x32xf32>
    %228 = vector.extract_strided_slice %225 {offsets = [0, 64], sizes = [8, 32], strides = [1, 1]} : vector<8x96xf32> to vector<8x32xf32>
    %229 = vector.extract_strided_slice %226 {offsets = [0, 0], sizes = [8, 8], strides = [1, 1]} : vector<8x32xf32> to vector<8x8xf32>
    %230 = vector.extract_strided_slice %226 {offsets = [0, 8], sizes = [8, 8], strides = [1, 1]} : vector<8x32xf32> to vector<8x8xf32>
    %231 = vector.extract_strided_slice %226 {offsets = [0, 16], sizes = [8, 8], strides = [1, 1]} : vector<8x32xf32> to vector<8x8xf32>
    %232 = vector.extract_strided_slice %226 {offsets = [0, 24], sizes = [8, 8], strides = [1, 1]} : vector<8x32xf32> to vector<8x8xf32>
    %233 = vector.shape_cast %229 : vector<8x8xf32> to vector<1x8x8xf32>
    %234 = vector.shape_cast %230 : vector<8x8xf32> to vector<1x8x8xf32>
    %235 = vector.shape_cast %231 : vector<8x8xf32> to vector<1x8x8xf32>
    %236 = vector.shape_cast %232 : vector<8x8xf32> to vector<1x8x8xf32>
    %237 = tpu.concatenate %233, %234, %235, %236 in 0 : vector<1x8x8xf32>, vector<1x8x8xf32>, vector<1x8x8xf32>, vector<1x8x8xf32> -> vector<4x8x8xf32>
    %238 = vector.extract_strided_slice %227 {offsets = [0, 0], sizes = [8, 8], strides = [1, 1]} : vector<8x32xf32> to vector<8x8xf32>
    %239 = vector.extract_strided_slice %227 {offsets = [0, 8], sizes = [8, 8], strides = [1, 1]} : vector<8x32xf32> to vector<8x8xf32>
    %240 = vector.extract_strided_slice %227 {offsets = [0, 16], sizes = [8, 8], strides = [1, 1]} : vector<8x32xf32> to vector<8x8xf32>
    %241 = vector.extract_strided_slice %227 {offsets = [0, 24], sizes = [8, 8], strides = [1, 1]} : vector<8x32xf32> to vector<8x8xf32>
    %242 = vector.shape_cast %238 : vector<8x8xf32> to vector<1x8x8xf32>
    %243 = vector.shape_cast %239 : vector<8x8xf32> to vector<1x8x8xf32>
    %244 = vector.shape_cast %240 : vector<8x8xf32> to vector<1x8x8xf32>
    %245 = vector.shape_cast %241 : vector<8x8xf32> to vector<1x8x8xf32>
    %246 = tpu.concatenate %242, %243, %244, %245 in 0 : vector<1x8x8xf32>, vector<1x8x8xf32>, vector<1x8x8xf32>, vector<1x8x8xf32> -> vector<4x8x8xf32>
    %247 = vector.extract_strided_slice %228 {offsets = [0, 0], sizes = [8, 8], strides = [1, 1]} : vector<8x32xf32> to vector<8x8xf32>
    %248 = vector.extract_strided_slice %228 {offsets = [0, 8], sizes = [8, 8], strides = [1, 1]} : vector<8x32xf32> to vector<8x8xf32>
    %249 = vector.extract_strided_slice %228 {offsets = [0, 16], sizes = [8, 8], strides = [1, 1]} : vector<8x32xf32> to vector<8x8xf32>
    %250 = vector.extract_strided_slice %228 {offsets = [0, 24], sizes = [8, 8], strides = [1, 1]} : vector<8x32xf32> to vector<8x8xf32>
    %251 = vector.shape_cast %247 : vector<8x8xf32> to vector<1x8x8xf32>
    %252 = vector.shape_cast %248 : vector<8x8xf32> to vector<1x8x8xf32>
    %253 = vector.shape_cast %249 : vector<8x8xf32> to vector<1x8x8xf32>
    %254 = vector.shape_cast %250 : vector<8x8xf32> to vector<1x8x8xf32>
    %255 = tpu.concatenate %251, %252, %253, %254 in 0 : vector<1x8x8xf32>, vector<1x8x8xf32>, vector<1x8x8xf32>, vector<1x8x8xf32> -> vector<4x8x8xf32>
    "tpu.trace_start"() <{level = 10 : i32, message = "hqd,hkd->hqk"}> : () -> ()
    %cst_99 = arith.constant dense<0.000000e+00> : vector<4x8x8xf32>
    %256 = tpu.matmul %237, %246, %cst_99 {dimension_numbers = #tpu.dot_dimension_numbers<[2], [2], [1], [1], [0, 0, 0, 1, 1, 1], [0], [0]>} : vector<4x8x8xf32>, vector<4x8x8xf32>, vector<4x8x8xf32> -> vector<4x8x8xf32>
    "tpu.trace_stop"() : () -> ()
    %cst_100 = arith.constant 0.353553385 : f32
    %257 = vector.broadcast %cst_100 : f32 to vector<4x8x8xf32>
    %258 = arith.mulf %256, %257 : vector<4x8x8xf32>
    %cst_101 = arith.constant dense<0xFF800000> : vector<4x8xf32>
    %259 = vector.multi_reduction <maximumf>, %258, %cst_101 [2] : vector<4x8x8xf32> to vector<4x8xf32>
    %260 = vector.shape_cast %259 : vector<4x8xf32> to vector<4x8x1xf32>
    %261 = vector.broadcast %260 : vector<4x8x1xf32> to vector<4x8x8xf32>
    %262 = arith.subf %258, %261 : vector<4x8x8xf32>
    %263 = math.exp %262 : vector<4x8x8xf32>
    %cst_102 = arith.constant dense<0.000000e+00> : vector<4x8xf32>
    %264 = vector.multi_reduction <add>, %263, %cst_102 [2] : vector<4x8x8xf32> to vector<4x8xf32>
    %265 = vector.shape_cast %264 : vector<4x8xf32> to vector<4x8x1xf32>
    "tpu.trace_start"() <{level = 10 : i32, message = "hqk,hkd->hqd"}> : () -> ()
    %cst_103 = arith.constant dense<0.000000e+00> : vector<4x8x8xf32>
    %266 = tpu.matmul %263, %255, %cst_103 {dimension_numbers = #tpu.dot_dimension_numbers<[2], [1], [1], [2], [0, 0, 0, 1, 1, 2], [0], [0]>} : vector<4x8x8xf32>, vector<4x8x8xf32>, vector<4x8x8xf32> -> vector<4x8x8xf32>
    "tpu.trace_stop"() : () -> ()
    %267 = tpu.reciprocal %265 {approx = true} : vector<4x8x1xf32> -> vector<4x8x1xf32>
    %268 = vector.broadcast %267 : vector<4x8x1xf32> to vector<4x8x8xf32>
    %269 = arith.mulf %266, %268 : vector<4x8x8xf32>
    %270 = vector.extract_strided_slice %269 {offsets = [0, 0, 0], sizes = [1, 8, 8], strides = [1, 1, 1]} : vector<4x8x8xf32> to vector<1x8x8xf32>
    %271 = vector.shape_cast %270 : vector<1x8x8xf32> to vector<8x8xf32>
    %272 = vector.extract_strided_slice %269 {offsets = [1, 0, 0], sizes = [1, 8, 8], strides = [1, 1, 1]} : vector<4x8x8xf32> to vector<1x8x8xf32>
    %273 = vector.shape_cast %272 : vector<1x8x8xf32> to vector<8x8xf32>
    %274 = vector.extract_strided_slice %269 {offsets = [2, 0, 0], sizes = [1, 8, 8], strides = [1, 1, 1]} : vector<4x8x8xf32> to vector<1x8x8xf32>
    %275 = vector.shape_cast %274 : vector<1x8x8xf32> to vector<8x8xf32>
    %276 = vector.extract_strided_slice %269 {offsets = [3, 0, 0], sizes = [1, 8, 8], strides = [1, 1, 1]} : vector<4x8x8xf32> to vector<1x8x8xf32>
    %277 = vector.shape_cast %276 : vector<1x8x8xf32> to vector<8x8xf32>
    %278 = tpu.concatenate %271, %273, %275, %277 in 1 : vector<8x8xf32>, vector<8x8xf32>, vector<8x8xf32>, vector<8x8xf32> -> vector<8x32xf32>
    %c1_104 = arith.constant 1 : index
    %c0_105 = arith.constant 0 : index
    %c0_106 = arith.constant 0 : index
    %279 = vector.load %arg11[%c1_104, %c0_105, %c0_106] : memref<2x32x32xf32, #tpu.memory_space<vmem>>, vector<1x32x32xf32>
    %280 = vector.shape_cast %279 : vector<1x32x32xf32> to vector<32x32xf32>
    %cst_107 = arith.constant dense<0.000000e+00> : vector<8x32xf32>
    %281 = tpu.matmul %278, %280, %cst_107 {dimension_numbers = #tpu.dot_dimension_numbers<[1], [0], [0], [1], [0, 0, 1, 1], [], []>} : vector<8x32xf32>, vector<32x32xf32>, vector<8x32xf32> -> vector<8x32xf32>
    %c1_108 = arith.constant 1 : index
    %c0_109 = arith.constant 0 : index
    %c0_110 = arith.constant 0 : index
    %282 = vector.load %arg12[%c1_108, %c0_109, %c0_110] : memref<2x1x32xf32, #tpu.memory_space<vmem>>, vector<1x1x32xf32>
    %283 = vector.shape_cast %282 : vector<1x1x32xf32> to vector<1x32xf32>
    %284 = vector.broadcast %283 : vector<1x32xf32> to vector<8x32xf32>
    %285 = arith.addf %281, %284 : vector<8x32xf32>
    %286 = arith.addf %218, %285 : vector<8x32xf32>
    %c1_111 = arith.constant 1 : index
    %c0_112 = arith.constant 0 : index
    %c0_113 = arith.constant 0 : index
    %287 = vector.load %arg13[%c1_111, %c0_112, %c0_113] : memref<2x1x32xf32, #tpu.memory_space<vmem>>, vector<1x1x32xf32>
    %288 = vector.shape_cast %287 : vector<1x1x32xf32> to vector<1x32xf32>
    %c1_114 = arith.constant 1 : index
    %c0_115 = arith.constant 0 : index
    %c0_116 = arith.constant 0 : index
    %289 = vector.load %arg14[%c1_114, %c0_115, %c0_116] : memref<2x1x32xf32, #tpu.memory_space<vmem>>, vector<1x1x32xf32>
    %290 = vector.shape_cast %289 : vector<1x1x32xf32> to vector<1x32xf32>
    %cst_117 = arith.constant dense<0.000000e+00> : vector<8xf32>
    %291 = vector.multi_reduction <add>, %286, %cst_117 [1] : vector<8x32xf32> to vector<8xf32>
    %292 = vector.shape_cast %291 : vector<8xf32> to vector<8x1xf32>
    %cst_118 = arith.constant 3.200000e+01 : f32
    %293 = vector.broadcast %cst_118 : f32 to vector<8x1xf32>
    %294 = arith.divf %292, %293 : vector<8x1xf32>
    %295 = vector.broadcast %294 : vector<8x1xf32> to vector<8x32xf32>
    %296 = arith.subf %286, %295 : vector<8x32xf32>
    %297 = vector.broadcast %294 : vector<8x1xf32> to vector<8x32xf32>
    %298 = arith.subf %286, %297 : vector<8x32xf32>
    %299 = arith.mulf %296, %298 : vector<8x32xf32>
    %cst_119 = arith.constant dense<0.000000e+00> : vector<8xf32>
    %300 = vector.multi_reduction <add>, %299, %cst_119 [1] : vector<8x32xf32> to vector<8xf32>
    %301 = vector.shape_cast %300 : vector<8xf32> to vector<8x1xf32>
    %cst_120 = arith.constant 3.200000e+01 : f32
    %302 = vector.broadcast %cst_120 : f32 to vector<8x1xf32>
    %303 = arith.divf %301, %302 : vector<8x1xf32>
    %304 = vector.broadcast %294 : vector<8x1xf32> to vector<8x32xf32>
    %305 = arith.subf %286, %304 : vector<8x32xf32>
    %cst_121 = arith.constant 9.99999974E-6 : f32
    %306 = vector.broadcast %cst_121 : f32 to vector<8x1xf32>
    %307 = arith.addf %303, %306 : vector<8x1xf32>
    %308 = math.rsqrt %307 : vector<8x1xf32>
    %309 = vector.broadcast %308 : vector<8x1xf32> to vector<8x32xf32>
    %310 = arith.mulf %305, %309 : vector<8x32xf32>
    %311 = vector.broadcast %288 : vector<1x32xf32> to vector<8x32xf32>
    %312 = arith.mulf %310, %311 : vector<8x32xf32>
    %313 = vector.broadcast %290 : vector<1x32xf32> to vector<8x32xf32>
    %314 = arith.addf %312, %313 : vector<8x32xf32>
    %c1_122 = arith.constant 1 : index
    %c0_123 = arith.constant 0 : index
    %c0_124 = arith.constant 0 : index
    %315 = vector.load %arg15[%c1_122, %c0_123, %c0_124] : memref<2x32x128xf32, #tpu.memory_space<vmem>>, vector<1x32x128xf32>
    %316 = vector.shape_cast %315 : vector<1x32x128xf32> to vector<32x128xf32>
    %cst_125 = arith.constant dense<0.000000e+00> : vector<8x128xf32>
    %317 = tpu.matmul %314, %316, %cst_125 {dimension_numbers = #tpu.dot_dimension_numbers<[1], [0], [0], [1], [0, 0, 1, 1], [], []>} : vector<8x32xf32>, vector<32x128xf32>, vector<8x128xf32> -> vector<8x128xf32>
    %c1_126 = arith.constant 1 : index
    %c0_127 = arith.constant 0 : index
    %c0_128 = arith.constant 0 : index
    %318 = vector.load %arg16[%c1_126, %c0_127, %c0_128] : memref<2x1x128xf32, #tpu.memory_space<vmem>>, vector<1x1x128xf32>
    %319 = vector.shape_cast %318 : vector<1x1x128xf32> to vector<1x128xf32>
    %320 = vector.broadcast %319 : vector<1x128xf32> to vector<8x128xf32>
    %321 = arith.addf %317, %320 : vector<8x128xf32>
    %cst_129 = arith.constant 0.707106769 : f32
    %322 = vector.broadcast %cst_129 : f32 to vector<8x128xf32>
    %323 = arith.mulf %321, %322 : vector<8x128xf32>
    %cst_130 = arith.constant 0.000000e+00 : f32
    %324 = vector.broadcast %cst_130 : f32 to vector<8x128xf32>
    %325 = arith.cmpf oge, %323, %324 : vector<8x128xf32>
    %cst_131 = arith.constant 1.000000e+00 : f32
    %cst_132 = arith.constant -1.000000e+00 : f32
    %326 = vector.broadcast %cst_131 : f32 to vector<8x128xf32>
    %327 = vector.broadcast %cst_132 : f32 to vector<8x128xf32>
    %328 = arith.select %325, %326, %327 : vector<8x128xi1>, vector<8x128xf32>
    %329 = math.absf %323 : vector<8x128xf32>
    %cst_133 = arith.constant 0.327591091 : f32
    %330 = vector.broadcast %cst_133 : f32 to vector<8x128xf32>
    %331 = arith.mulf %330, %329 : vector<8x128xf32>
    %cst_134 = arith.constant 1.000000e+00 : f32
    %332 = vector.broadcast %cst_134 : f32 to vector<8x128xf32>
    %333 = arith.addf %332, %331 : vector<8x128xf32>
    %cst_135 = arith.constant 1.000000e+00 : f32
    %334 = vector.broadcast %cst_135 : f32 to vector<8x128xf32>
    %335 = arith.divf %334, %333 : vector<8x128xf32>
    %cst_136 = arith.constant 1.06140542 : f32
    %336 = vector.broadcast %cst_136 : f32 to vector<8x128xf32>
    %337 = arith.mulf %335, %336 : vector<8x128xf32>
    %cst_137 = arith.constant -1.45315206 : f32
    %338 = vector.broadcast %cst_137 : f32 to vector<8x128xf32>
    %339 = arith.addf %338, %337 : vector<8x128xf32>
    %340 = arith.mulf %335, %339 : vector<8x128xf32>
    %cst_138 = arith.constant 1.42141378 : f32
    %341 = vector.broadcast %cst_138 : f32 to vector<8x128xf32>
    %342 = arith.addf %341, %340 : vector<8x128xf32>
    %343 = arith.mulf %335, %342 : vector<8x128xf32>
    %cst_139 = arith.constant -0.284496725 : f32
    %344 = vector.broadcast %cst_139 : f32 to vector<8x128xf32>
    %345 = arith.addf %344, %343 : vector<8x128xf32>
    %346 = arith.mulf %335, %345 : vector<8x128xf32>
    %cst_140 = arith.constant 0.254829586 : f32
    %347 = vector.broadcast %cst_140 : f32 to vector<8x128xf32>
    %348 = arith.addf %347, %346 : vector<8x128xf32>
    %349 = arith.mulf %335, %348 : vector<8x128xf32>
    %cst_141 = arith.constant 0.000000e+00 : f32
    %350 = vector.broadcast %cst_141 : f32 to vector<8x128xf32>
    %351 = arith.subf %350, %329 : vector<8x128xf32>
    %352 = arith.mulf %351, %329 : vector<8x128xf32>
    %353 = math.exp %352 : vector<8x128xf32>
    %354 = arith.mulf %349, %353 : vector<8x128xf32>
    %cst_142 = arith.constant 1.000000e+00 : f32
    %355 = vector.broadcast %cst_142 : f32 to vector<8x128xf32>
    %356 = arith.subf %355, %354 : vector<8x128xf32>
    %357 = arith.mulf %328, %356 : vector<8x128xf32>
    %cst_143 = arith.constant 5.000000e-01 : f32
    %358 = vector.broadcast %cst_143 : f32 to vector<8x128xf32>
    %359 = arith.mulf %358, %321 : vector<8x128xf32>
    %cst_144 = arith.constant 1.000000e+00 : f32
    %360 = vector.broadcast %cst_144 : f32 to vector<8x128xf32>
    %361 = arith.addf %360, %357 : vector<8x128xf32>
    %362 = arith.mulf %359, %361 : vector<8x128xf32>
    %c1_145 = arith.constant 1 : index
    %c0_146 = arith.constant 0 : index
    %c0_147 = arith.constant 0 : index
    %363 = vector.load %arg17[%c1_145, %c0_146, %c0_147] : memref<2x128x32xf32, #tpu.memory_space<vmem>>, vector<1x128x32xf32>
    %364 = vector.shape_cast %363 : vector<1x128x32xf32> to vector<128x32xf32>
    %cst_148 = arith.constant dense<0.000000e+00> : vector<8x32xf32>
    %365 = tpu.matmul %362, %364, %cst_148 {dimension_numbers = #tpu.dot_dimension_numbers<[1], [0], [0], [1], [0, 0, 1, 1], [], []>} : vector<8x128xf32>, vector<128x32xf32>, vector<8x32xf32> -> vector<8x32xf32>
    %c1_149 = arith.constant 1 : index
    %c0_150 = arith.constant 0 : index
    %c0_151 = arith.constant 0 : index
    %366 = vector.load %arg18[%c1_149, %c0_150, %c0_151] : memref<2x1x32xf32, #tpu.memory_space<vmem>>, vector<1x1x32xf32>
    %367 = vector.shape_cast %366 : vector<1x1x32xf32> to vector<1x32xf32>
    %368 = vector.broadcast %367 : vector<1x32xf32> to vector<8x32xf32>
    %369 = arith.addf %365, %368 : vector<8x32xf32>
    %370 = arith.addf %314, %369 : vector<8x32xf32>
    %c1_152 = arith.constant 1 : index
    %c0_153 = arith.constant 0 : index
    %c0_154 = arith.constant 0 : index
    %371 = vector.load %arg19[%c1_152, %c0_153, %c0_154] : memref<2x1x32xf32, #tpu.memory_space<vmem>>, vector<1x1x32xf32>
    %372 = vector.shape_cast %371 : vector<1x1x32xf32> to vector<1x32xf32>
    %c1_155 = arith.constant 1 : index
    %c0_156 = arith.constant 0 : index
    %c0_157 = arith.constant 0 : index
    %373 = vector.load %arg20[%c1_155, %c0_156, %c0_157] : memref<2x1x32xf32, #tpu.memory_space<vmem>>, vector<1x1x32xf32>
    %374 = vector.shape_cast %373 : vector<1x1x32xf32> to vector<1x32xf32>
    %cst_158 = arith.constant dense<0.000000e+00> : vector<8xf32>
    %375 = vector.multi_reduction <add>, %370, %cst_158 [1] : vector<8x32xf32> to vector<8xf32>
    %376 = vector.shape_cast %375 : vector<8xf32> to vector<8x1xf32>
    %cst_159 = arith.constant 3.200000e+01 : f32
    %377 = vector.broadcast %cst_159 : f32 to vector<8x1xf32>
    %378 = arith.divf %376, %377 : vector<8x1xf32>
    %379 = vector.broadcast %378 : vector<8x1xf32> to vector<8x32xf32>
    %380 = arith.subf %370, %379 : vector<8x32xf32>
    %381 = vector.broadcast %378 : vector<8x1xf32> to vector<8x32xf32>
    %382 = arith.subf %370, %381 : vector<8x32xf32>
    %383 = arith.mulf %380, %382 : vector<8x32xf32>
    %cst_160 = arith.constant dense<0.000000e+00> : vector<8xf32>
    %384 = vector.multi_reduction <add>, %383, %cst_160 [1] : vector<8x32xf32> to vector<8xf32>
    %385 = vector.shape_cast %384 : vector<8xf32> to vector<8x1xf32>
    %cst_161 = arith.constant 3.200000e+01 : f32
    %386 = vector.broadcast %cst_161 : f32 to vector<8x1xf32>
    %387 = arith.divf %385, %386 : vector<8x1xf32>
    %388 = vector.broadcast %378 : vector<8x1xf32> to vector<8x32xf32>
    %389 = arith.subf %370, %388 : vector<8x32xf32>
    %cst_162 = arith.constant 9.99999974E-6 : f32
    %390 = vector.broadcast %cst_162 : f32 to vector<8x1xf32>
    %391 = arith.addf %387, %390 : vector<8x1xf32>
    %392 = math.rsqrt %391 : vector<8x1xf32>
    %393 = vector.broadcast %392 : vector<8x1xf32> to vector<8x32xf32>
    %394 = arith.mulf %389, %393 : vector<8x32xf32>
    %395 = vector.broadcast %372 : vector<1x32xf32> to vector<8x32xf32>
    %396 = arith.mulf %394, %395 : vector<8x32xf32>
    %397 = vector.broadcast %374 : vector<1x32xf32> to vector<8x32xf32>
    %398 = arith.addf %396, %397 : vector<8x32xf32>
    %399 = arith.addf %398, %38 : vector<8x32xf32>
    %400 = vector.extract_strided_slice %399 {offsets = [7, 0], sizes = [1, 32], strides = [1, 1]} : vector<8x32xf32> to vector<1x32xf32>
    %c0_163 = arith.constant 0 : index
    %c0_164 = arith.constant 0 : index
    %401 = vector.load %arg21[%c0_163, %c0_164] : memref<32x16xf32, #tpu.memory_space<vmem>>, vector<32x16xf32>
    %cst_165 = arith.constant dense<0.000000e+00> : vector<1x16xf32>
    %402 = tpu.matmul %400, %401, %cst_165 {dimension_numbers = #tpu.dot_dimension_numbers<[1], [0], [0], [1], [0, 0, 1, 1], [], []>} : vector<1x32xf32>, vector<32x16xf32>, vector<1x16xf32> -> vector<1x16xf32>
    %c0_166 = arith.constant 0 : index
    %c0_167 = arith.constant 0 : index
    %403 = vector.load %arg22[%c0_166, %c0_167] : memref<1x16xf32, #tpu.memory_space<vmem>>, vector<1x16xf32>
    %404 = arith.addf %402, %403 : vector<1x16xf32>
    %cst_168 = arith.constant 0.707106769 : f32
    %405 = vector.broadcast %cst_168 : f32 to vector<1x16xf32>
    %406 = arith.mulf %404, %405 : vector<1x16xf32>
    %cst_169 = arith.constant 0.000000e+00 : f32
    %407 = vector.broadcast %cst_169 : f32 to vector<1x16xf32>
    %408 = arith.cmpf oge, %406, %407 : vector<1x16xf32>
    %cst_170 = arith.constant 1.000000e+00 : f32
    %cst_171 = arith.constant -1.000000e+00 : f32
    %409 = vector.broadcast %cst_170 : f32 to vector<1x16xf32>
    %410 = vector.broadcast %cst_171 : f32 to vector<1x16xf32>
    %411 = arith.select %408, %409, %410 : vector<1x16xi1>, vector<1x16xf32>
    %412 = math.absf %406 : vector<1x16xf32>
    %cst_172 = arith.constant 0.327591091 : f32
    %413 = vector.broadcast %cst_172 : f32 to vector<1x16xf32>
    %414 = arith.mulf %413, %412 : vector<1x16xf32>
    %cst_173 = arith.constant 1.000000e+00 : f32
    %415 = vector.broadcast %cst_173 : f32 to vector<1x16xf32>
    %416 = arith.addf %415, %414 : vector<1x16xf32>
    %cst_174 = arith.constant 1.000000e+00 : f32
    %417 = vector.broadcast %cst_174 : f32 to vector<1x16xf32>
    %418 = arith.divf %417, %416 : vector<1x16xf32>
    %cst_175 = arith.constant 1.06140542 : f32
    %419 = vector.broadcast %cst_175 : f32 to vector<1x16xf32>
    %420 = arith.mulf %418, %419 : vector<1x16xf32>
    %cst_176 = arith.constant -1.45315206 : f32
    %421 = vector.broadcast %cst_176 : f32 to vector<1x16xf32>
    %422 = arith.addf %421, %420 : vector<1x16xf32>
    %423 = arith.mulf %418, %422 : vector<1x16xf32>
    %cst_177 = arith.constant 1.42141378 : f32
    %424 = vector.broadcast %cst_177 : f32 to vector<1x16xf32>
    %425 = arith.addf %424, %423 : vector<1x16xf32>
    %426 = arith.mulf %418, %425 : vector<1x16xf32>
    %cst_178 = arith.constant -0.284496725 : f32
    %427 = vector.broadcast %cst_178 : f32 to vector<1x16xf32>
    %428 = arith.addf %427, %426 : vector<1x16xf32>
    %429 = arith.mulf %418, %428 : vector<1x16xf32>
    %cst_179 = arith.constant 0.254829586 : f32
    %430 = vector.broadcast %cst_179 : f32 to vector<1x16xf32>
    %431 = arith.addf %430, %429 : vector<1x16xf32>
    %432 = arith.mulf %418, %431 : vector<1x16xf32>
    %cst_180 = arith.constant 0.000000e+00 : f32
    %433 = vector.broadcast %cst_180 : f32 to vector<1x16xf32>
    %434 = arith.subf %433, %412 : vector<1x16xf32>
    %435 = arith.mulf %434, %412 : vector<1x16xf32>
    %436 = math.exp %435 : vector<1x16xf32>
    %437 = arith.mulf %432, %436 : vector<1x16xf32>
    %cst_181 = arith.constant 1.000000e+00 : f32
    %438 = vector.broadcast %cst_181 : f32 to vector<1x16xf32>
    %439 = arith.subf %438, %437 : vector<1x16xf32>
    %440 = arith.mulf %411, %439 : vector<1x16xf32>
    %cst_182 = arith.constant 5.000000e-01 : f32
    %441 = vector.broadcast %cst_182 : f32 to vector<1x16xf32>
    %442 = arith.mulf %441, %404 : vector<1x16xf32>
    %cst_183 = arith.constant 1.000000e+00 : f32
    %443 = vector.broadcast %cst_183 : f32 to vector<1x16xf32>
    %444 = arith.addf %443, %440 : vector<1x16xf32>
    %445 = arith.mulf %442, %444 : vector<1x16xf32>
    %c0_184 = arith.constant 0 : index
    %c0_185 = arith.constant 0 : index
    %446 = vector.load %arg23[%c0_184, %c0_185] : memref<16x3xf32, #tpu.memory_space<vmem>>, vector<16x3xf32>
    %cst_186 = arith.constant dense<0.000000e+00> : vector<1x3xf32>
    %447 = tpu.matmul %445, %446, %cst_186 {dimension_numbers = #tpu.dot_dimension_numbers<[1], [0], [0], [1], [0, 0, 1, 1], [], []>} : vector<1x16xf32>, vector<16x3xf32>, vector<1x3xf32> -> vector<1x3xf32>
    %c0_187 = arith.constant 0 : index
    %c0_188 = arith.constant 0 : index
    %448 = vector.load %arg24[%c0_187, %c0_188] : memref<1x3xf32, #tpu.memory_space<vmem>>, vector<1x3xf32>
    %449 = arith.addf %447, %448 : vector<1x3xf32>
    %c0_189 = arith.constant 0 : index
    %c0_190 = arith.constant 0 : index
    %c0_191 = arith.constant 0 : index
    %450 = vector.load %arg25[%c0_189, %c0_190, %c0_191] : memref<1x1x3xf32, #tpu.memory_space<vmem>>, vector<1x1x3xf32>
    %451 = vector.shape_cast %450 : vector<1x1x3xf32> to vector<1x3xf32>
    %452 = vector.shape_cast %449 : vector<1x3xf32> to vector<1x1x3xf32>
    tpu.vector_store %arg25[%c0_189, %c0_190, %c0_191], %452 {strides = array<i32>} : memref<1x1x3xf32, #tpu.memory_space<vmem>>, vector<1x1x3xf32>,
    return
  }
  func.func @transform_0(%arg0: i32) -> (i32, i32, i32) {
    %c0_i32 = arith.constant 0 : i32
    %c0_i32_0 = arith.constant 0 : i32
    %c0_i32_1 = arith.constant 0 : i32
    return %arg0, %c0_i32, %c0_i32_0 : i32, i32, i32
  }
  func.func @transform_1(%arg0: i32) -> (i32, i32) {
    %c0_i32 = arith.constant 0 : i32
    %c0_i32_0 = arith.constant 0 : i32
    %c0_i32_1 = arith.constant 0 : i32
    return %c0_i32, %c0_i32_0 : i32, i32
  }
  func.func @transform_2(%arg0: i32) -> (i32, i32) {
    %c0_i32 = arith.constant 0 : i32
    %c0_i32_0 = arith.constant 0 : i32
    %c0_i32_1 = arith.constant 0 : i32
    return %c0_i32, %c0_i32_0 : i32, i32
  }
  func.func @transform_3(%arg0: i32) -> (i32, i32) {
    %c0_i32 = arith.constant 0 : i32
    %c0_i32_0 = arith.constant 0 : i32
    %c0_i32_1 = arith.constant 0 : i32
    return %c0_i32, %c0_i32_0 : i32, i32
  }
  func.func @transform_4(%arg0: i32) -> (i32, i32) {
    %c0_i32 = arith.constant 0 : i32
    %c0_i32_0 = arith.constant 0 : i32
    %c0_i32_1 = arith.constant 0 : i32
    return %c0_i32, %c0_i32_0 : i32, i32
  }
  func.func @transform_5(%arg0: i32) -> (i32, i32) {
    %c0_i32 = arith.constant 0 : i32
    %c0_i32_0 = arith.constant 0 : i32
    %c0_i32_1 = arith.constant 0 : i32
    return %c0_i32, %c0_i32_0 : i32, i32
  }
  func.func @transform_6(%arg0: i32) -> (i32, i32) {
    %c0_i32 = arith.constant 0 : i32
    %c0_i32_0 = arith.constant 0 : i32
    %c0_i32_1 = arith.constant 0 : i32
    return %c0_i32, %c0_i32_0 : i32, i32
  }
  func.func @transform_7(%arg0: i32) -> (i32, i32) {
    %c0_i32 = arith.constant 0 : i32
    %c0_i32_0 = arith.constant 0 : i32
    %c0_i32_1 = arith.constant 0 : i32
    return %c0_i32, %c0_i32_0 : i32, i32
  }
  func.func @transform_8(%arg0: i32) -> (i32, i32, i32) {
    %c0_i32 = arith.constant 0 : i32
    %c0_i32_0 = arith.constant 0 : i32
    %c0_i32_1 = arith.constant 0 : i32
    %c0_i32_2 = arith.constant 0 : i32
    return %c0_i32, %c0_i32_0, %c0_i32_1 : i32, i32, i32
  }
  func.func @transform_9(%arg0: i32) -> (i32, i32, i32) {
    %c0_i32 = arith.constant 0 : i32
    %c0_i32_0 = arith.constant 0 : i32
    %c0_i32_1 = arith.constant 0 : i32
    %c0_i32_2 = arith.constant 0 : i32
    return %c0_i32, %c0_i32_0, %c0_i32_1 : i32, i32, i32
  }
  func.func @transform_10(%arg0: i32) -> (i32, i32, i32) {
    %c0_i32 = arith.constant 0 : i32
    %c0_i32_0 = arith.constant 0 : i32
    %c0_i32_1 = arith.constant 0 : i32
    %c0_i32_2 = arith.constant 0 : i32
    return %c0_i32, %c0_i32_0, %c0_i32_1 : i32, i32, i32
  }
  func.func @transform_11(%arg0: i32) -> (i32, i32, i32) {
    %c0_i32 = arith.constant 0 : i32
    %c0_i32_0 = arith.constant 0 : i32
    %c0_i32_1 = arith.constant 0 : i32
    %c0_i32_2 = arith.constant 0 : i32
    return %c0_i32, %c0_i32_0, %c0_i32_1 : i32, i32, i32
  }
  func.func @transform_12(%arg0: i32) -> (i32, i32, i32) {
    %c0_i32 = arith.constant 0 : i32
    %c0_i32_0 = arith.constant 0 : i32
    %c0_i32_1 = arith.constant 0 : i32
    %c0_i32_2 = arith.constant 0 : i32
    return %c0_i32, %c0_i32_0, %c0_i32_1 : i32, i32, i32
  }
  func.func @transform_13(%arg0: i32) -> (i32, i32, i32) {
    %c0_i32 = arith.constant 0 : i32
    %c0_i32_0 = arith.constant 0 : i32
    %c0_i32_1 = arith.constant 0 : i32
    %c0_i32_2 = arith.constant 0 : i32
    return %c0_i32, %c0_i32_0, %c0_i32_1 : i32, i32, i32
  }
  func.func @transform_14(%arg0: i32) -> (i32, i32, i32) {
    %c0_i32 = arith.constant 0 : i32
    %c0_i32_0 = arith.constant 0 : i32
    %c0_i32_1 = arith.constant 0 : i32
    %c0_i32_2 = arith.constant 0 : i32
    return %c0_i32, %c0_i32_0, %c0_i32_1 : i32, i32, i32
  }
  func.func @transform_15(%arg0: i32) -> (i32, i32, i32) {
    %c0_i32 = arith.constant 0 : i32
    %c0_i32_0 = arith.constant 0 : i32
    %c0_i32_1 = arith.constant 0 : i32
    %c0_i32_2 = arith.constant 0 : i32
    return %c0_i32, %c0_i32_0, %c0_i32_1 : i32, i32, i32
  }
  func.func @transform_16(%arg0: i32) -> (i32, i32, i32) {
    %c0_i32 = arith.constant 0 : i32
    %c0_i32_0 = arith.constant 0 : i32
    %c0_i32_1 = arith.constant 0 : i32
    %c0_i32_2 = arith.constant 0 : i32
    return %c0_i32, %c0_i32_0, %c0_i32_1 : i32, i32, i32
  }
  func.func @transform_17(%arg0: i32) -> (i32, i32, i32) {
    %c0_i32 = arith.constant 0 : i32
    %c0_i32_0 = arith.constant 0 : i32
    %c0_i32_1 = arith.constant 0 : i32
    %c0_i32_2 = arith.constant 0 : i32
    return %c0_i32, %c0_i32_0, %c0_i32_1 : i32, i32, i32
  }
  func.func @transform_18(%arg0: i32) -> (i32, i32, i32) {
    %c0_i32 = arith.constant 0 : i32
    %c0_i32_0 = arith.constant 0 : i32
    %c0_i32_1 = arith.constant 0 : i32
    %c0_i32_2 = arith.constant 0 : i32
    return %c0_i32, %c0_i32_0, %c0_i32_1 : i32, i32, i32
  }
  func.func @transform_19(%arg0: i32) -> (i32, i32, i32) {
    %c0_i32 = arith.constant 0 : i32
    %c0_i32_0 = arith.constant 0 : i32
    %c0_i32_1 = arith.constant 0 : i32
    %c0_i32_2 = arith.constant 0 : i32
    return %c0_i32, %c0_i32_0, %c0_i32_1 : i32, i32, i32
  }
  func.func @transform_20(%arg0: i32) -> (i32, i32) {
    %c0_i32 = arith.constant 0 : i32
    %c0_i32_0 = arith.constant 0 : i32
    %c0_i32_1 = arith.constant 0 : i32
    return %c0_i32, %c0_i32_0 : i32, i32
  }
  func.func @transform_21(%arg0: i32) -> (i32, i32) {
    %c0_i32 = arith.constant 0 : i32
    %c0_i32_0 = arith.constant 0 : i32
    %c0_i32_1 = arith.constant 0 : i32
    return %c0_i32, %c0_i32_0 : i32, i32
  }
  func.func @transform_22(%arg0: i32) -> (i32, i32) {
    %c0_i32 = arith.constant 0 : i32
    %c0_i32_0 = arith.constant 0 : i32
    %c0_i32_1 = arith.constant 0 : i32
    return %c0_i32, %c0_i32_0 : i32, i32
  }
  func.func @transform_23(%arg0: i32) -> (i32, i32) {
    %c0_i32 = arith.constant 0 : i32
    %c0_i32_0 = arith.constant 0 : i32
    %c0_i32_1 = arith.constant 0 : i32
    return %c0_i32, %c0_i32_0 : i32, i32
  }
  func.func @transform_24(%arg0: i32) -> (i32, i32, i32) {
    %c0_i32 = arith.constant 0 : i32
    %c0_i32_0 = arith.constant 0 : i32
    %c0_i32_1 = arith.constant 0 : i32
    return %arg0, %c0_i32, %c0_i32_0 : i32, i32, i32
  }
}

</mosaic_0001>

<llo_original>
// kernel: hybrid_cnn_transformer_forward.1
$region0: #{hybrid_cnn_transformer_forward.1}
  #allocation0 [shape = 'u32[]', space=smem, size = 0x4, offset = 0x4, fixed_abs, tag = 'smem constant byte address 0x4 - core index']
  #allocation1 [shape = 'u32[144,128]{1,0:T(1,128)}', space=vmem, size = 0x12000, scoped, tag = 'internal scratch']
  %s0 = inlined_call_operand.vmem [shape: f32[2,8,4], index: 0, kind: input, shape index: {}]
  %s1 = inlined_call_operand.vmem [shape: f32[4,48], index: 1, kind: input, shape index: {}]
  %s2 = inlined_call_operand.vmem [shape: f32[1,16], index: 2, kind: input, shape index: {}]
  %s3 = inlined_call_operand.vmem [shape: f32[16,48], index: 3, kind: input, shape index: {}]
  %s4 = inlined_call_operand.vmem [shape: f32[1,16], index: 4, kind: input, shape index: {}]
  %s5 = inlined_call_operand.vmem [shape: f32[16,32], index: 5, kind: input, shape index: {}]
  %s6 = inlined_call_operand.vmem [shape: f32[1,32], index: 6, kind: input, shape index: {}]
  %s7 = inlined_call_operand.vmem [shape: f32[8,32], index: 7, kind: input, shape index: {}]
  %s8 = inlined_call_operand.vmem [shape: f32[2,32,96], index: 8, kind: input, shape index: {}]
  %s9 = inlined_call_operand.vmem [shape: f32[2,1,96], index: 9, kind: input, shape index: {}]
  %s10 = inlined_call_operand.vmem [shape: f32[2,32,32], index: 10, kind: input, shape index: {}]
  %s11 = inlined_call_operand.vmem [shape: f32[2,1,32], index: 11, kind: input, shape index: {}]
  %s12 = inlined_call_operand.vmem [shape: f32[2,1,32], index: 12, kind: input, shape index: {}]
  %s13 = inlined_call_operand.vmem [shape: f32[2,1,32], index: 13, kind: input, shape index: {}]
  %s14 = inlined_call_operand.vmem [shape: f32[2,32,128], index: 14, kind: input, shape index: {}]
  %s15 = inlined_call_operand.vmem [shape: f32[2,1,128], index: 15, kind: input, shape index: {}]
  %s16 = inlined_call_operand.vmem [shape: f32[2,128,32], index: 16, kind: input, shape index: {}]
  %s17 = inlined_call_operand.vmem [shape: f32[2,1,32], index: 17, kind: input, shape index: {}]
  %s18 = inlined_call_operand.vmem [shape: f32[2,1,32], index: 18, kind: input, shape index: {}]
  %s19 = inlined_call_operand.vmem [shape: f32[2,1,32], index: 19, kind: input, shape index: {}]
  %s20 = inlined_call_operand.vmem [shape: f32[32,16], index: 20, kind: input, shape index: {}]
  %s21 = inlined_call_operand.vmem [shape: f32[1,16], index: 21, kind: input, shape index: {}]
  %s22 = inlined_call_operand.vmem [shape: f32[16,3], index: 22, kind: input, shape index: {}]
  %s23 = inlined_call_operand.vmem [shape: f32[1,3], index: 23, kind: input, shape index: {}]
  %s24 = inlined_call_operand.hbm [shape: f32[2,1,3], index: 24, kind: output, shape index: {}]
  %s25 = sld [smem:[#allocation0]]
  $region129: #{hybrid_cnn_transformer_forward.1} parent=0
    _
  %s27 = ssub.s32 1, %s25
  %s28 = scalar_select 0, %s27, %s25
  $region1: #{hybrid_cnn_transformer_forward.1} parent=0
    #allocation2 [shape = 'u8[1024]{0}', space=vmem, size = 0x400, scoped, tag = 'output window, operand 0']
    #allocation3 [shape = 's32[2]{0}', space=sflag, size = 0x8, scoped, tag = 'scoped memory for hybrid_cnn_transformer_forward.1']
    %29 = vsyncpa [#allocation3], 0
    %s30 = scalar_lea.sflag [#allocation3], 1
    %31 = vsyncpa %s30, 0
    loop: start=0, step=1, limit=4
    $region2: #{hybrid_cnn_transformer_forward.1} parent=1 // loop_pre_header
      _
    $region3: #{hybrid_cnn_transformer_forward.1} parent=1 // loop_header
      %s33 = sphi 0, %s37
      %p34 = scmp.ge.s32.totalorder %s33, 4
      %s43 = sphi 0, %s45
      %s46 = sphi 0, %s43
      %s47 = sphi 0, %s46
      %s63 = sphi 0, %s47
      %s67 = sphi 0, %s67
      %s69 = sphi 0, %s67
      %s70 = sphi 0, %s69
      %s84 = sphi 0, %s70
      %s88 = sphi 0, %s88
      %s90 = sphi 0, %s88
      %s91 = sphi 0, %s90
      %s105 = sphi 0, %s91
      %s109 = sphi 0, %s109
      %s111 = sphi 0, %s109
      %s112 = sphi 0, %s111
      %s126 = sphi 0, %s112
      %s130 = sphi 0, %s130
      %s132 = sphi 0, %s130
      %s133 = sphi 0, %s132
      %s147 = sphi 0, %s133
      %s151 = sphi 0, %s151
      %s153 = sphi 0, %s151
      %s154 = sphi 0, %s153
      %s168 = sphi 0, %s154
      %s172 = sphi 0, %s172
      %s174 = sphi 0, %s172
      %s175 = sphi 0, %s174
      %s189 = sphi 0, %s175
      %s193 = sphi 0, %s193
      %s195 = sphi 0, %s193
      %s196 = sphi 0, %s195
      %s210 = sphi 0, %s196
      %s214 = sphi 0, %s214
      %s216 = sphi 0, %s214
      %s217 = sphi 0, %s216
      %s231 = sphi 0, %s217
      %s235 = sphi 0, %s235
      %s237 = sphi 0, %s235
      %s238 = sphi 0, %s237
      %s252 = sphi 0, %s238
      %s256 = sphi 0, %s256
      %s258 = sphi 0, %s256
      %s259 = sphi 0, %s258
      %s273 = sphi 0, %s259
      %s277 = sphi 0, %s277
      %s279 = sphi 0, %s277
      %s280 = sphi 0, %s279
      %s294 = sphi 0, %s280
      %s298 = sphi 0, %s298
      %s300 = sphi 0, %s298
      %s301 = sphi 0, %s300
      %s315 = sphi 0, %s301
      %s319 = sphi 0, %s319
      %s321 = sphi 0, %s319
      %s322 = sphi 0, %s321
      %s336 = sphi 0, %s322
      %s340 = sphi 0, %s340
      %s342 = sphi 0, %s340
      %s343 = sphi 0, %s342
      %s357 = sphi 0, %s343
      %s361 = sphi 0, %s361
      %s363 = sphi 0, %s361
      %s364 = sphi 0, %s363
      %s378 = sphi 0, %s364
      %s382 = sphi 0, %s382
      %s384 = sphi 0, %s382
      %s385 = sphi 0, %s384
      %s399 = sphi 0, %s385
      %s403 = sphi 0, %s403
      %s405 = sphi 0, %s403
      %s406 = sphi 0, %s405
      %s420 = sphi 0, %s406
      %s424 = sphi 0, %s424
      %s426 = sphi 0, %s424
      %s427 = sphi 0, %s426
      %s441 = sphi 0, %s427
      %s445 = sphi 0, %s445
      %s447 = sphi 0, %s445
      %s448 = sphi 0, %s447
      %s462 = sphi 0, %s448
      %s466 = sphi 0, %s466
      %s468 = sphi 0, %s466
      %s469 = sphi 0, %s468
      %s483 = sphi 0, %s469
      %s487 = sphi 0, %s487
      %s489 = sphi 0, %s487
      %s490 = sphi 0, %s489
      %s504 = sphi 0, %s490
      %s508 = sphi 0, %s508
      %s510 = sphi 0, %s508
      %s511 = sphi 0, %s510
      %s525 = sphi 0, %s511
      %s529 = sphi 0, %s529
      %s531 = sphi 0, %s529
      %s532 = sphi 0, %s531
      %s546 = sphi 0, %s532
      %s552 = sphi 0, %s554
      %s555 = sphi 0, %s552
      %s556 = sphi 0, %s555
      %s572 = sphi 0, %s556
    $region4: #{hybrid_cnn_transformer_forward.1} parent=1 // loop_header_branch
      %36 = sbr.rel (%p34) target = $region8
    $region5: #{hybrid_cnn_transformer_forward.1} parent=1 // loop_body
      %s38 = ssub.s32 %s33, 1
      %s39 = ssub.s32 %s33, 2
      %s40 = sadd.s32 %s33, 1
      %s41 = ssub.s32 %s33, %s40
      %p42 = scmp.eq.s32.totalorder %s41, 0
      %s44 = sadd.s32 %s43, 1
      %s45 = scalar_select %p42, %s43, %s44
      %p48 = pneg %p42
      %p49 = scmp.eq.s32.totalorder %s33, 1
      %p50 = por %p48, %p49
      %p51 = scmp.ne.s32.totalorder %s43, %s46
      %p52 = scmp.eq.s32.totalorder %s33, 0
      %p53 = por %p51, %p52
      %p54 = scmp.ne.s32.totalorder %s43, %s46
      %p55 = scmp.eq.s32.totalorder %s38, 1
      %p56 = por %p54, %p55
      %p57 = scmp.ne.s32.totalorder %s46, %s47
      %p58 = scmp.eq.s32.totalorder %s38, 0
      %p59 = por %p57, %p58
      %p60 = scmp.ne.s32.totalorder %s46, %s47
      %p61 = scmp.eq.s32.totalorder %s39, 1
      %p62 = por %p60, %p61
      %p64 = scmp.ne.s32.totalorder %s47, %s63
      %p65 = scmp.eq.s32.totalorder %s39, 0
      %p66 = por %p64, %p65
      %s68 = sadd.s32 %s67, 1
      %p71 = scmp.eq.s32.totalorder %s33, 1
      %p72 = scmp.ne.s32.totalorder %s67, %s69
      %p73 = scmp.eq.s32.totalorder %s33, 0
      %p74 = por %p72, %p73
      %p75 = scmp.ne.s32.totalorder %s67, %s69
      %p76 = scmp.eq.s32.totalorder %s38, 1
      %p77 = por %p75, %p76
      %p78 = scmp.ne.s32.totalorder %s69, %s70
      %p79 = scmp.eq.s32.totalorder %s38, 0
      %p80 = por %p78, %p79
      %p81 = scmp.ne.s32.totalorder %s69, %s70
      %p82 = scmp.eq.s32.totalorder %s39, 1
      %p83 = por %p81, %p82
      %p85 = scmp.ne.s32.totalorder %s70, %s84
      %p86 = scmp.eq.s32.totalorder %s39, 0
      %p87 = por %p85, %p86
      %s89 = sadd.s32 %s88, 1
      %p92 = scmp.eq.s32.totalorder %s33, 1
      %p93 = scmp.ne.s32.totalorder %s88, %s90
      %p94 = scmp.eq.s32.totalorder %s33, 0
      %p95 = por %p93, %p94
      %p96 = scmp.ne.s32.totalorder %s88, %s90
      %p97 = scmp.eq.s32.totalorder %s38, 1
      %p98 = por %p96, %p97
      %p99 = scmp.ne.s32.totalorder %s90, %s91
      %p100 = scmp.eq.s32.totalorder %s38, 0
      %p101 = por %p99, %p100
      %p102 = scmp.ne.s32.totalorder %s90, %s91
      %p103 = scmp.eq.s32.totalorder %s39, 1
      %p104 = por %p102, %p103
      %p106 = scmp.ne.s32.totalorder %s91, %s105
      %p107 = scmp.eq.s32.totalorder %s39, 0
      %p108 = por %p106, %p107
      %s110 = sadd.s32 %s109, 1
      %p113 = scmp.eq.s32.totalorder %s33, 1
      %p114 = scmp.ne.s32.totalorder %s109, %s111
      %p115 = scmp.eq.s32.totalorder %s33, 0
      %p116 = por %p114, %p115
      %p117 = scmp.ne.s32.totalorder %s109, %s111
      %p118 = scmp.eq.s32.totalorder %s38, 1
      %p119 = por %p117, %p118
      %p120 = scmp.ne.s32.totalorder %s111, %s112
      %p121 = scmp.eq.s32.totalorder %s38, 0
      %p122 = por %p120, %p121
      %p123 = scmp.ne.s32.totalorder %s111, %s112
      %p124 = scmp.eq.s32.totalorder %s39, 1
      %p125 = por %p123, %p124
      %p127 = scmp.ne.s32.totalorder %s112, %s126
      %p128 = scmp.eq.s32.totalorder %s39, 0
      %p129 = por %p127, %p128
      %s131 = sadd.s32 %s130, 1
      %p134 = scmp.eq.s32.totalorder %s33, 1
      %p135 = scmp.ne.s32.totalorder %s130, %s132
      %p136 = scmp.eq.s32.totalorder %s33, 0
      %p137 = por %p135, %p136
      %p138 = scmp.ne.s32.totalorder %s130, %s132
      %p139 = scmp.eq.s32.totalorder %s38, 1
      %p140 = por %p138, %p139
      %p141 = scmp.ne.s32.totalorder %s132, %s133
      %p142 = scmp.eq.s32.totalorder %s38, 0
      %p143 = por %p141, %p142
      %p144 = scmp.ne.s32.totalorder %s132, %s133
      %p145 = scmp.eq.s32.totalorder %s39, 1
      %p146 = por %p144, %p145
      %p148 = scmp.ne.s32.totalorder %s133, %s147
      %p149 = scmp.eq.s32.totalorder %s39, 0
      %p150 = por %p148, %p149
      %s152 = sadd.s32 %s151, 1
      %p155 = scmp.eq.s32.totalorder %s33, 1
      %p156 = scmp.ne.s32.totalorder %s151, %s153
      %p157 = scmp.eq.s32.totalorder %s33, 0
      %p158 = por %p156, %p157
      %p159 = scmp.ne.s32.totalorder %s151, %s153
      %p160 = scmp.eq.s32.totalorder %s38, 1
      %p161 = por %p159, %p160
      %p162 = scmp.ne.s32.totalorder %s153, %s154
      %p163 = scmp.eq.s32.totalorder %s38, 0
      %p164 = por %p162, %p163
      %p165 = scmp.ne.s32.totalorder %s153, %s154
      %p166 = scmp.eq.s32.totalorder %s39, 1
      %p167 = por %p165, %p166
      %p169 = scmp.ne.s32.totalorder %s154, %s168
      %p170 = scmp.eq.s32.totalorder %s39, 0
      %p171 = por %p169, %p170
      %s173 = sadd.s32 %s172, 1
      %p176 = scmp.eq.s32.totalorder %s33, 1
      %p177 = scmp.ne.s32.totalorder %s172, %s174
      %p178 = scmp.eq.s32.totalorder %s33, 0
      %p179 = por %p177, %p178
      %p180 = scmp.ne.s32.totalorder %s172, %s174
      %p181 = scmp.eq.s32.totalorder %s38, 1
      %p182 = por %p180, %p181
      %p183 = scmp.ne.s32.totalorder %s174, %s175
      %p184 = scmp.eq.s32.totalorder %s38, 0
      %p185 = por %p183, %p184
      %p186 = scmp.ne.s32.totalorder %s174, %s175
      %p187 = scmp.eq.s32.totalorder %s39, 1
      %p188 = por %p186, %p187
      %p190 = scmp.ne.s32.totalorder %s175, %s189
      %p191 = scmp.eq.s32.totalorder %s39, 0
      %p192 = por %p190, %p191
      %s194 = sadd.s32 %s193, 1
      %p197 = scmp.eq.s32.totalorder %s33, 1
      %p198 = scmp.ne.s32.totalorder %s193, %s195
      %p199 = scmp.eq.s32.totalorder %s33, 0
      %p200 = por %p198, %p199
      %p201 = scmp.ne.s32.totalorder %s193, %s195
      %p202 = scmp.eq.s32.totalorder %s38, 1
      %p203 = por %p201, %p202
      %p204 = scmp.ne.s32.totalorder %s195, %s196
      %p205 = scmp.eq.s32.totalorder %s38, 0
      %p206 = por %p204, %p205
      %p207 = scmp.ne.s32.totalorder %s195, %s196
      %p208 = scmp.eq.s32.totalorder %s39, 1
      %p209 = por %p207, %p208
      %p211 = scmp.ne.s32.totalorder %s196, %s210
      %p212 = scmp.eq.s32.totalorder %s39, 0
      %p213 = por %p211, %p212
      %s215 = sadd.s32 %s214, 1
      %p218 = scmp.eq.s32.totalorder %s33, 1
      %p219 = scmp.ne.s32.totalorder %s214, %s216
      %p220 = scmp.eq.s32.totalorder %s33, 0
      %p221 = por %p219, %p220
      %p222 = scmp.ne.s32.totalorder %s214, %s216
      %p223 = scmp.eq.s32.totalorder %s38, 1
      %p224 = por %p222, %p223
      %p225 = scmp.ne.s32.totalorder %s216, %s217
      %p226 = scmp.eq.s32.totalorder %s38, 0
      %p227 = por %p225, %p226
      %p228 = scmp.ne.s32.totalorder %s216, %s217
      %p229 = scmp.eq.s32.totalorder %s39, 1
      %p230 = por %p228, %p229
      %p232 = scmp.ne.s32.totalorder %s217, %s231
      %p233 = scmp.eq.s32.totalorder %s39, 0
      %p234 = por %p232, %p233
      %s236 = sadd.s32 %s235, 1
      %p239 = scmp.eq.s32.totalorder %s33, 1
      %p240 = scmp.ne.s32.totalorder %s235, %s237
      %p241 = scmp.eq.s32.totalorder %s33, 0
      %p242 = por %p240, %p241
      %p243 = scmp.ne.s32.totalorder %s235, %s237
      %p244 = scmp.eq.s32.totalorder %s38, 1
      %p245 = por %p243, %p244
      %p246 = scmp.ne.s32.totalorder %s237, %s238
      %p247 = scmp.eq.s32.totalorder %s38, 0
      %p248 = por %p246, %p247
      %p249 = scmp.ne.s32.totalorder %s237, %s238
      %p250 = scmp.eq.s32.totalorder %s39, 1
      %p251 = por %p249, %p250
      %p253 = scmp.ne.s32.totalorder %s238, %s252
      %p254 = scmp.eq.s32.totalorder %s39, 0
      %p255 = por %p253, %p254
      %s257 = sadd.s32 %s256, 1
      %p260 = scmp.eq.s32.totalorder %s33, 1
      %p261 = scmp.ne.s32.totalorder %s256, %s258
      %p262 = scmp.eq.s32.totalorder %s33, 0
      %p263 = por %p261, %p262
      %p264 = scmp.ne.s32.totalorder %s256, %s258
      %p265 = scmp.eq.s32.totalorder %s38, 1
      %p266 = por %p264, %p265
      %p267 = scmp.ne.s32.totalorder %s258, %s259
      %p268 = scmp.eq.s32.totalorder %s38, 0
      %p269 = por %p267, %p268
      %p270 = scmp.ne.s32.totalorder %s258, %s259
      %p271 = scmp.eq.s32.totalorder %s39, 1
      %p272 = por %p270, %p271
      %p274 = scmp.ne.s32.totalorder %s259, %s273
      %p275 = scmp.eq.s32.totalorder %s39, 0
      %p276 = por %p274, %p275
      %s278 = sadd.s32 %s277, 1
      %p281 = scmp.eq.s32.totalorder %s33, 1
      %p282 = scmp.ne.s32.totalorder %s277, %s279
      %p283 = scmp.eq.s32.totalorder %s33, 0
      %p284 = por %p282, %p283
      %p285 = scmp.ne.s32.totalorder %s277, %s279
      %p286 = scmp.eq.s32.totalorder %s38, 1
      %p287 = por %p285, %p286
      %p288 = scmp.ne.s32.totalorder %s279, %s280
      %p289 = scmp.eq.s32.totalorder %s38, 0
      %p290 = por %p288, %p289
      %p291 = scmp.ne.s32.totalorder %s279, %s280
      %p292 = scmp.eq.s32.totalorder %s39, 1
      %p293 = por %p291, %p292
      %p295 = scmp.ne.s32.totalorder %s280, %s294
      %p296 = scmp.eq.s32.totalorder %s39, 0
      %p297 = por %p295, %p296
      %s299 = sadd.s32 %s298, 1
      %p302 = scmp.eq.s32.totalorder %s33, 1
      %p303 = scmp.ne.s32.totalorder %s298, %s300
      %p304 = scmp.eq.s32.totalorder %s33, 0
      %p305 = por %p303, %p304
      %p306 = scmp.ne.s32.totalorder %s298, %s300
      %p307 = scmp.eq.s32.totalorder %s38, 1
      %p308 = por %p306, %p307
      %p309 = scmp.ne.s32.totalorder %s300, %s301
      %p310 = scmp.eq.s32.totalorder %s38, 0
      %p311 = por %p309, %p310
      %p312 = scmp.ne.s32.totalorder %s300, %s301
      %p313 = scmp.eq.s32.totalorder %s39, 1
      %p314 = por %p312, %p313
      %p316 = scmp.ne.s32.totalorder %s301, %s315
      %p317 = scmp.eq.s32.totalorder %s39, 0
      %p318 = por %p316, %p317
      %s320 = sadd.s32 %s319, 1
      %p323 = scmp.eq.s32.totalorder %s33, 1
      %p324 = scmp.ne.s32.totalorder %s319, %s321
      %p325 = scmp.eq.s32.totalorder %s33, 0
      %p326 = por %p324, %p325
      %p327 = scmp.ne.s32.totalorder %s319, %s321
      %p328 = scmp.eq.s32.totalorder %s38, 1
      %p329 = por %p327, %p328
      %p330 = scmp.ne.s32.totalorder %s321, %s322
      %p331 = scmp.eq.s32.totalorder %s38, 0
      %p332 = por %p330, %p331
      %p333 = scmp.ne.s32.totalorder %s321, %s322
      %p334 = scmp.eq.s32.totalorder %s39, 1
      %p335 = por %p333, %p334
      %p337 = scmp.ne.s32.totalorder %s322, %s336
      %p338 = scmp.eq.s32.totalorder %s39, 0
      %p339 = por %p337, %p338
      %s341 = sadd.s32 %s340, 1
      %p344 = scmp.eq.s32.totalorder %s33, 1
      %p345 = scmp.ne.s32.totalorder %s340, %s342
      %p346 = scmp.eq.s32.totalorder %s33, 0
      %p347 = por %p345, %p346
      %p348 = scmp.ne.s32.totalorder %s340, %s342
      %p349 = scmp.eq.s32.totalorder %s38, 1
      %p350 = por %p348, %p349
      %p351 = scmp.ne.s32.totalorder %s342, %s343
      %p352 = scmp.eq.s32.totalorder %s38, 0
      %p353 = por %p351, %p352
      %p354 = scmp.ne.s32.totalorder %s342, %s343
      %p355 = scmp.eq.s32.totalorder %s39, 1
      %p356 = por %p354, %p355
      %p358 = scmp.ne.s32.totalorder %s343, %s357
      %p359 = scmp.eq.s32.totalorder %s39, 0
      %p360 = por %p358, %p359
      %s362 = sadd.s32 %s361, 1
      %p365 = scmp.eq.s32.totalorder %s33, 1
      %p366 = scmp.ne.s32.totalorder %s361, %s363
      %p367 = scmp.eq.s32.totalorder %s33, 0
      %p368 = por %p366, %p367
      %p369 = scmp.ne.s32.totalorder %s361, %s363
      %p370 = scmp.eq.s32.totalorder %s38, 1
      %p371 = por %p369, %p370
      %p372 = scmp.ne.s32.totalorder %s363, %s364
      %p373 = scmp.eq.s32.totalorder %s38, 0
      %p374 = por %p372, %p373
      %p375 = scmp.ne.s32.totalorder %s363, %s364
      %p376 = scmp.eq.s32.totalorder %s39, 1
      %p377 = por %p375, %p376
      %p379 = scmp.ne.s32.totalorder %s364, %s378
      %p380 = scmp.eq.s32.totalorder %s39, 0
      %p381 = por %p379, %p380
      %s383 = sadd.s32 %s382, 1
      %p386 = scmp.eq.s32.totalorder %s33, 1
      %p387 = scmp.ne.s32.totalorder %s382, %s384
      %p388 = scmp.eq.s32.totalorder %s33, 0
      %p389 = por %p387, %p388
      %p390 = scmp.ne.s32.totalorder %s382, %s384
      %p391 = scmp.eq.s32.totalorder %s38, 1
      %p392 = por %p390, %p391
      %p393 = scmp.ne.s32.totalorder %s384, %s385
      %p394 = scmp.eq.s32.totalorder %s38, 0
      %p395 = por %p393, %p394
      %p396 = scmp.ne.s32.totalorder %s384, %s385
      %p397 = scmp.eq.s32.totalorder %s39, 1
      %p398 = por %p396, %p397
      %p400 = scmp.ne.s32.totalorder %s385, %s399
      %p401 = scmp.eq.s32.totalorder %s39, 0
      %p402 = por %p400, %p401
      %s404 = sadd.s32 %s403, 1
      %p407 = scmp.eq.s32.totalorder %s33, 1
      %p408 = scmp.ne.s32.totalorder %s403, %s405
      %p409 = scmp.eq.s32.totalorder %s33, 0
      %p410 = por %p408, %p409
      %p411 = scmp.ne.s32.totalorder %s403, %s405
      %p412 = scmp.eq.s32.totalorder %s38, 1
      %p413 = por %p411, %p412
      %p414 = scmp.ne.s32.totalorder %s405, %s406
      %p415 = scmp.eq.s32.totalorder %s38, 0
      %p416 = por %p414, %p415
      %p417 = scmp.ne.s32.totalorder %s405, %s406
      %p418 = scmp.eq.s32.totalorder %s39, 1
      %p419 = por %p417, %p418
      %p421 = scmp.ne.s32.totalorder %s406, %s420
      %p422 = scmp.eq.s32.totalorder %s39, 0
      %p423 = por %p421, %p422
      %s425 = sadd.s32 %s424, 1
      %p428 = scmp.eq.s32.totalorder %s33, 1
      %p429 = scmp.ne.s32.totalorder %s424, %s426
      %p430 = scmp.eq.s32.totalorder %s33, 0
      %p431 = por %p429, %p430
      %p432 = scmp.ne.s32.totalorder %s424, %s426
      %p433 = scmp.eq.s32.totalorder %s38, 1
      %p434 = por %p432, %p433
      %p435 = scmp.ne.s32.totalorder %s426, %s427
      %p436 = scmp.eq.s32.totalorder %s38, 0
      %p437 = por %p435, %p436
      %p438 = scmp.ne.s32.totalorder %s426, %s427
      %p439 = scmp.eq.s32.totalorder %s39, 1
      %p440 = por %p438, %p439
      %p442 = scmp.ne.s32.totalorder %s427, %s441
      %p443 = scmp.eq.s32.totalorder %s39, 0
      %p444 = por %p442, %p443
      %s446 = sadd.s32 %s445, 1
      %p449 = scmp.eq.s32.totalorder %s33, 1
      %p450 = scmp.ne.s32.totalorder %s445, %s447
      %p451 = scmp.eq.s32.totalorder %s33, 0
      %p452 = por %p450, %p451
      %p453 = scmp.ne.s32.totalorder %s445, %s447
      %p454 = scmp.eq.s32.totalorder %s38, 1
      %p455 = por %p453, %p454
      %p456 = scmp.ne.s32.totalorder %s447, %s448
      %p457 = scmp.eq.s32.totalorder %s38, 0
      %p458 = por %p456, %p457
      %p459 = scmp.ne.s32.totalorder %s447, %s448
      %p460 = scmp.eq.s32.totalorder %s39, 1
      %p461 = por %p459, %p460
      %p463 = scmp.ne.s32.totalorder %s448, %s462
      %p464 = scmp.eq.s32.totalorder %s39, 0
      %p465 = por %p463, %p464
      %s467 = sadd.s32 %s466, 1
      %p470 = scmp.eq.s32.totalorder %s33, 1
      %p471 = scmp.ne.s32.totalorder %s466, %s468
      %p472 = scmp.eq.s32.totalorder %s33, 0
      %p473 = por %p471, %p472
      %p474 = scmp.ne.s32.totalorder %s466, %s468
      %p475 = scmp.eq.s32.totalorder %s38, 1
      %p476 = por %p474, %p475
      %p477 = scmp.ne.s32.totalorder %s468, %s469
      %p478 = scmp.eq.s32.totalorder %s38, 0
      %p479 = por %p477, %p478
      %p480 = scmp.ne.s32.totalorder %s468, %s469
      %p481 = scmp.eq.s32.totalorder %s39, 1
      %p482 = por %p480, %p481
      %p484 = scmp.ne.s32.totalorder %s469, %s483
      %p485 = scmp.eq.s32.totalorder %s39, 0
      %p486 = por %p484, %p485
      %s488 = sadd.s32 %s487, 1
      %p491 = scmp.eq.s32.totalorder %s33, 1
      %p492 = scmp.ne.s32.totalorder %s487, %s489
      %p493 = scmp.eq.s32.totalorder %s33, 0
      %p494 = por %p492, %p493
      %p495 = scmp.ne.s32.totalorder %s487, %s489
      %p496 = scmp.eq.s32.totalorder %s38, 1
      %p497 = por %p495, %p496
      %p498 = scmp.ne.s32.totalorder %s489, %s490
      %p499 = scmp.eq.s32.totalorder %s38, 0
      %p500 = por %p498, %p499
      %p501 = scmp.ne.s32.totalorder %s489, %s490
      %p502 = scmp.eq.s32.totalorder %s39, 1
      %p503 = por %p501, %p502
      %p505 = scmp.ne.s32.totalorder %s490, %s504
      %p506 = scmp.eq.s32.totalorder %s39, 0
      %p507 = por %p505, %p506
      %s509 = sadd.s32 %s508, 1
      %p512 = scmp.eq.s32.totalorder %s33, 1
      %p513 = scmp.ne.s32.totalorder %s508, %s510
      %p514 = scmp.eq.s32.totalorder %s33, 0
      %p515 = por %p513, %p514
      %p516 = scmp.ne.s32.totalorder %s508, %s510
      %p517 = scmp.eq.s32.totalorder %s38, 1
      %p518 = por %p516, %p517
      %p519 = scmp.ne.s32.totalorder %s510, %s511
      %p520 = scmp.eq.s32.totalorder %s38, 0
      %p521 = por %p519, %p520
      %p522 = scmp.ne.s32.totalorder %s510, %s511
      %p523 = scmp.eq.s32.totalorder %s39, 1
      %p524 = por %p522, %p523
      %p526 = scmp.ne.s32.totalorder %s511, %s525
      %p527 = scmp.eq.s32.totalorder %s39, 0
      %p528 = por %p526, %p527
      %s530 = sadd.s32 %s529, 1
      %p533 = scmp.eq.s32.totalorder %s33, 1
      %p534 = scmp.ne.s32.totalorder %s529, %s531
      %p535 = scmp.eq.s32.totalorder %s33, 0
      %p536 = por %p534, %p535
      %p537 = scmp.ne.s32.totalorder %s529, %s531
      %p538 = scmp.eq.s32.totalorder %s38, 1
      %p539 = por %p537, %p538
      %p540 = scmp.ne.s32.totalorder %s531, %s532
      %p541 = scmp.eq.s32.totalorder %s38, 0
      %p542 = por %p540, %p541
      %p543 = scmp.ne.s32.totalorder %s531, %s532
      %p544 = scmp.eq.s32.totalorder %s39, 1
      %p545 = por %p543, %p544
      %p547 = scmp.ne.s32.totalorder %s532, %s546
      %p548 = scmp.eq.s32.totalorder %s39, 0
      %p549 = por %p547, %p548
      %s550 = ssub.s32 %s33, %s40
      %p551 = scmp.eq.s32.totalorder %s550, 0
      %s553 = sadd.s32 %s552, 1
      %s554 = scalar_select %p551, %s552, %s553
      %p557 = pneg %p551
      %p558 = scmp.eq.s32.totalorder %s33, 1
      %p559 = por %p557, %p558
      %p560 = scmp.ne.s32.totalorder %s552, %s555
      %p561 = scmp.eq.s32.totalorder %s33, 0
      %p562 = por %p560, %p561
      %p563 = scmp.ne.s32.totalorder %s552, %s555
      %p564 = scmp.eq.s32.totalorder %s38, 1
      %p565 = por %p563, %p564
      %p566 = scmp.ne.s32.totalorder %s555, %s556
      %p567 = scmp.eq.s32.totalorder %s38, 0
      %p568 = por %p566, %p567
      %p569 = scmp.ne.s32.totalorder %s555, %s556
      %p570 = scmp.eq.s32.totalorder %s39, 1
      %p571 = por %p569, %p570
      %p573 = scmp.ne.s32.totalorder %s556, %s572
      %p574 = scmp.eq.s32.totalorder %s39, 0
      %p575 = por %p573, %p574
      %p576 = scmp.le.s32.totalorder 1, %s33
      %p577 = scmp.lt.s32.totalorder %s33, 3
      %p578 = pnand %p576, %p577
      %p579 = pneg %p578
      // Predicated region
      $region9: #{hybrid_cnn_transformer_forward.1} parent=5 // pred_check
        _
      $region10: #{hybrid_cnn_transformer_forward.1} parent=5 // pred_check_branch
        %581 = sbr.rel (%p578) target = $region12
      $region11: #{hybrid_cnn_transformer_forward.1} parent=5 // pred_region
        %s582 = ssub.s32 %s33, 1
        // Predicated region
        $region13: #{hybrid_cnn_transformer_forward.1} parent=11 // pred_check
          %p583 = pneg %p80
        $region14: #{hybrid_cnn_transformer_forward.1} parent=11 // pred_check_branch
          %585 = sbr.rel (%p583) target = $region16
        $region15: #{hybrid_cnn_transformer_forward.1} parent=11 // pred_region
          _
        $region16: #{hybrid_cnn_transformer_forward.1} parent=11 // pred_fallthru
          _
        // Predicated region
        $region17: #{hybrid_cnn_transformer_forward.1} parent=11 // pred_check
          %p586 = pneg %p101
        $region18: #{hybrid_cnn_transformer_forward.1} parent=11 // pred_check_branch
          %588 = sbr.rel (%p586) target = $region20
        $region19: #{hybrid_cnn_transformer_forward.1} parent=11 // pred_region
          _
        $region20: #{hybrid_cnn_transformer_forward.1} parent=11 // pred_fallthru
          _
        // Predicated region
        $region21: #{hybrid_cnn_transformer_forward.1} parent=11 // pred_check
          %p589 = pneg %p122
        $region22: #{hybrid_cnn_transformer_forward.1} parent=11 // pred_check_branch
          %591 = sbr.rel (%p589) target = $region24
        $region23: #{hybrid_cnn_transformer_forward.1} parent=11 // pred_region
          _
        $region24: #{hybrid_cnn_transformer_forward.1} parent=11 // pred_fallthru
          _
        // Predicated region
        $region25: #{hybrid_cnn_transformer_forward.1} parent=11 // pred_check
          %p592 = pneg %p143
        $region26: #{hybrid_cnn_transformer_forward.1} parent=11 // pred_check_branch
          %594 = sbr.rel (%p592) target = $region28
        $region27: #{hybrid_cnn_transformer_forward.1} parent=11 // pred_region
          _
        $region28: #{hybrid_cnn_transformer_forward.1} parent=11 // pred_fallthru
          _
        // Predicated region
        $region29: #{hybrid_cnn_transformer_forward.1} parent=11 // pred_check
          %p595 = pneg %p164
        $region30: #{hybrid_cnn_transformer_forward.1} parent=11 // pred_check_branch
          %597 = sbr.rel (%p595) target = $region32
        $region31: #{hybrid_cnn_transformer_forward.1} parent=11 // pred_region
          _
        $region32: #{hybrid_cnn_transformer_forward.1} parent=11 // pred_fallthru
          _
        // Predicated region
        $region33: #{hybrid_cnn_transformer_forward.1} parent=11 // pred_check
          %p598 = pneg %p185
        $region34: #{hybrid_cnn_transformer_forward.1} parent=11 // pred_check_branch
          %600 = sbr.rel (%p598) target = $region36
        $region35: #{hybrid_cnn_transformer_forward.1} parent=11 // pred_region
          _
        $region36: #{hybrid_cnn_transformer_forward.1} parent=11 // pred_fallthru
          _
        // Predicated region
        $region37: #{hybrid_cnn_transformer_forward.1} parent=11 // pred_check
          %p601 = pneg %p206
        $region38: #{hybrid_cnn_transformer_forward.1} parent=11 // pred_check_branch
          %603 = sbr.rel (%p601) target = $region40
        $region39: #{hybrid_cnn_transformer_forward.1} parent=11 // pred_region
          _
        $region40: #{hybrid_cnn_transformer_forward.1} parent=11 // pred_fallthru
          _
        // Predicated region
        $region41: #{hybrid_cnn_transformer_forward.1} parent=11 // pred_check
          %p604 = pneg %p227
        $region42: #{hybrid_cnn_transformer_forward.1} parent=11 // pred_check_branch
          %606 = sbr.rel (%p604) target = $region44
        $region43: #{hybrid_cnn_transformer_forward.1} parent=11 // pred_region
          _
        $region44: #{hybrid_cnn_transformer_forward.1} parent=11 // pred_fallthru
          _
        // Predicated region
        $region45: #{hybrid_cnn_transformer_forward.1} parent=11 // pred_check
          %p607 = pneg %p248
        $region46: #{hybrid_cnn_transformer_forward.1} parent=11 // pred_check_branch
          %609 = sbr.rel (%p607) target = $region48
        $region47: #{hybrid_cnn_transformer_forward.1} parent=11 // pred_region
          _
        $region48: #{hybrid_cnn_transformer_forward.1} parent=11 // pred_fallthru
          _
        // Predicated region
        $region49: #{hybrid_cnn_transformer_forward.1} parent=11 // pred_check
          %p610 = pneg %p269
        $region50: #{hybrid_cnn_transformer_forward.1} parent=11 // pred_check_branch
          %612 = sbr.rel (%p610) target = $region52
        $region51: #{hybrid_cnn_transformer_forward.1} parent=11 // pred_region
          _
        $region52: #{hybrid_cnn_transformer_forward.1} parent=11 // pred_fallthru
          _
        // Predicated region
        $region53: #{hybrid_cnn_transformer_forward.1} parent=11 // pred_check
          %p613 = pneg %p290
        $region54: #{hybrid_cnn_transformer_forward.1} parent=11 // pred_check_branch
          %615 = sbr.rel (%p613) target = $region56
        $region55: #{hybrid_cnn_transformer_forward.1} parent=11 // pred_region
          _
        $region56: #{hybrid_cnn_transformer_forward.1} parent=11 // pred_fallthru
          _
        // Predicated region
        $region57: #{hybrid_cnn_transformer_forward.1} parent=11 // pred_check
          %p616 = pneg %p311
        $region58: #{hybrid_cnn_transformer_forward.1} parent=11 // pred_check_branch
          %618 = sbr.rel (%p616) target = $region60
        $region59: #{hybrid_cnn_transformer_forward.1} parent=11 // pred_region
          _
        $region60: #{hybrid_cnn_transformer_forward.1} parent=11 // pred_fallthru
          _
        // Predicated region
        $region61: #{hybrid_cnn_transformer_forward.1} parent=11 // pred_check
          %p619 = pneg %p332
        $region62: #{hybrid_cnn_transformer_forward.1} parent=11 // pred_check_branch
          %621 = sbr.rel (%p619) target = $region64
        $region63: #{hybrid_cnn_transformer_forward.1} parent=11 // pred_region
          _
        $region64: #{hybrid_cnn_transformer_forward.1} parent=11 // pred_fallthru
          _
        // Predicated region
        $region65: #{hybrid_cnn_transformer_forward.1} parent=11 // pred_check
          %p622 = pneg %p353
        $region66: #{hybrid_cnn_transformer_forward.1} parent=11 // pred_check_branch
          %624 = sbr.rel (%p622) target = $region68
        $region67: #{hybrid_cnn_transformer_forward.1} parent=11 // pred_region
          _
        $region68: #{hybrid_cnn_transformer_forward.1} parent=11 // pred_fallthru
          _
        // Predicated region
        $region69: #{hybrid_cnn_transformer_forward.1} parent=11 // pred_check
          %p625 = pneg %p374
        $region70: #{hybrid_cnn_transformer_forward.1} parent=11 // pred_check_branch
          %627 = sbr.rel (%p625) target = $region72
        $region71: #{hybrid_cnn_transformer_forward.1} parent=11 // pred_region
          _
        $region72: #{hybrid_cnn_transformer_forward.1} parent=11 // pred_fallthru
          _
        // Predicated region
        $region73: #{hybrid_cnn_transformer_forward.1} parent=11 // pred_check
          %p628 = pneg %p395
        $region74: #{hybrid_cnn_transformer_forward.1} parent=11 // pred_check_branch
          %630 = sbr.rel (%p628) target = $region76
        $region75: #{hybrid_cnn_transformer_forward.1} parent=11 // pred_region
          _
        $region76: #{hybrid_cnn_transformer_forward.1} parent=11 // pred_fallthru
          _
        // Predicated region
        $region77: #{hybrid_cnn_transformer_forward.1} parent=11 // pred_check
          %p631 = pneg %p416
        $region78: #{hybrid_cnn_transformer_forward.1} parent=11 // pred_check_branch
          %633 = sbr.rel (%p631) target = $region80
        $region79: #{hybrid_cnn_transformer_forward.1} parent=11 // pred_region
          _
        $region80: #{hybrid_cnn_transformer_forward.1} parent=11 // pred_fallthru
          _
        // Predicated region
        $region81: #{hybrid_cnn_transformer_forward.1} parent=11 // pred_check
          %p634 = pneg %p437
        $region82: #{hybrid_cnn_transformer_forward.1} parent=11 // pred_check_branch
          %636 = sbr.rel (%p634) target = $region84
        $region83: #{hybrid_cnn_transformer_forward.1} parent=11 // pred_region
          _
        $region84: #{hybrid_cnn_transformer_forward.1} parent=11 // pred_fallthru
          _
        // Predicated region
        $region85: #{hybrid_cnn_transformer_forward.1} parent=11 // pred_check
          %p637 = pneg %p458
        $region86: #{hybrid_cnn_transformer_forward.1} parent=11 // pred_check_branch
          %639 = sbr.rel (%p637) target = $region88
        $region87: #{hybrid_cnn_transformer_forward.1} parent=11 // pred_region
          _
        $region88: #{hybrid_cnn_transformer_forward.1} parent=11 // pred_fallthru
          _
        // Predicated region
        $region89: #{hybrid_cnn_transformer_forward.1} parent=11 // pred_check
          %p640 = pneg %p479
        $region90: #{hybrid_cnn_transformer_forward.1} parent=11 // pred_check_branch
          %642 = sbr.rel (%p640) target = $region92
        $region91: #{hybrid_cnn_transformer_forward.1} parent=11 // pred_region
          _
        $region92: #{hybrid_cnn_transformer_forward.1} parent=11 // pred_fallthru
          _
        // Predicated region
        $region93: #{hybrid_cnn_transformer_forward.1} parent=11 // pred_check
          %p643 = pneg %p500
        $region94: #{hybrid_cnn_transformer_forward.1} parent=11 // pred_check_branch
          %645 = sbr.rel (%p643) target = $region96
        $region95: #{hybrid_cnn_transformer_forward.1} parent=11 // pred_region
          _
        $region96: #{hybrid_cnn_transformer_forward.1} parent=11 // pred_fallthru
          _
        // Predicated region
        $region97: #{hybrid_cnn_transformer_forward.1} parent=11 // pred_check
          %p646 = pneg %p521
        $region98: #{hybrid_cnn_transformer_forward.1} parent=11 // pred_check_branch
          %648 = sbr.rel (%p646) target = $region100
        $region99: #{hybrid_cnn_transformer_forward.1} parent=11 // pred_region
          _
        $region100: #{hybrid_cnn_transformer_forward.1} parent=11 // pred_fallthru
          _
        // Predicated region
        $region101: #{hybrid_cnn_transformer_forward.1} parent=11 // pred_check
          %p649 = pneg %p542
        $region102: #{hybrid_cnn_transformer_forward.1} parent=11 // pred_check_branch
          %651 = sbr.rel (%p649) target = $region104
        $region103: #{hybrid_cnn_transformer_forward.1} parent=11 // pred_region
          _
        $region104: #{hybrid_cnn_transformer_forward.1} parent=11 // pred_fallthru
          _
      $region12: #{hybrid_cnn_transformer_forward.1} parent=5 // pred_fallthru
        _
      %p652 = scmp.lt.s32.totalorder %s33, 2
      // Predicated region
      $region105: #{hybrid_cnn_transformer_forward.1} parent=5 // pred_check
        %p653 = pneg %p652
      $region106: #{hybrid_cnn_transformer_forward.1} parent=5 // pred_check_branch
        %655 = sbr.rel (%p653) target = $region108
      $region107: #{hybrid_cnn_transformer_forward.1} parent=5 // pred_region
        // Predicated region
        $region109: #{hybrid_cnn_transformer_forward.1} parent=107 // pred_check
          %p656 = pneg %p53
        $region110: #{hybrid_cnn_transformer_forward.1} parent=107 // pred_check_branch
          %658 = sbr.rel (%p656) target = $region112
        $region111: #{hybrid_cnn_transformer_forward.1} parent=107 // pred_region
          %p659 = scmp.lt.s32.totalorder %s33, 1
          %s660 = scalar_select %p659, %s33, 1
          %s661 = smul.addr %s660, 8
          %s662 = scalar_lea.vmem %s0, %s661
        $region112: #{hybrid_cnn_transformer_forward.1} parent=107 // pred_fallthru
          _
      $region108: #{hybrid_cnn_transformer_forward.1} parent=5 // pred_fallthru
        _
      %p663 = scmp.le.s32.totalorder 1, %s33
      %p664 = scmp.lt.s32.totalorder %s33, 3
      %p665 = pnand %p663, %p664
      %p666 = pneg %p665
      // Predicated region
      $region113: #{hybrid_cnn_transformer_forward.1} parent=5 // pred_check
        _
      $region114: #{hybrid_cnn_transformer_forward.1} parent=5 // pred_check_branch
        %668 = sbr.rel (%p665) target = $region116
      $region115: #{hybrid_cnn_transformer_forward.1} parent=5 // pred_region
        %s669 = ssub.s32 %s33, 1
        %p670 = scmp.lt.s32.totalorder %s38, 1
        %s671 = scalar_select %p670, %s38, 1
        %s672 = smul.addr %s671, 8
        %s673 = scalar_lea.vmem %s0, %s672
        %p674 = pneg %p59
        %p675 = pneg %p56
        %p676 = pneg %p80
        %p677 = pneg %p77
        %p678 = pneg %p101
        %p679 = pneg %p98
        %p680 = pneg %p122
        %p681 = pneg %p119
        %p682 = pneg %p143
        %p683 = pneg %p140
        %p684 = pneg %p164
        %p685 = pneg %p161
        %p686 = pneg %p185
        %p687 = pneg %p182
        %p688 = pneg %p206
        %p689 = pneg %p203
        %p690 = pneg %p227
        %p691 = pneg %p224
        %p692 = pneg %p248
        %p693 = pneg %p245
        %p694 = pneg %p269
        %p695 = pneg %p266
        %p696 = pneg %p290
        %p697 = pneg %p287
        %p698 = pneg %p311
        %p699 = pneg %p308
        %p700 = pneg %p332
        %p701 = pneg %p329
        %p702 = pneg %p353
        %p703 = pneg %p350
        %p704 = pneg %p374
        %p705 = pneg %p371
        %p706 = pneg %p395
        %p707 = pneg %p392
        %p708 = pneg %p416
        %p709 = pneg %p413
        %p710 = pneg %p437
        %p711 = pneg %p434
        %p712 = pneg %p458
        %p713 = pneg %p455
        %p714 = pneg %p479
        %p715 = pneg %p476
        %p716 = pneg %p500
        %p717 = pneg %p497
        %p718 = pneg %p521
        %p719 = pneg %p518
        %p720 = pneg %p542
        %p721 = pneg %p539
        %p722 = pneg %p568
        %p723 = pneg %p565
        %s724 = sand.u32 %s555, 1
        %s725 = scalar_lea.sflag [#allocation3], %s724
        %s726 = sand.u32 %s555, 1
        %s727 = scalar_lea.vmem [#allocation2], %s726
        %p728 = scmp.lt.s32.totalorder %s38, 1
        %s729 = scalar_select %p728, %s38, 1
        %s730 = smul.addr %s729, 8
        %s731 = scalar_lea.vmem %s0, %s730
        %v732 = vld [vmem:[%s731] sm:$0xff]
        %v733 = vld [vmem:[%s1] sm:$0xf]
        %vm734 = vcmask 31744
        %v736 = vsel %vm734, %v732, 0
        %vm738 = vcmask 1043456
        %v740 = vsel %vm738, %v733, 0
        %742 = vmatprep.subr.mxu0 0.0
        %743 = vmatpush1.msra.mxu0 0.0
        %744 = vmatprep.subr.mxu0 0.0
        %745 = vmatpush1.msra.mxu0 0.0
        %746 = vmatprep.subr.mxu0 0.0
        %747 = vmatpush1.msra.mxu0 0.0
        %748 = vmatprep.subr.mxu0 0.0
        %749 = vmatpush1.msra.mxu0 0.0
        %750 = vmatprep.subr.mxu0 0.0
        %751 = vmatpush1.msra.mxu0 0.0
        %752 = vmatprep.subr.mxu0 0.0
        %753 = vmatpush1.msra.mxu0 0.0
        %754 = vmatprep.subr.mxu0 0.0
        %755 = vmatpush1.msra.mxu0 0.0
        %756 = vmatprep.subr.mxu0 0.0
        %757 = vmatpush1.msra.mxu0 0.0
        %758 = vmatprep.subr.mxu0 0.0
        %759 = vmatpush1.msra.mxu0 0.0
        %760 = vmatprep.subr.mxu0 0.0
        %761 = vmatpush1.msra.mxu0 0.0
        %762 = vmatprep.subr.mxu0 0.0
        %763 = vmatpush1.msra.mxu0 0.0
        %764 = vmatprep.subr.mxu0 0.0
        %765 = vmatpush1.msra.mxu0 0.0
        %766 = vmatprep.subr.mxu0 0.0
        %767 = vmatpush1.msra.mxu0 0.0
        %768 = vmatprep.subr.mxu0 0.0
        %769 = vmatpush1.msra.mxu0 0.0
        %770 = vmatprep.subr.mxu0 0.0
        %771 = vmatpush1.msra.mxu0 0.0
        %772 = vmatprep.subr.mxu0 0.0
        %773 = vmatpush1.msra.mxu0 %v740
        %774 = vmatprep.subr.mxu0 0.0
        %775 = vmatpush2.msra.mxu0 0.0
        %776 = vmatprep.subr.mxu0 0.0
        %777 = vmatpush2.msra.mxu0 0.0
        %778 = vmatprep.subr.mxu0 0.0
        %779 = vmatpush2.msra.mxu0 0.0
        %780 = vmatprep.subr.mxu0 0.0
        %781 = vmatpush2.msra.mxu0 0.0
        %782 = vmatprep.subr.mxu0 0.0
        %783 = vmatpush2.msra.mxu0 0.0
        %784 = vmatprep.subr.mxu0 0.0
        %785 = vmatpush2.msra.mxu0 0.0
        %786 = vmatprep.subr.mxu0 0.0
        %787 = vmatpush2.msra.mxu0 0.0
        %788 = vmatprep.subr.mxu0 0.0
        %789 = vmatpush2.msra.mxu0 0.0
        %790 = vmatprep.subr.mxu0 0.0
        %791 = vmatpush2.msra.mxu0 0.0
        %792 = vmatprep.subr.mxu0 0.0
        %793 = vmatpush2.msra.mxu0 0.0
        %794 = vmatprep.subr.mxu0 0.0
        %795 = vmatpush2.msra.mxu0 0.0
        %796 = vmatprep.subr.mxu0 0.0
        %797 = vmatpush2.msra.mxu0 0.0
        %798 = vmatprep.subr.mxu0 0.0
        %799 = vmatpush2.msra.mxu0 0.0
        %800 = vmatprep.subr.mxu0 0.0
        %801 = vmatpush2.msra.mxu0 0.0
        %802 = vmatprep.subr.mxu0 0.0
        %803 = vmatpush2.msra.mxu0 0.0
        %804 = vmatprep.subr.mxu0 0.0
        %805 = vmatpush2.msra.mxu0 0.0
        %806 = vmatprep.mubr.f32.mxu0 0.0
        %807 = vmatmul.mubr.f32.gmra.mxu0 %v736
        %v808 = vpop.f32.mrf.mxu0
        %v809 = vadd.f32 0.0, %v808
        %v810 = vpop.f32.mrf.mxu0
        %811 = vdwg.mxu0
        %v813 = vrot.slane %v809, 7
        %vm815 = vcmask 1040384
        %v816 = vsel %vm815, 0.0, %v813
        %v817 = vrot.slane %v809, 1
        %vm819 = vcmask 1046528
        %v820 = vsel %vm819, %v817, 0.0
        %821 = vrot.lane.b32.xlu0 %v809, 112
        %v822 = vpop.permute.xlu0 %821
        %v824 = vadd.f32 %v816, %v822
        %826 = vrot.lane.b32.xlu0 %v820, 96
        %v827 = vpop.permute.xlu0 %826
        %v829 = vadd.f32 %v824, %v827
        %v830 = vld [vmem:[%s2] sm:$0x1]
        %v832 = vlaneseq
        %v833 = vshrl.u32 %v832, 7
        %v834 = vsub.s32 0, %v833
        %v835 = vrot.slane %v830, %v834
        %v837 = vadd.f32 %v829, %v835
        %v838 = vmax.f32 %v837, 0.0
        %v839 = vld [vmem:[%s3] sm:$0xff]
        %v840 = vld [vmem:[%s3 + $0x8] sm:$0xff]
        %vm841 = vcmask 130048
        %v843 = vsel %vm841, %v838, 0
        %845 = vmatprep.subr.mxu0 0.0
        %846 = vmatpush1.msra.mxu0 0.0
        %847 = vmatprep.subr.mxu0 0.0
        %848 = vmatpush1.msra.mxu0 0.0
        %849 = vmatprep.subr.mxu0 0.0
        %850 = vmatpush1.msra.mxu0 0.0
        %851 = vmatprep.subr.mxu0 0.0
        %852 = vmatpush1.msra.mxu0 0.0
        %853 = vmatprep.subr.mxu0 0.0
        %854 = vmatpush1.msra.mxu0 0.0
        %855 = vmatprep.subr.mxu0 0.0
        %856 = vmatpush1.msra.mxu0 0.0
        %857 = vmatprep.subr.mxu0 0.0
        %858 = vmatpush1.msra.mxu0 0.0
        %859 = vmatprep.subr.mxu0 0.0
        %860 = vmatpush1.msra.mxu0 0.0
        %861 = vmatprep.subr.mxu0 0.0
        %862 = vmatpush1.msra.mxu0 0.0
        %863 = vmatprep.subr.mxu0 0.0
        %864 = vmatpush1.msra.mxu0 0.0
        %865 = vmatprep.subr.mxu0 0.0
        %866 = vmatpush1.msra.mxu0 0.0
        %867 = vmatprep.subr.mxu0 0.0
        %868 = vmatpush1.msra.mxu0 0.0
        %869 = vmatprep.subr.mxu0 0.0
        %870 = vmatpush1.msra.mxu0 0.0
        %871 = vmatprep.subr.mxu0 0.0
        %872 = vmatpush1.msra.mxu0 0.0
        %873 = vmatprep.subr.mxu0 0.0
        %874 = vmatpush1.msra.mxu0 %v840
        %875 = vmatprep.subr.mxu0 0.0
        %876 = vmatpush1.msra.mxu0 %v839
        %877 = vmatprep.subr.mxu0 0.0
        %878 = vmatpush2.msra.mxu0 0.0
        %879 = vmatprep.subr.mxu0 0.0
        %880 = vmatpush2.msra.mxu0 0.0
        %881 = vmatprep.subr.mxu0 0.0
        %882 = vmatpush2.msra.mxu0 0.0
        %883 = vmatprep.subr.mxu0 0.0
        %884 = vmatpush2.msra.mxu0 0.0
        %885 = vmatprep.subr.mxu0 0.0
        %886 = vmatpush2.msra.mxu0 0.0
        %887 = vmatprep.subr.mxu0 0.0
        %888 = vmatpush2.msra.mxu0 0.0
        %889 = vmatprep.subr.mxu0 0.0
        %890 = vmatpush2.msra.mxu0 0.0
        %891 = vmatprep.subr.mxu0 0.0
        %892 = vmatpush2.msra.mxu0 0.0
        %893 = vmatprep.subr.mxu0 0.0
        %894 = vmatpush2.msra.mxu0 0.0
        %895 = vmatprep.subr.mxu0 0.0
        %896 = vmatpush2.msra.mxu0 0.0
        %897 = vmatprep.subr.mxu0 0.0
        %898 = vmatpush2.msra.mxu0 0.0
        %899 = vmatprep.subr.mxu0 0.0
        %900 = vmatpush2.msra.mxu0 0.0
        %901 = vmatprep.subr.mxu0 0.0
        %902 = vmatpush2.msra.mxu0 0.0
        %903 = vmatprep.subr.mxu0 0.0
        %904 = vmatpush2.msra.mxu0 0.0
        %905 = vmatprep.subr.mxu0 0.0
        %906 = vmatpush2.msra.mxu0 0.0
        %907 = vmatprep.subr.mxu0 0.0
        %908 = vmatpush2.msra.mxu0 0.0
        %909 = vmatprep.mubr.f32.mxu0 0.0
        %910 = vmatmul.mubr.f32.gmra.mxu0 %v843
        %v911 = vpop.f32.mrf.mxu0
        %v912 = vadd.f32 0.0, %v911
        %v913 = vpop.f32.mrf.mxu0
        %914 = vdwg.mxu0
        %v916 = vrot.slane %v912, 7
        %v918 = vsel %vm815, 0.0, %v916
        %v919 = vrot.slane %v912, 1
        %v921 = vsel %vm819, %v919, 0.0
        %922 = vrot.lane.b32.xlu0 %v912, 112
        %v923 = vpop.permute.xlu0 %922
        %v925 = vadd.f32 %v918, %v923
        %927 = vrot.lane.b32.xlu0 %v921, 96
        %v928 = vpop.permute.xlu0 %927
        %v930 = vadd.f32 %v925, %v928
        %v931 = vld [vmem:[%s4] sm:$0x1]
        %v933 = vlaneseq
        %v934 = vshrl.u32 %v933, 7
        %v935 = vsub.s32 0, %v934
        %v936 = vrot.slane %v931, %v935
        %v938 = vadd.f32 %v930, %v936
        %v939 = vmax.f32 %v938, 0.0
        %v940 = vld [vmem:[%s5] sm:$0xff]
        %v941 = vld [vmem:[%s5 + $0x8] sm:$0xff]
        %v942 = vld [vmem:[%s6] sm:$0x1]
        %v944 = vlaneseq
        %v945 = vshrl.u32 %v944, 7
        %v946 = vsub.s32 0, %v945
        %v947 = vrot.slane %v942, %v946
        %v950 = vsel %vm841, %v939, 0
        %952 = vmatprep.subr.mxu0 0.0
        %953 = vmatpush1.msra.mxu0 0.0
        %954 = vmatprep.subr.mxu0 0.0
        %955 = vmatpush1.msra.mxu0 0.0
        %956 = vmatprep.subr.mxu0 0.0
        %957 = vmatpush1.msra.mxu0 0.0
        %958 = vmatprep.subr.mxu0 0.0
        %959 = vmatpush1.msra.mxu0 0.0
        %960 = vmatprep.subr.mxu0 0.0
        %961 = vmatpush1.msra.mxu0 0.0
        %962 = vmatprep.subr.mxu0 0.0
        %963 = vmatpush1.msra.mxu0 0.0
        %964 = vmatprep.subr.mxu0 0.0
        %965 = vmatpush1.msra.mxu0 0.0
        %966 = vmatprep.subr.mxu0 0.0
        %967 = vmatpush1.msra.mxu0 0.0
        %968 = vmatprep.subr.mxu0 0.0
        %969 = vmatpush1.msra.mxu0 0.0
        %970 = vmatprep.subr.mxu0 0.0
        %971 = vmatpush1.msra.mxu0 0.0
        %972 = vmatprep.subr.mxu0 0.0
        %973 = vmatpush1.msra.mxu0 0.0
        %974 = vmatprep.subr.mxu0 0.0
        %975 = vmatpush1.msra.mxu0 0.0
        %976 = vmatprep.subr.mxu0 0.0
        %977 = vmatpush1.msra.mxu0 0.0
        %978 = vmatprep.subr.mxu0 0.0
        %979 = vmatpush1.msra.mxu0 0.0
        %980 = vmatprep.subr.mxu0 0.0
        %981 = vmatpush1.msra.mxu0 %v941
        %982 = vmatprep.subr.mxu0 0.0
        %983 = vmatpush1.msra.mxu0 %v940
        %984 = vmatprep.subr.mxu0 0.0
        %985 = vmatpush2.msra.mxu0 0.0
        %986 = vmatprep.subr.mxu0 0.0
        %987 = vmatpush2.msra.mxu0 0.0
        %988 = vmatprep.subr.mxu0 0.0
        %989 = vmatpush2.msra.mxu0 0.0
        %990 = vmatprep.subr.mxu0 0.0
        %991 = vmatpush2.msra.mxu0 0.0
        %992 = vmatprep.subr.mxu0 0.0
        %993 = vmatpush2.msra.mxu0 0.0
        %994 = vmatprep.subr.mxu0 0.0
        %995 = vmatpush2.msra.mxu0 0.0
        %996 = vmatprep.subr.mxu0 0.0
        %997 = vmatpush2.msra.mxu0 0.0
        %998 = vmatprep.subr.mxu0 0.0
        %999 = vmatpush2.msra.mxu0 0.0
        %1000 = vmatprep.subr.mxu0 0.0
        %1001 = vmatpush2.msra.mxu0 0.0
        %1002 = vmatprep.subr.mxu0 0.0
        %1003 = vmatpush2.msra.mxu0 0.0
        %1004 = vmatprep.subr.mxu0 0.0
        %1005 = vmatpush2.msra.mxu0 0.0
        %1006 = vmatprep.subr.mxu0 0.0
        %1007 = vmatpush2.msra.mxu0 0.0
        %1008 = vmatprep.subr.mxu0 0.0
        %1009 = vmatpush2.msra.mxu0 0.0
        %1010 = vmatprep.subr.mxu0 0.0
        %1011 = vmatpush2.msra.mxu0 0.0
        %1012 = vmatprep.subr.mxu0 0.0
        %1013 = vmatpush2.msra.mxu0 0.0
        %1014 = vmatprep.subr.mxu0 0.0
        %1015 = vmatpush2.msra.mxu0 0.0
        %1016 = vmatprep.mubr.f32.mxu0 0.0
        %1017 = vmatmul.mubr.f32.gmra.mxu0 %v950
        %v1018 = vpop.f32.mrf.mxu0
        %v1019 = vadd.f32 %v947, %v1018
        %v1020 = vpop.f32.mrf.mxu0
        %1021 = vdwg.mxu0
        %v1022 = vld [vmem:[%s7] sm:$0xff]
        %v1023 = vadd.f32 %v1019, %v1022
        %v1024 = vld [vmem:[%s8] sm:$0xff]
        %v1025 = vld [vmem:[%s8 + $0x8] sm:$0xff]
        %v1026 = vld [vmem:[%s8 + $0x10] sm:$0xff]
        %v1027 = vld [vmem:[%s8 + $0x18] sm:$0xff]
        %v1028 = vld [vmem:[%s9] sm:$0x1]
        %v1030 = vlaneseq
        %v1031 = vshrl.u32 %v1030, 7
        %v1032 = vsub.s32 0, %v1031
        %v1033 = vrot.slane %v1028, %v1032
        %vm1035 = vcmask 261120
        %v1037 = vsel %vm1035, %v1023, 0
        %1039 = vmatprep.subr.mxu0 0.0
        %1040 = vmatpush1.msra.mxu0 0.0
        %1041 = vmatprep.subr.mxu0 0.0
        %1042 = vmatpush1.msra.mxu0 0.0
        %1043 = vmatprep.subr.mxu0 0.0
        %1044 = vmatpush1.msra.mxu0 0.0
        %1045 = vmatprep.subr.mxu0 0.0
        %1046 = vmatpush1.msra.mxu0 0.0
        %1047 = vmatprep.subr.mxu0 0.0
        %1048 = vmatpush1.msra.mxu0 0.0
        %1049 = vmatprep.subr.mxu0 0.0
        %1050 = vmatpush1.msra.mxu0 0.0
        %1051 = vmatprep.subr.mxu0 0.0
        %1052 = vmatpush1.msra.mxu0 0.0
        %1053 = vmatprep.subr.mxu0 0.0
        %1054 = vmatpush1.msra.mxu0 0.0
        %1055 = vmatprep.subr.mxu0 0.0
        %1056 = vmatpush1.msra.mxu0 0.0
        %1057 = vmatprep.subr.mxu0 0.0
        %1058 = vmatpush1.msra.mxu0 0.0
        %1059 = vmatprep.subr.mxu0 0.0
        %1060 = vmatpush1.msra.mxu0 0.0
        %1061 = vmatprep.subr.mxu0 0.0
        %1062 = vmatpush1.msra.mxu0 0.0
        %1063 = vmatprep.subr.mxu0 0.0
        %1064 = vmatpush1.msra.mxu0 %v1027
        %1065 = vmatprep.subr.mxu0 0.0
        %1066 = vmatpush1.msra.mxu0 %v1026
        %1067 = vmatprep.subr.mxu0 0.0
        %1068 = vmatpush1.msra.mxu0 %v1025
        %1069 = vmatprep.subr.mxu0 0.0
        %1070 = vmatpush1.msra.mxu0 %v1024
        %1071 = vmatprep.subr.mxu0 0.0
        %1072 = vmatpush2.msra.mxu0 0.0
        %1073 = vmatprep.subr.mxu0 0.0
        %1074 = vmatpush2.msra.mxu0 0.0
        %1075 = vmatprep.subr.mxu0 0.0
        %1076 = vmatpush2.msra.mxu0 0.0
        %1077 = vmatprep.subr.mxu0 0.0
        %1078 = vmatpush2.msra.mxu0 0.0
        %1079 = vmatprep.subr.mxu0 0.0
        %1080 = vmatpush2.msra.mxu0 0.0
        %1081 = vmatprep.subr.mxu0 0.0
        %1082 = vmatpush2.msra.mxu0 0.0
        %1083 = vmatprep.subr.mxu0 0.0
        %1084 = vmatpush2.msra.mxu0 0.0
        %1085 = vmatprep.subr.mxu0 0.0
        %1086 = vmatpush2.msra.mxu0 0.0
        %1087 = vmatprep.subr.mxu0 0.0
        %1088 = vmatpush2.msra.mxu0 0.0
        %1089 = vmatprep.subr.mxu0 0.0
        %1090 = vmatpush2.msra.mxu0 0.0
        %1091 = vmatprep.subr.mxu0 0.0
        %1092 = vmatpush2.msra.mxu0 0.0
        %1093 = vmatprep.subr.mxu0 0.0
        %1094 = vmatpush2.msra.mxu0 0.0
        %1095 = vmatprep.subr.mxu0 0.0
        %1096 = vmatpush2.msra.mxu0 0.0
        %1097 = vmatprep.subr.mxu0 0.0
        %1098 = vmatpush2.msra.mxu0 0.0
        %1099 = vmatprep.subr.mxu0 0.0
        %1100 = vmatpush2.msra.mxu0 0.0
        %1101 = vmatprep.subr.mxu0 0.0
        %1102 = vmatpush2.msra.mxu0 0.0
        %1103 = vmatprep.mubr.f32.mxu0 0.0
        %1104 = vmatmul.mubr.f32.gmra.mxu0 %v1037
        %v1105 = vpop.f32.mrf.mxu0
        %v1106 = vadd.f32 %v1033, %v1105
        %v1107 = vpop.f32.mrf.mxu0
        %1108 = vdwg.mxu0
        %1110 = vrot.lane.b32.xlu0 %v1106, 120
        %v1111 = vpop.permute.xlu0 %1110
        %1112 = vrot.lane.b32.xlu0 %v1106, 112
        %v1113 = vpop.permute.xlu0 %1112
        %1114 = vrot.lane.b32.xlu0 %v1106, 104
        %v1115 = vpop.permute.xlu0 %1114
        %1116 = vrot.lane.b32.xlu0 %v1106, 96
        %v1117 = vpop.permute.xlu0 %1116
        %vm1118 = vcmask 64512
        %v1119 = vsel %vm1118, %v1106, 0
        %v1121 = vsel %vm1118, %v1117, 0
        %1123 = vmatprep.subr.mxu0 0.0
        %1124 = vmatpush1.xpose.msra.mxu0 0.0
        %1125 = vmatprep.subr.mxu0 0.0
        %1126 = vmatpush1.xpose.msra.mxu0 0.0
        %1127 = vmatprep.subr.mxu0 0.0
        %1128 = vmatpush1.xpose.msra.mxu0 0.0
        %1129 = vmatprep.subr.mxu0 0.0
        %1130 = vmatpush1.xpose.msra.mxu0 0.0
        %1131 = vmatprep.subr.mxu0 0.0
        %1132 = vmatpush1.xpose.msra.mxu0 0.0
        %1133 = vmatprep.subr.mxu0 0.0
        %1134 = vmatpush1.xpose.msra.mxu0 0.0
        %1135 = vmatprep.subr.mxu0 0.0
        %1136 = vmatpush1.xpose.msra.mxu0 0.0
        %1137 = vmatprep.subr.mxu0 0.0
        %1138 = vmatpush1.xpose.msra.mxu0 0.0
        %1139 = vmatprep.subr.mxu0 0.0
        %1140 = vmatpush1.xpose.msra.mxu0 0.0
        %1141 = vmatprep.subr.mxu0 0.0
        %1142 = vmatpush1.xpose.msra.mxu0 0.0
        %1143 = vmatprep.subr.mxu0 0.0
        %1144 = vmatpush1.xpose.msra.mxu0 0.0
        %1145 = vmatprep.subr.mxu0 0.0
        %1146 = vmatpush1.xpose.msra.mxu0 0.0
        %1147 = vmatprep.subr.mxu0 0.0
        %1148 = vmatpush1.xpose.msra.mxu0 0.0
        %1149 = vmatprep.subr.mxu0 0.0
        %1150 = vmatpush1.xpose.msra.mxu0 0.0
        %1151 = vmatprep.subr.mxu0 0.0
        %1152 = vmatpush1.xpose.msra.mxu0 0.0
        %1153 = vmatprep.subr.mxu0 0.0
        %1154 = vmatpush1.xpose.msra.mxu0 %v1121
        %1155 = vmatprep.subr.mxu0 0.0
        %1156 = vmatpush2.xpose.msra.mxu0 0.0
        %1157 = vmatprep.subr.mxu0 0.0
        %1158 = vmatpush2.xpose.msra.mxu0 0.0
        %1159 = vmatprep.subr.mxu0 0.0
        %1160 = vmatpush2.xpose.msra.mxu0 0.0
        %1161 = vmatprep.subr.mxu0 0.0
        %1162 = vmatpush2.xpose.msra.mxu0 0.0
        %1163 = vmatprep.subr.mxu0 0.0
        %1164 = vmatpush2.xpose.msra.mxu0 0.0
        %1165 = vmatprep.subr.mxu0 0.0
        %1166 = vmatpush2.xpose.msra.mxu0 0.0
        %1167 = vmatprep.subr.mxu0 0.0
        %1168 = vmatpush2.xpose.msra.mxu0 0.0
        %1169 = vmatprep.subr.mxu0 0.0
        %1170 = vmatpush2.xpose.msra.mxu0 0.0
        %1171 = vmatprep.subr.mxu0 0.0
        %1172 = vmatpush2.xpose.msra.mxu0 0.0
        %1173 = vmatprep.subr.mxu0 0.0
        %1174 = vmatpush2.xpose.msra.mxu0 0.0
        %1175 = vmatprep.subr.mxu0 0.0
        %1176 = vmatpush2.xpose.msra.mxu0 0.0
        %1177 = vmatprep.subr.mxu0 0.0
        %1178 = vmatpush2.xpose.msra.mxu0 0.0
        %1179 = vmatprep.subr.mxu0 0.0
        %1180 = vmatpush2.xpose.msra.mxu0 0.0
        %1181 = vmatprep.subr.mxu0 0.0
        %1182 = vmatpush2.xpose.msra.mxu0 0.0
        %1183 = vmatprep.subr.mxu0 0.0
        %1184 = vmatpush2.xpose.msra.mxu0 0.0
        %1185 = vmatprep.subr.mxu0 0.0
        %1186 = vmatpush2.xpose.msra.mxu0 0.0
        %1187 = vmatprep.mubr.f32.mxu0 0.0
        %1188 = vmatmul.mubr.f32.gmra.mxu0 %v1119
        %v1189 = vpop.f32.mrf.mxu0
        %v1190 = vadd.f32 0.0, %v1189
        %v1191 = vpop.f32.mrf.mxu0
        %1192 = vdwg.mxu0
        %1193 = vrot.lane.b32.xlu0 %v1111, 96
        %v1194 = vpop.permute.xlu0 %1193
        %v1195 = vsel %vm1118, %v1111, 0
        %v1197 = vsel %vm1118, %v1194, 0
        %1199 = vmatprep.subr.mxu0 0.0
        %1200 = vmatpush1.xpose.msra.mxu0 0.0
        %1201 = vmatprep.subr.mxu0 0.0
        %1202 = vmatpush1.xpose.msra.mxu0 0.0
        %1203 = vmatprep.subr.mxu0 0.0
        %1204 = vmatpush1.xpose.msra.mxu0 0.0
        %1205 = vmatprep.subr.mxu0 0.0
        %1206 = vmatpush1.xpose.msra.mxu0 0.0
        %1207 = vmatprep.subr.mxu0 0.0
        %1208 = vmatpush1.xpose.msra.mxu0 0.0
        %1209 = vmatprep.subr.mxu0 0.0
        %1210 = vmatpush1.xpose.msra.mxu0 0.0
        %1211 = vmatprep.subr.mxu0 0.0
        %1212 = vmatpush1.xpose.msra.mxu0 0.0
        %1213 = vmatprep.subr.mxu0 0.0
        %1214 = vmatpush1.xpose.msra.mxu0 0.0
        %1215 = vmatprep.subr.mxu0 0.0
        %1216 = vmatpush1.xpose.msra.mxu0 0.0
        %1217 = vmatprep.subr.mxu0 0.0
        %1218 = vmatpush1.xpose.msra.mxu0 0.0
        %1219 = vmatprep.subr.mxu0 0.0
        %1220 = vmatpush1.xpose.msra.mxu0 0.0
        %1221 = vmatprep.subr.mxu0 0.0
        %1222 = vmatpush1.xpose.msra.mxu0 0.0
        %1223 = vmatprep.subr.mxu0 0.0
        %1224 = vmatpush1.xpose.msra.mxu0 0.0
        %1225 = vmatprep.subr.mxu0 0.0
        %1226 = vmatpush1.xpose.msra.mxu0 0.0
        %1227 = vmatprep.subr.mxu0 0.0
        %1228 = vmatpush1.xpose.msra.mxu0 0.0
        %1229 = vmatprep.subr.mxu0 0.0
        %1230 = vmatpush1.xpose.msra.mxu0 %v1197
        %1231 = vmatprep.subr.mxu0 0.0
        %1232 = vmatpush2.xpose.msra.mxu0 0.0
        %1233 = vmatprep.subr.mxu0 0.0
        %1234 = vmatpush2.xpose.msra.mxu0 0.0
        %1235 = vmatprep.subr.mxu0 0.0
        %1236 = vmatpush2.xpose.msra.mxu0 0.0
        %1237 = vmatprep.subr.mxu0 0.0
        %1238 = vmatpush2.xpose.msra.mxu0 0.0
        %1239 = vmatprep.subr.mxu0 0.0
        %1240 = vmatpush2.xpose.msra.mxu0 0.0
        %1241 = vmatprep.subr.mxu0 0.0
        %1242 = vmatpush2.xpose.msra.mxu0 0.0
        %1243 = vmatprep.subr.mxu0 0.0
        %1244 = vmatpush2.xpose.msra.mxu0 0.0
        %1245 = vmatprep.subr.mxu0 0.0
        %1246 = vmatpush2.xpose.msra.mxu0 0.0
        %1247 = vmatprep.subr.mxu0 0.0
        %1248 = vmatpush2.xpose.msra.mxu0 0.0
        %1249 = vmatprep.subr.mxu0 0.0
        %1250 = vmatpush2.xpose.msra.mxu0 0.0
        %1251 = vmatprep.subr.mxu0 0.0
        %1252 = vmatpush2.xpose.msra.mxu0 0.0
        %1253 = vmatprep.subr.mxu0 0.0
        %1254 = vmatpush2.xpose.msra.mxu0 0.0
        %1255 = vmatprep.subr.mxu0 0.0
        %1256 = vmatpush2.xpose.msra.mxu0 0.0
        %1257 = vmatprep.subr.mxu0 0.0
        %1258 = vmatpush2.xpose.msra.mxu0 0.0
        %1259 = vmatprep.subr.mxu0 0.0
        %1260 = vmatpush2.xpose.msra.mxu0 0.0
        %1261 = vmatprep.subr.mxu0 0.0
        %1262 = vmatpush2.xpose.msra.mxu0 0.0
        %1263 = vmatprep.mubr.f32.mxu0 0.0
        %1264 = vmatmul.mubr.f32.gmra.mxu0 %v1195
        %v1265 = vpop.f32.mrf.mxu0
        %v1266 = vadd.f32 0.0, %v1265
        %v1267 = vpop.f32.mrf.mxu0
        %1268 = vdwg.mxu0
        %1269 = vrot.lane.b32.xlu0 %v1113, 96
        %v1270 = vpop.permute.xlu0 %1269
        %v1271 = vsel %vm1118, %v1113, 0
        %v1273 = vsel %vm1118, %v1270, 0
        %1275 = vmatprep.subr.mxu0 0.0
        %1276 = vmatpush1.xpose.msra.mxu0 0.0
        %1277 = vmatprep.subr.mxu0 0.0
        %1278 = vmatpush1.xpose.msra.mxu0 0.0
        %1279 = vmatprep.subr.mxu0 0.0
        %1280 = vmatpush1.xpose.msra.mxu0 0.0
        %1281 = vmatprep.subr.mxu0 0.0
        %1282 = vmatpush1.xpose.msra.mxu0 0.0
        %1283 = vmatprep.subr.mxu0 0.0
        %1284 = vmatpush1.xpose.msra.mxu0 0.0
        %1285 = vmatprep.subr.mxu0 0.0
        %1286 = vmatpush1.xpose.msra.mxu0 0.0
        %1287 = vmatprep.subr.mxu0 0.0
        %1288 = vmatpush1.xpose.msra.mxu0 0.0
        %1289 = vmatprep.subr.mxu0 0.0
        %1290 = vmatpush1.xpose.msra.mxu0 0.0
        %1291 = vmatprep.subr.mxu0 0.0
        %1292 = vmatpush1.xpose.msra.mxu0 0.0
        %1293 = vmatprep.subr.mxu0 0.0
        %1294 = vmatpush1.xpose.msra.mxu0 0.0
        %1295 = vmatprep.subr.mxu0 0.0
        %1296 = vmatpush1.xpose.msra.mxu0 0.0
        %1297 = vmatprep.subr.mxu0 0.0
        %1298 = vmatpush1.xpose.msra.mxu0 0.0
        %1299 = vmatprep.subr.mxu0 0.0
        %1300 = vmatpush1.xpose.msra.mxu0 0.0
        %1301 = vmatprep.subr.mxu0 0.0
        %1302 = vmatpush1.xpose.msra.mxu0 0.0
        %1303 = vmatprep.subr.mxu0 0.0
        %1304 = vmatpush1.xpose.msra.mxu0 0.0
        %1305 = vmatprep.subr.mxu0 0.0
        %1306 = vmatpush1.xpose.msra.mxu0 %v1273
        %1307 = vmatprep.subr.mxu0 0.0
        %1308 = vmatpush2.xpose.msra.mxu0 0.0
        %1309 = vmatprep.subr.mxu0 0.0
        %1310 = vmatpush2.xpose.msra.mxu0 0.0
        %1311 = vmatprep.subr.mxu0 0.0
        %1312 = vmatpush2.xpose.msra.mxu0 0.0
        %1313 = vmatprep.subr.mxu0 0.0
        %1314 = vmatpush2.xpose.msra.mxu0 0.0
        %1315 = vmatprep.subr.mxu0 0.0
        %1316 = vmatpush2.xpose.msra.mxu0 0.0
        %1317 = vmatprep.subr.mxu0 0.0
        %1318 = vmatpush2.xpose.msra.mxu0 0.0
        %1319 = vmatprep.subr.mxu0 0.0
        %1320 = vmatpush2.xpose.msra.mxu0 0.0
        %1321 = vmatprep.subr.mxu0 0.0
        %1322 = vmatpush2.xpose.msra.mxu0 0.0
        %1323 = vmatprep.subr.mxu0 0.0
        %1324 = vmatpush2.xpose.msra.mxu0 0.0
        %1325 = vmatprep.subr.mxu0 0.0
        %1326 = vmatpush2.xpose.msra.mxu0 0.0
        %1327 = vmatprep.subr.mxu0 0.0
        %1328 = vmatpush2.xpose.msra.mxu0 0.0
        %1329 = vmatprep.subr.mxu0 0.0
        %1330 = vmatpush2.xpose.msra.mxu0 0.0
        %1331 = vmatprep.subr.mxu0 0.0
        %1332 = vmatpush2.xpose.msra.mxu0 0.0
        %1333 = vmatprep.subr.mxu0 0.0
        %1334 = vmatpush2.xpose.msra.mxu0 0.0
        %1335 = vmatprep.subr.mxu0 0.0
        %1336 = vmatpush2.xpose.msra.mxu0 0.0
        %1337 = vmatprep.subr.mxu0 0.0
        %1338 = vmatpush2.xpose.msra.mxu0 0.0
        %1339 = vmatprep.mubr.f32.mxu0 0.0
        %1340 = vmatmul.mubr.f32.gmra.mxu0 %v1271
        %v1341 = vpop.f32.mrf.mxu0
        %v1342 = vadd.f32 0.0, %v1341
        %v1343 = vpop.f32.mrf.mxu0
        %1344 = vdwg.mxu0
        %1345 = vrot.lane.b32.xlu0 %v1115, 96
        %v1346 = vpop.permute.xlu0 %1345
        %v1347 = vsel %vm1118, %v1115, 0
        %v1349 = vsel %vm1118, %v1346, 0
        %1351 = vmatprep.subr.mxu0 0.0
        %1352 = vmatpush1.xpose.msra.mxu0 0.0
        %1353 = vmatprep.subr.mxu0 0.0
        %1354 = vmatpush1.xpose.msra.mxu0 0.0
        %1355 = vmatprep.subr.mxu0 0.0
        %1356 = vmatpush1.xpose.msra.mxu0 0.0
        %1357 = vmatprep.subr.mxu0 0.0
        %1358 = vmatpush1.xpose.msra.mxu0 0.0
        %1359 = vmatprep.subr.mxu0 0.0
        %1360 = vmatpush1.xpose.msra.mxu0 0.0
        %1361 = vmatprep.subr.mxu0 0.0
        %1362 = vmatpush1.xpose.msra.mxu0 0.0
        %1363 = vmatprep.subr.mxu0 0.0
        %1364 = vmatpush1.xpose.msra.mxu0 0.0
        %1365 = vmatprep.subr.mxu0 0.0
        %1366 = vmatpush1.xpose.msra.mxu0 0.0
        %1367 = vmatprep.subr.mxu0 0.0
        %1368 = vmatpush1.xpose.msra.mxu0 0.0
        %1369 = vmatprep.subr.mxu0 0.0
        %1370 = vmatpush1.xpose.msra.mxu0 0.0
        %1371 = vmatprep.subr.mxu0 0.0
        %1372 = vmatpush1.xpose.msra.mxu0 0.0
        %1373 = vmatprep.subr.mxu0 0.0
        %1374 = vmatpush1.xpose.msra.mxu0 0.0
        %1375 = vmatprep.subr.mxu0 0.0
        %1376 = vmatpush1.xpose.msra.mxu0 0.0
        %1377 = vmatprep.subr.mxu0 0.0
        %1378 = vmatpush1.xpose.msra.mxu0 0.0
        %1379 = vmatprep.subr.mxu0 0.0
        %1380 = vmatpush1.xpose.msra.mxu0 0.0
        %1381 = vmatprep.subr.mxu0 0.0
        %1382 = vmatpush1.xpose.msra.mxu0 %v1349
        %1383 = vmatprep.subr.mxu0 0.0
        %1384 = vmatpush2.xpose.msra.mxu0 0.0
        %1385 = vmatprep.subr.mxu0 0.0
        %1386 = vmatpush2.xpose.msra.mxu0 0.0
        %1387 = vmatprep.subr.mxu0 0.0
        %1388 = vmatpush2.xpose.msra.mxu0 0.0
        %1389 = vmatprep.subr.mxu0 0.0
        %1390 = vmatpush2.xpose.msra.mxu0 0.0
        %1391 = vmatprep.subr.mxu0 0.0
        %1392 = vmatpush2.xpose.msra.mxu0 0.0
        %1393 = vmatprep.subr.mxu0 0.0
        %1394 = vmatpush2.xpose.msra.mxu0 0.0
        %1395 = vmatprep.subr.mxu0 0.0
        %1396 = vmatpush2.xpose.msra.mxu0 0.0
        %1397 = vmatprep.subr.mxu0 0.0
        %1398 = vmatpush2.xpose.msra.mxu0 0.0
        %1399 = vmatprep.subr.mxu0 0.0
        %1400 = vmatpush2.xpose.msra.mxu0 0.0
        %1401 = vmatprep.subr.mxu0 0.0
        %1402 = vmatpush2.xpose.msra.mxu0 0.0
        %1403 = vmatprep.subr.mxu0 0.0
        %1404 = vmatpush2.xpose.msra.mxu0 0.0
        %1405 = vmatprep.subr.mxu0 0.0
        %1406 = vmatpush2.xpose.msra.mxu0 0.0
        %1407 = vmatprep.subr.mxu0 0.0
        %1408 = vmatpush2.xpose.msra.mxu0 0.0
        %1409 = vmatprep.subr.mxu0 0.0
        %1410 = vmatpush2.xpose.msra.mxu0 0.0
        %1411 = vmatprep.subr.mxu0 0.0
        %1412 = vmatpush2.xpose.msra.mxu0 0.0
        %1413 = vmatprep.subr.mxu0 0.0
        %1414 = vmatpush2.xpose.msra.mxu0 0.0
        %1415 = vmatprep.mubr.f32.mxu0 0.0
        %1416 = vmatmul.mubr.f32.gmra.mxu0 %v1347
        %v1417 = vpop.f32.mrf.mxu0
        %v1418 = vadd.f32 0.0, %v1417
        %v1419 = vpop.f32.mrf.mxu0
        %1420 = vdwg.mxu0
        %v1421 = vmul.f32 %v1190, 0.35355338
        %v1422 = vmul.f32 %v1266, 0.35355338
        %v1423 = vmul.f32 %v1342, 0.35355338
        %v1424 = vmul.f32 %v1418, 0.35355338
        %v1425 = vsel %vm1118, %v1421, -inf
        %1426 = vmax.xlane.f32.xlu0 %v1425
        %v1427 = vpop.xlane.xlu0 %1426
        %v1428 = vsel %vm1118, %v1422, -inf
        %1429 = vmax.xlane.f32.xlu0 %v1428
        %v1430 = vpop.xlane.xlu0 %1429
        %v1431 = vsel %vm1118, %v1423, -inf
        %1432 = vmax.xlane.f32.xlu0 %v1431
        %v1433 = vpop.xlane.xlu0 %1432
        %v1434 = vsel %vm1118, %v1424, -inf
        %1435 = vmax.xlane.f32.xlu0 %v1434
        %v1436 = vpop.xlane.xlu0 %1435
        %v1437 = vsub.f32 %v1421, %v1427
        %v1438 = vsub.f32 %v1422, %v1430
        %v1439 = vsub.f32 %v1423, %v1433
        %v1440 = vsub.f32 %v1424, %v1436
        %v1441 = vmul.f32 %v1437, 1.442695
        %v1442 = vpow.pop %v1441
        %v1443 = vmul.f32 %v1438, 1.442695
        %v1444 = vpow.pop %v1443
        %v1445 = vmul.f32 %v1439, 1.442695
        %v1446 = vpow.pop %v1445
        %v1447 = vmul.f32 %v1440, 1.442695
        %v1448 = vpow.pop %v1447
        %v1449 = vsel %vm1118, %v1442, 0.0
        %1450 = vadd.xlane.f32.xlu0 %v1449
        %v1451 = vpop.xlane.xlu0 %1450
        %v1452 = vsel %vm1118, %v1444, 0.0
        %1453 = vadd.xlane.f32.xlu0 %v1452
        %v1454 = vpop.xlane.xlu0 %1453
        %v1455 = vsel %vm1118, %v1446, 0.0
        %1456 = vadd.xlane.f32.xlu0 %v1455
        %v1457 = vpop.xlane.xlu0 %1456
        %v1458 = vsel %vm1118, %v1448, 0.0
        %1459 = vadd.xlane.f32.xlu0 %v1458
        %v1460 = vpop.xlane.xlu0 %1459
        %1461 = vrot.lane.b32.xlu0 %v1106, 64
        %v1462 = vpop.permute.xlu0 %1461
        %v1465 = vsel %vm1118, %v1442, 0
        %1467 = vmatprep.subr.mxu0 0.0
        %1468 = vmatpush1.msra.mxu0 0.0
        %1469 = vmatprep.subr.mxu0 0.0
        %1470 = vmatpush1.msra.mxu0 0.0
        %1471 = vmatprep.subr.mxu0 0.0
        %1472 = vmatpush1.msra.mxu0 0.0
        %1473 = vmatprep.subr.mxu0 0.0
        %1474 = vmatpush1.msra.mxu0 0.0
        %1475 = vmatprep.subr.mxu0 0.0
        %1476 = vmatpush1.msra.mxu0 0.0
        %1477 = vmatprep.subr.mxu0 0.0
        %1478 = vmatpush1.msra.mxu0 0.0
        %1479 = vmatprep.subr.mxu0 0.0
        %1480 = vmatpush1.msra.mxu0 0.0
        %1481 = vmatprep.subr.mxu0 0.0
        %1482 = vmatpush1.msra.mxu0 0.0
        %1483 = vmatprep.subr.mxu0 0.0
        %1484 = vmatpush1.msra.mxu0 0.0
        %1485 = vmatprep.subr.mxu0 0.0
        %1486 = vmatpush1.msra.mxu0 0.0
        %1487 = vmatprep.subr.mxu0 0.0
        %1488 = vmatpush1.msra.mxu0 0.0
        %1489 = vmatprep.subr.mxu0 0.0
        %1490 = vmatpush1.msra.mxu0 0.0
        %1491 = vmatprep.subr.mxu0 0.0
        %1492 = vmatpush1.msra.mxu0 0.0
        %1493 = vmatprep.subr.mxu0 0.0
        %1494 = vmatpush1.msra.mxu0 0.0
        %1495 = vmatprep.subr.mxu0 0.0
        %1496 = vmatpush1.msra.mxu0 0.0
        %1497 = vmatprep.subr.mxu0 0.0
        %1498 = vmatpush1.msra.mxu0 %v1462
        %1499 = vmatprep.subr.mxu0 0.0
        %1500 = vmatpush2.msra.mxu0 0.0
        %1501 = vmatprep.subr.mxu0 0.0
        %1502 = vmatpush2.msra.mxu0 0.0
        %1503 = vmatprep.subr.mxu0 0.0
        %1504 = vmatpush2.msra.mxu0 0.0
        %1505 = vmatprep.subr.mxu0 0.0
        %1506 = vmatpush2.msra.mxu0 0.0
        %1507 = vmatprep.subr.mxu0 0.0
        %1508 = vmatpush2.msra.mxu0 0.0
        %1509 = vmatprep.subr.mxu0 0.0
        %1510 = vmatpush2.msra.mxu0 0.0
        %1511 = vmatprep.subr.mxu0 0.0
        %1512 = vmatpush2.msra.mxu0 0.0
        %1513 = vmatprep.subr.mxu0 0.0
        %1514 = vmatpush2.msra.mxu0 0.0
        %1515 = vmatprep.subr.mxu0 0.0
        %1516 = vmatpush2.msra.mxu0 0.0
        %1517 = vmatprep.subr.mxu0 0.0
        %1518 = vmatpush2.msra.mxu0 0.0
        %1519 = vmatprep.subr.mxu0 0.0
        %1520 = vmatpush2.msra.mxu0 0.0
        %1521 = vmatprep.subr.mxu0 0.0
        %1522 = vmatpush2.msra.mxu0 0.0
        %1523 = vmatprep.subr.mxu0 0.0
        %1524 = vmatpush2.msra.mxu0 0.0
        %1525 = vmatprep.subr.mxu0 0.0
        %1526 = vmatpush2.msra.mxu0 0.0
        %1527 = vmatprep.subr.mxu0 0.0
        %1528 = vmatpush2.msra.mxu0 0.0
        %1529 = vmatprep.subr.mxu0 0.0
        %1530 = vmatpush2.msra.mxu0 0.0
        %1531 = vmatprep.mubr.f32.mxu0 0.0
        %1532 = vmatmul.mubr.f32.gmra.mxu0 %v1465
        %v1533 = vpop.f32.mrf.mxu0
        %v1534 = vadd.f32 0.0, %v1533
        %v1535 = vpop.f32.mrf.mxu0
        %1536 = vdwg.mxu0
        %1537 = vrot.lane.b32.xlu0 %v1111, 64
        %v1538 = vpop.permute.xlu0 %1537
        %v1541 = vsel %vm1118, %v1444, 0
        %1543 = vmatprep.subr.mxu0 0.0
        %1544 = vmatpush1.msra.mxu0 0.0
        %1545 = vmatprep.subr.mxu0 0.0
        %1546 = vmatpush1.msra.mxu0 0.0
        %1547 = vmatprep.subr.mxu0 0.0
        %1548 = vmatpush1.msra.mxu0 0.0
        %1549 = vmatprep.subr.mxu0 0.0
        %1550 = vmatpush1.msra.mxu0 0.0
        %1551 = vmatprep.subr.mxu0 0.0
        %1552 = vmatpush1.msra.mxu0 0.0
        %1553 = vmatprep.subr.mxu0 0.0
        %1554 = vmatpush1.msra.mxu0 0.0
        %1555 = vmatprep.subr.mxu0 0.0
        %1556 = vmatpush1.msra.mxu0 0.0
        %1557 = vmatprep.subr.mxu0 0.0
        %1558 = vmatpush1.msra.mxu0 0.0
        %1559 = vmatprep.subr.mxu0 0.0
        %1560 = vmatpush1.msra.mxu0 0.0
        %1561 = vmatprep.subr.mxu0 0.0
        %1562 = vmatpush1.msra.mxu0 0.0
        %1563 = vmatprep.subr.mxu0 0.0
        %1564 = vmatpush1.msra.mxu0 0.0
        %1565 = vmatprep.subr.mxu0 0.0
        %1566 = vmatpush1.msra.mxu0 0.0
        %1567 = vmatprep.subr.mxu0 0.0
        %1568 = vmatpush1.msra.mxu0 0.0
        %1569 = vmatprep.subr.mxu0 0.0
        %1570 = vmatpush1.msra.mxu0 0.0
        %1571 = vmatprep.subr.mxu0 0.0
        %1572 = vmatpush1.msra.mxu0 0.0
        %1573 = vmatprep.subr.mxu0 0.0
        %1574 = vmatpush1.msra.mxu0 %v1538
        %1575 = vmatprep.subr.mxu0 0.0
        %1576 = vmatpush2.msra.mxu0 0.0
        %1577 = vmatprep.subr.mxu0 0.0
        %1578 = vmatpush2.msra.mxu0 0.0
        %1579 = vmatprep.subr.mxu0 0.0
        %1580 = vmatpush2.msra.mxu0 0.0
        %1581 = vmatprep.subr.mxu0 0.0
        %1582 = vmatpush2.msra.mxu0 0.0
        %1583 = vmatprep.subr.mxu0 0.0
        %1584 = vmatpush2.msra.mxu0 0.0
        %1585 = vmatprep.subr.mxu0 0.0
        %1586 = vmatpush2.msra.mxu0 0.0
        %1587 = vmatprep.subr.mxu0 0.0
        %1588 = vmatpush2.msra.mxu0 0.0
        %1589 = vmatprep.subr.mxu0 0.0
        %1590 = vmatpush2.msra.mxu0 0.0
        %1591 = vmatprep.subr.mxu0 0.0
        %1592 = vmatpush2.msra.mxu0 0.0
        %1593 = vmatprep.subr.mxu0 0.0
        %1594 = vmatpush2.msra.mxu0 0.0
        %1595 = vmatprep.subr.mxu0 0.0
        %1596 = vmatpush2.msra.mxu0 0.0
        %1597 = vmatprep.subr.mxu0 0.0
        %1598 = vmatpush2.msra.mxu0 0.0
        %1599 = vmatprep.subr.mxu0 0.0
        %1600 = vmatpush2.msra.mxu0 0.0
        %1601 = vmatprep.subr.mxu0 0.0
        %1602 = vmatpush2.msra.mxu0 0.0
        %1603 = vmatprep.subr.mxu0 0.0
        %1604 = vmatpush2.msra.mxu0 0.0
        %1605 = vmatprep.subr.mxu0 0.0
        %1606 = vmatpush2.msra.mxu0 0.0
        %1607 = vmatprep.mubr.f32.mxu0 0.0
        %1608 = vmatmul.mubr.f32.gmra.mxu0 %v1541
        %v1609 = vpop.f32.mrf.mxu0
        %v1610 = vadd.f32 0.0, %v1609
        %v1611 = vpop.f32.mrf.mxu0
        %1612 = vdwg.mxu0
        %1613 = vrot.lane.b32.xlu0 %v1113, 64
        %v1614 = vpop.permute.xlu0 %1613
        %v1617 = vsel %vm1118, %v1446, 0
        %1619 = vmatprep.subr.mxu0 0.0
        %1620 = vmatpush1.msra.mxu0 0.0
        %1621 = vmatprep.subr.mxu0 0.0
        %1622 = vmatpush1.msra.mxu0 0.0
        %1623 = vmatprep.subr.mxu0 0.0
        %1624 = vmatpush1.msra.mxu0 0.0
        %1625 = vmatprep.subr.mxu0 0.0
        %1626 = vmatpush1.msra.mxu0 0.0
        %1627 = vmatprep.subr.mxu0 0.0
        %1628 = vmatpush1.msra.mxu0 0.0
        %1629 = vmatprep.subr.mxu0 0.0
        %1630 = vmatpush1.msra.mxu0 0.0
        %1631 = vmatprep.subr.mxu0 0.0
        %1632 = vmatpush1.msra.mxu0 0.0
        %1633 = vmatprep.subr.mxu0 0.0
        %1634 = vmatpush1.msra.mxu0 0.0
        %1635 = vmatprep.subr.mxu0 0.0
        %1636 = vmatpush1.msra.mxu0 0.0
        %1637 = vmatprep.subr.mxu0 0.0
        %1638 = vmatpush1.msra.mxu0 0.0
        %1639 = vmatprep.subr.mxu0 0.0
        %1640 = vmatpush1.msra.mxu0 0.0
        %1641 = vmatprep.subr.mxu0 0.0
        %1642 = vmatpush1.msra.mxu0 0.0
        %1643 = vmatprep.subr.mxu0 0.0
        %1644 = vmatpush1.msra.mxu0 0.0
        %1645 = vmatprep.subr.mxu0 0.0
        %1646 = vmatpush1.msra.mxu0 0.0
        %1647 = vmatprep.subr.mxu0 0.0
        %1648 = vmatpush1.msra.mxu0 0.0
        %1649 = vmatprep.subr.mxu0 0.0
        %1650 = vmatpush1.msra.mxu0 %v1614
        %1651 = vmatprep.subr.mxu0 0.0
        %1652 = vmatpush2.msra.mxu0 0.0
        %1653 = vmatprep.subr.mxu0 0.0
        %1654 = vmatpush2.msra.mxu0 0.0
        %1655 = vmatprep.subr.mxu0 0.0
        %1656 = vmatpush2.msra.mxu0 0.0
        %1657 = vmatprep.subr.mxu0 0.0
        %1658 = vmatpush2.msra.mxu0 0.0
        %1659 = vmatprep.subr.mxu0 0.0
        %1660 = vmatpush2.msra.mxu0 0.0
        %1661 = vmatprep.subr.mxu0 0.0
        %1662 = vmatpush2.msra.mxu0 0.0
        %1663 = vmatprep.subr.mxu0 0.0
        %1664 = vmatpush2.msra.mxu0 0.0
        %1665 = vmatprep.subr.mxu0 0.0
        %1666 = vmatpush2.msra.mxu0 0.0
        %1667 = vmatprep.subr.mxu0 0.0
        %1668 = vmatpush2.msra.mxu0 0.0
        %1669 = vmatprep.subr.mxu0 0.0
        %1670 = vmatpush2.msra.mxu0 0.0
        %1671 = vmatprep.subr.mxu0 0.0
        %1672 = vmatpush2.msra.mxu0 0.0
        %1673 = vmatprep.subr.mxu0 0.0
        %1674 = vmatpush2.msra.mxu0 0.0
        %1675 = vmatprep.subr.mxu0 0.0
        %1676 = vmatpush2.msra.mxu0 0.0
        %1677 = vmatprep.subr.mxu0 0.0
        %1678 = vmatpush2.msra.mxu0 0.0
        %1679 = vmatprep.subr.mxu0 0.0
        %1680 = vmatpush2.msra.mxu0 0.0
        %1681 = vmatprep.subr.mxu0 0.0
        %1682 = vmatpush2.msra.mxu0 0.0
        %1683 = vmatprep.mubr.f32.mxu0 0.0
        %1684 = vmatmul.mubr.f32.gmra.mxu0 %v1617
        %v1685 = vpop.f32.mrf.mxu0
        %v1686 = vadd.f32 0.0, %v1685
        %v1687 = vpop.f32.mrf.mxu0
        %1688 = vdwg.mxu0
        %1689 = vrot.lane.b32.xlu0 %v1115, 64
        %v1690 = vpop.permute.xlu0 %1689
        %v1693 = vsel %vm1118, %v1448, 0
        %1695 = vmatprep.subr.mxu0 0.0
        %1696 = vmatpush1.msra.mxu0 0.0
        %1697 = vmatprep.subr.mxu0 0.0
        %1698 = vmatpush1.msra.mxu0 0.0
        %1699 = vmatprep.subr.mxu0 0.0
        %1700 = vmatpush1.msra.mxu0 0.0
        %1701 = vmatprep.subr.mxu0 0.0
        %1702 = vmatpush1.msra.mxu0 0.0
        %1703 = vmatprep.subr.mxu0 0.0
        %1704 = vmatpush1.msra.mxu0 0.0
        %1705 = vmatprep.subr.mxu0 0.0
        %1706 = vmatpush1.msra.mxu0 0.0
        %1707 = vmatprep.subr.mxu0 0.0
        %1708 = vmatpush1.msra.mxu0 0.0
        %1709 = vmatprep.subr.mxu0 0.0
        %1710 = vmatpush1.msra.mxu0 0.0
        %1711 = vmatprep.subr.mxu0 0.0
        %1712 = vmatpush1.msra.mxu0 0.0
        %1713 = vmatprep.subr.mxu0 0.0
        %1714 = vmatpush1.msra.mxu0 0.0
        %1715 = vmatprep.subr.mxu0 0.0
        %1716 = vmatpush1.msra.mxu0 0.0
        %1717 = vmatprep.subr.mxu0 0.0
        %1718 = vmatpush1.msra.mxu0 0.0
        %1719 = vmatprep.subr.mxu0 0.0
        %1720 = vmatpush1.msra.mxu0 0.0
        %1721 = vmatprep.subr.mxu0 0.0
        %1722 = vmatpush1.msra.mxu0 0.0
        %1723 = vmatprep.subr.mxu0 0.0
        %1724 = vmatpush1.msra.mxu0 0.0
        %1725 = vmatprep.subr.mxu0 0.0
        %1726 = vmatpush1.msra.mxu0 %v1690
        %1727 = vmatprep.subr.mxu0 0.0
        %1728 = vmatpush2.msra.mxu0 0.0
        %1729 = vmatprep.subr.mxu0 0.0
        %1730 = vmatpush2.msra.mxu0 0.0
        %1731 = vmatprep.subr.mxu0 0.0
        %1732 = vmatpush2.msra.mxu0 0.0
        %1733 = vmatprep.subr.mxu0 0.0
        %1734 = vmatpush2.msra.mxu0 0.0
        %1735 = vmatprep.subr.mxu0 0.0
        %1736 = vmatpush2.msra.mxu0 0.0
        %1737 = vmatprep.subr.mxu0 0.0
        %1738 = vmatpush2.msra.mxu0 0.0
        %1739 = vmatprep.subr.mxu0 0.0
        %1740 = vmatpush2.msra.mxu0 0.0
        %1741 = vmatprep.subr.mxu0 0.0
        %1742 = vmatpush2.msra.mxu0 0.0
        %1743 = vmatprep.subr.mxu0 0.0
        %1744 = vmatpush2.msra.mxu0 0.0
        %1745 = vmatprep.subr.mxu0 0.0
        %1746 = vmatpush2.msra.mxu0 0.0
        %1747 = vmatprep.subr.mxu0 0.0
        %1748 = vmatpush2.msra.mxu0 0.0
        %1749 = vmatprep.subr.mxu0 0.0
        %1750 = vmatpush2.msra.mxu0 0.0
        %1751 = vmatprep.subr.mxu0 0.0
        %1752 = vmatpush2.msra.mxu0 0.0
        %1753 = vmatprep.subr.mxu0 0.0
        %1754 = vmatpush2.msra.mxu0 0.0
        %1755 = vmatprep.subr.mxu0 0.0
        %1756 = vmatpush2.msra.mxu0 0.0
        %1757 = vmatprep.subr.mxu0 0.0
        %1758 = vmatpush2.msra.mxu0 0.0
        %1759 = vmatprep.mubr.f32.mxu0 0.0
        %1760 = vmatmul.mubr.f32.gmra.mxu0 %v1693
        %v1761 = vpop.f32.mrf.mxu0
        %v1762 = vadd.f32 0.0, %v1761
        %v1763 = vpop.f32.mrf.mxu0
        %1764 = vdwg.mxu0
        %v1765 = vrcp.pop %v1451
        %v1766 = vrcp.pop %v1454
        %v1767 = vrcp.pop %v1457
        %v1768 = vrcp.pop %v1460
        %v1769 = vmul.f32 %v1534, %v1765
        %v1770 = vmul.f32 %v1610, %v1766
        %v1771 = vmul.f32 %v1686, %v1767
        %v1772 = vmul.f32 %v1762, %v1768
        %1774 = vrot.lane.b32.xlu0 %v1770, 8
        %v1775 = vpop.permute.xlu0 %1774
        %1778 = vrot.lane.b32.xlu0 %v1771, 16
        %v1779 = vpop.permute.xlu0 %1778
        %1782 = vrot.lane.b32.xlu0 %v1772, 24
        %v1783 = vpop.permute.xlu0 %1782
        %v1785 = vsel %vm1118, %v1769, %v1775
        %v1786 = vsel %vm841, %v1785, %v1779
        %vm1787 = vcmask 195584
        %v1788 = vsel %vm1787, %v1786, %v1783
        %v1789 = vld [vmem:[%s10] sm:$0xff]
        %v1790 = vld [vmem:[%s10 + $0x8] sm:$0xff]
        %v1791 = vld [vmem:[%s10 + $0x10] sm:$0xff]
        %v1792 = vld [vmem:[%s10 + $0x18] sm:$0xff]
        %v1793 = vld [vmem:[%s11] sm:$0x1]
        %v1795 = vlaneseq
        %v1796 = vshrl.u32 %v1795, 7
        %v1797 = vsub.s32 0, %v1796
        %v1798 = vrot.slane %v1793, %v1797
        %v1801 = vsel %vm1035, %v1788, 0
        %1803 = vmatprep.subr.mxu0 0.0
        %1804 = vmatpush1.msra.mxu0 0.0
        %1805 = vmatprep.subr.mxu0 0.0
        %1806 = vmatpush1.msra.mxu0 0.0
        %1807 = vmatprep.subr.mxu0 0.0
        %1808 = vmatpush1.msra.mxu0 0.0
        %1809 = vmatprep.subr.mxu0 0.0
        %1810 = vmatpush1.msra.mxu0 0.0
        %1811 = vmatprep.subr.mxu0 0.0
        %1812 = vmatpush1.msra.mxu0 0.0
        %1813 = vmatprep.subr.mxu0 0.0
        %1814 = vmatpush1.msra.mxu0 0.0
        %1815 = vmatprep.subr.mxu0 0.0
        %1816 = vmatpush1.msra.mxu0 0.0
        %1817 = vmatprep.subr.mxu0 0.0
        %1818 = vmatpush1.msra.mxu0 0.0
        %1819 = vmatprep.subr.mxu0 0.0
        %1820 = vmatpush1.msra.mxu0 0.0
        %1821 = vmatprep.subr.mxu0 0.0
        %1822 = vmatpush1.msra.mxu0 0.0
        %1823 = vmatprep.subr.mxu0 0.0
        %1824 = vmatpush1.msra.mxu0 0.0
        %1825 = vmatprep.subr.mxu0 0.0
        %1826 = vmatpush1.msra.mxu0 0.0
        %1827 = vmatprep.subr.mxu0 0.0
        %1828 = vmatpush1.msra.mxu0 %v1792
        %1829 = vmatprep.subr.mxu0 0.0
        %1830 = vmatpush1.msra.mxu0 %v1791
        %1831 = vmatprep.subr.mxu0 0.0
        %1832 = vmatpush1.msra.mxu0 %v1790
        %1833 = vmatprep.subr.mxu0 0.0
        %1834 = vmatpush1.msra.mxu0 %v1789
        %1835 = vmatprep.subr.mxu0 0.0
        %1836 = vmatpush2.msra.mxu0 0.0
        %1837 = vmatprep.subr.mxu0 0.0
        %1838 = vmatpush2.msra.mxu0 0.0
        %1839 = vmatprep.subr.mxu0 0.0
        %1840 = vmatpush2.msra.mxu0 0.0
        %1841 = vmatprep.subr.mxu0 0.0
        %1842 = vmatpush2.msra.mxu0 0.0
        %1843 = vmatprep.subr.mxu0 0.0
        %1844 = vmatpush2.msra.mxu0 0.0
        %1845 = vmatprep.subr.mxu0 0.0
        %1846 = vmatpush2.msra.mxu0 0.0
        %1847 = vmatprep.subr.mxu0 0.0
        %1848 = vmatpush2.msra.mxu0 0.0
        %1849 = vmatprep.subr.mxu0 0.0
        %1850 = vmatpush2.msra.mxu0 0.0
        %1851 = vmatprep.subr.mxu0 0.0
        %1852 = vmatpush2.msra.mxu0 0.0
        %1853 = vmatprep.subr.mxu0 0.0
        %1854 = vmatpush2.msra.mxu0 0.0
        %1855 = vmatprep.subr.mxu0 0.0
        %1856 = vmatpush2.msra.mxu0 0.0
        %1857 = vmatprep.subr.mxu0 0.0
        %1858 = vmatpush2.msra.mxu0 0.0
        %1859 = vmatprep.subr.mxu0 0.0
        %1860 = vmatpush2.msra.mxu0 0.0
        %1861 = vmatprep.subr.mxu0 0.0
        %1862 = vmatpush2.msra.mxu0 0.0
        %1863 = vmatprep.subr.mxu0 0.0
        %1864 = vmatpush2.msra.mxu0 0.0
        %1865 = vmatprep.subr.mxu0 0.0
        %1866 = vmatpush2.msra.mxu0 0.0
        %1867 = vmatprep.mubr.f32.mxu0 0.0
        %1868 = vmatmul.mubr.f32.gmra.mxu0 %v1801
        %v1869 = vpop.f32.mrf.mxu0
        %v1870 = vadd.f32 %v1798, %v1869
        %v1871 = vpop.f32.mrf.mxu0
        %1872 = vdwg.mxu0
        %v1873 = vadd.f32 %v1023, %v1870
        %v1874 = vld [vmem:[%s12] sm:$0x1]
        %v1875 = vld [vmem:[%s13] sm:$0x1]
        %v1876 = vsel %vm1035, %v1873, 0.0
        %1877 = vadd.xlane.f32.xlu0 %v1876
        %v1878 = vpop.xlane.xlu0 %1877
        %v1879 = vrcp.pop 32.0
        %v1880 = vmul.f32 %v1878, %v1879
        %v1881 = vsub.f32 %v1873, %v1880
        %v1882 = vmul.f32 %v1881, %v1881
        %v1883 = vsel %vm1035, %v1882, 0.0
        %1884 = vadd.xlane.f32.xlu0 %v1883
        %v1885 = vpop.xlane.xlu0 %1884
        %v1886 = vmul.f32 %v1885, %v1879
        %v1887 = vadd.f32 %v1886, 1e-05
        %v1888 = vrsqrt.pop %v1887
        %v1889 = vmul.f32 %v1881, %v1888
        %v1891 = vlaneseq
        %v1892 = vshrl.u32 %v1891, 7
        %v1893 = vsub.s32 0, %v1892
        %v1894 = vrot.slane %v1874, %v1893
        %v1896 = vmul.f32 %v1889, %v1894
        %v1898 = vlaneseq
        %v1899 = vshrl.u32 %v1898, 7
        %v1900 = vsub.s32 0, %v1899
        %v1901 = vrot.slane %v1875, %v1900
        %v1903 = vadd.f32 %v1896, %v1901
        %v1904 = vld [vmem:[%s14] sm:$0xff]
        %v1905 = vld [vmem:[%s14 + $0x8] sm:$0xff]
        %v1906 = vld [vmem:[%s14 + $0x10] sm:$0xff]
        %v1907 = vld [vmem:[%s14 + $0x18] sm:$0xff]
        %v1908 = vld [vmem:[%s15] sm:$0x1]
        %v1910 = vlaneseq
        %v1911 = vshrl.u32 %v1910, 7
        %v1912 = vsub.s32 0, %v1911
        %v1913 = vrot.slane %v1908, %v1912
        %v1916 = vsel %vm1035, %v1903, 0
        %1918 = vmatprep.subr.mxu0 0.0
        %1919 = vmatpush1.msra.mxu0 0.0
        %1920 = vmatprep.subr.mxu0 0.0
        %1921 = vmatpush1.msra.mxu0 0.0
        %1922 = vmatprep.subr.mxu0 0.0
        %1923 = vmatpush1.msra.mxu0 0.0
        %1924 = vmatprep.subr.mxu0 0.0
        %1925 = vmatpush1.msra.mxu0 0.0
        %1926 = vmatprep.subr.mxu0 0.0
        %1927 = vmatpush1.msra.mxu0 0.0
        %1928 = vmatprep.subr.mxu0 0.0
        %1929 = vmatpush1.msra.mxu0 0.0
        %1930 = vmatprep.subr.mxu0 0.0
        %1931 = vmatpush1.msra.mxu0 0.0
        %1932 = vmatprep.subr.mxu0 0.0
        %1933 = vmatpush1.msra.mxu0 0.0
        %1934 = vmatprep.subr.mxu0 0.0
        %1935 = vmatpush1.msra.mxu0 0.0
        %1936 = vmatprep.subr.mxu0 0.0
        %1937 = vmatpush1.msra.mxu0 0.0
        %1938 = vmatprep.subr.mxu0 0.0
        %1939 = vmatpush1.msra.mxu0 0.0
        %1940 = vmatprep.subr.mxu0 0.0
        %1941 = vmatpush1.msra.mxu0 0.0
        %1942 = vmatprep.subr.mxu0 0.0
        %1943 = vmatpush1.msra.mxu0 %v1907
        %1944 = vmatprep.subr.mxu0 0.0
        %1945 = vmatpush1.msra.mxu0 %v1906
        %1946 = vmatprep.subr.mxu0 0.0
        %1947 = vmatpush1.msra.mxu0 %v1905
        %1948 = vmatprep.subr.mxu0 0.0
        %1949 = vmatpush1.msra.mxu0 %v1904
        %1950 = vmatprep.subr.mxu0 0.0
        %1951 = vmatpush2.msra.mxu0 0.0
        %1952 = vmatprep.subr.mxu0 0.0
        %1953 = vmatpush2.msra.mxu0 0.0
        %1954 = vmatprep.subr.mxu0 0.0
        %1955 = vmatpush2.msra.mxu0 0.0
        %1956 = vmatprep.subr.mxu0 0.0
        %1957 = vmatpush2.msra.mxu0 0.0
        %1958 = vmatprep.subr.mxu0 0.0
        %1959 = vmatpush2.msra.mxu0 0.0
        %1960 = vmatprep.subr.mxu0 0.0
        %1961 = vmatpush2.msra.mxu0 0.0
        %1962 = vmatprep.subr.mxu0 0.0
        %1963 = vmatpush2.msra.mxu0 0.0
        %1964 = vmatprep.subr.mxu0 0.0
        %1965 = vmatpush2.msra.mxu0 0.0
        %1966 = vmatprep.subr.mxu0 0.0
        %1967 = vmatpush2.msra.mxu0 0.0
        %1968 = vmatprep.subr.mxu0 0.0
        %1969 = vmatpush2.msra.mxu0 0.0
        %1970 = vmatprep.subr.mxu0 0.0
        %1971 = vmatpush2.msra.mxu0 0.0
        %1972 = vmatprep.subr.mxu0 0.0
        %1973 = vmatpush2.msra.mxu0 0.0
        %1974 = vmatprep.subr.mxu0 0.0
        %1975 = vmatpush2.msra.mxu0 0.0
        %1976 = vmatprep.subr.mxu0 0.0
        %1977 = vmatpush2.msra.mxu0 0.0
        %1978 = vmatprep.subr.mxu0 0.0
        %1979 = vmatpush2.msra.mxu0 0.0
        %1980 = vmatprep.subr.mxu0 0.0
        %1981 = vmatpush2.msra.mxu0 0.0
        %1982 = vmatprep.mubr.f32.mxu0 0.0
        %1983 = vmatmul.mubr.f32.gmra.mxu0 %v1916
        %v1984 = vpop.f32.mrf.mxu0
        %v1985 = vadd.f32 %v1913, %v1984
        %v1986 = vpop.f32.mrf.mxu0
        %1987 = vdwg.mxu0
        %v1988 = vmul.f32 %v1985, 0.70710677
        %vm1989 = vcmp.ge.f32.partialorder %v1988, 0.0
        %v1990 = vsel %vm1989, 1.0, -1.0
        %v1991 = vand.u32 2147483647, %v1988
        %v1992 = vmul.f32 %v1991, 0.3275911
        %v1993 = vadd.f32 %v1992, 1.0
        %v1994 = vrcp.pop %v1993
        %v1995 = vmul.f32 1.0, %v1994
        %v1996 = vmul.f32 %v1995, 1.0614054
        %v1997 = vadd.f32 %v1996, -1.4531521
        %v1998 = vmul.f32 %v1995, %v1997
        %v1999 = vadd.f32 %v1998, 1.4214138
        %v2000 = vmul.f32 %v1995, %v1999
        %v2001 = vadd.f32 %v2000, -0.28449672
        %v2002 = vmul.f32 %v1995, %v2001
        %v2003 = vadd.f32 %v2002, 0.2548296
        %v2004 = vmul.f32 %v1995, %v2003
        %v2005 = vsub.f32 0.0, %v1991
        %v2006 = vmul.f32 %v2005, %v1991
        %v2007 = vmul.f32 %v2006, 1.442695
        %v2008 = vpow.pop %v2007
        %v2009 = vmul.f32 %v2004, %v2008
        %v2010 = vsub.f32 1.0, %v2009
        %v2011 = vmul.f32 %v1990, %v2010
        %v2012 = vmul.f32 %v1985, 0.5
        %v2013 = vadd.f32 %v2011, 1.0
        %v2014 = vmul.f32 %v2012, %v2013
        %v2015 = vld [vmem:[%s16] sm:$0xff]
        %v2016 = vld [vmem:[%s16 + $0x8] sm:$0xff]
        %v2017 = vld [vmem:[%s16 + $0x10] sm:$0xff]
        %v2018 = vld [vmem:[%s16 + $0x18] sm:$0xff]
        %v2019 = vld [vmem:[%s16 + $0x20] sm:$0xff]
        %v2020 = vld [vmem:[%s16 + $0x28] sm:$0xff]
        %v2021 = vld [vmem:[%s16 + $0x30] sm:$0xff]
        %v2022 = vld [vmem:[%s16 + $0x38] sm:$0xff]
        %v2023 = vld [vmem:[%s16 + $0x40] sm:$0xff]
        %v2024 = vld [vmem:[%s16 + $0x48] sm:$0xff]
        %v2025 = vld [vmem:[%s16 + $0x50] sm:$0xff]
        %v2026 = vld [vmem:[%s16 + $0x58] sm:$0xff]
        %v2027 = vld [vmem:[%s16 + $0x60] sm:$0xff]
        %v2028 = vld [vmem:[%s16 + $0x68] sm:$0xff]
        %v2029 = vld [vmem:[%s16 + $0x70] sm:$0xff]
        %v2030 = vld [vmem:[%s16 + $0x78] sm:$0xff]
        %v2031 = vld [vmem:[%s17] sm:$0x1]
        %v2033 = vlaneseq
        %v2034 = vshrl.u32 %v2033, 7
        %v2035 = vsub.s32 0, %v2034
        %v2036 = vrot.slane %v2031, %v2035
        %2038 = vmatprep.subr.mxu0 0.0
        %2039 = vmatpush1.msra.mxu0 %v2030
        %2040 = vmatprep.subr.mxu0 0.0
        %2041 = vmatpush1.msra.mxu0 %v2029
        %2042 = vmatprep.subr.mxu0 0.0
        %2043 = vmatpush1.msra.mxu0 %v2028
        %2044 = vmatprep.subr.mxu0 0.0
        %2045 = vmatpush1.msra.mxu0 %v2027
        %2046 = vmatprep.subr.mxu0 0.0
        %2047 = vmatpush1.msra.mxu0 %v2026
        %2048 = vmatprep.subr.mxu0 0.0
        %2049 = vmatpush1.msra.mxu0 %v2025
        %2050 = vmatprep.subr.mxu0 0.0
        %2051 = vmatpush1.msra.mxu0 %v2024
        %2052 = vmatprep.subr.mxu0 0.0
        %2053 = vmatpush1.msra.mxu0 %v2023
        %2054 = vmatprep.subr.mxu0 0.0
        %2055 = vmatpush1.msra.mxu0 %v2022
        %2056 = vmatprep.subr.mxu0 0.0
        %2057 = vmatpush1.msra.mxu0 %v2021
        %2058 = vmatprep.subr.mxu0 0.0
        %2059 = vmatpush1.msra.mxu0 %v2020
        %2060 = vmatprep.subr.mxu0 0.0
        %2061 = vmatpush1.msra.mxu0 %v2019
        %2062 = vmatprep.subr.mxu0 0.0
        %2063 = vmatpush1.msra.mxu0 %v2018
        %2064 = vmatprep.subr.mxu0 0.0
        %2065 = vmatpush1.msra.mxu0 %v2017
        %2066 = vmatprep.subr.mxu0 0.0
        %2067 = vmatpush1.msra.mxu0 %v2016
        %2068 = vmatprep.subr.mxu0 0.0
        %2069 = vmatpush1.msra.mxu0 %v2015
        %2070 = vmatprep.subr.mxu0 0.0
        %2071 = vmatpush2.msra.mxu0 0.0
        %2072 = vmatprep.subr.mxu0 0.0
        %2073 = vmatpush2.msra.mxu0 0.0
        %2074 = vmatprep.subr.mxu0 0.0
        %2075 = vmatpush2.msra.mxu0 0.0
        %2076 = vmatprep.subr.mxu0 0.0
        %2077 = vmatpush2.msra.mxu0 0.0
        %2078 = vmatprep.subr.mxu0 0.0
        %2079 = vmatpush2.msra.mxu0 0.0
        %2080 = vmatprep.subr.mxu0 0.0
        %2081 = vmatpush2.msra.mxu0 0.0
        %2082 = vmatprep.subr.mxu0 0.0
        %2083 = vmatpush2.msra.mxu0 0.0
        %2084 = vmatprep.subr.mxu0 0.0
        %2085 = vmatpush2.msra.mxu0 0.0
        %2086 = vmatprep.subr.mxu0 0.0
        %2087 = vmatpush2.msra.mxu0 0.0
        %2088 = vmatprep.subr.mxu0 0.0
        %2089 = vmatpush2.msra.mxu0 0.0
        %2090 = vmatprep.subr.mxu0 0.0
        %2091 = vmatpush2.msra.mxu0 0.0
        %2092 = vmatprep.subr.mxu0 0.0
        %2093 = vmatpush2.msra.mxu0 0.0
        %2094 = vmatprep.subr.mxu0 0.0
        %2095 = vmatpush2.msra.mxu0 0.0
        %2096 = vmatprep.subr.mxu0 0.0
        %2097 = vmatpush2.msra.mxu0 0.0
        %2098 = vmatprep.subr.mxu0 0.0
        %2099 = vmatpush2.msra.mxu0 0.0
        %2100 = vmatprep.subr.mxu0 0.0
        %2101 = vmatpush2.msra.mxu0 0.0
        %2102 = vmatprep.mubr.f32.mxu0 0.0
        %2103 = vmatmul.mubr.f32.gmra.mxu0 %v2014
        %v2104 = vpop.f32.mrf.mxu0
        %v2105 = vadd.f32 %v2036, %v2104
        %v2106 = vpop.f32.mrf.mxu0
        %2107 = vdwg.mxu0
        %v2108 = vadd.f32 %v1903, %v2105
        %v2109 = vld [vmem:[%s18] sm:$0x1]
        %v2110 = vld [vmem:[%s19] sm:$0x1]
        %v2111 = vsel %vm1035, %v2108, 0.0
        %2112 = vadd.xlane.f32.xlu0 %v2111
        %v2113 = vpop.xlane.xlu0 %2112
        %v2114 = vmul.f32 %v2113, %v1879
        %v2115 = vsub.f32 %v2108, %v2114
        %v2116 = vmul.f32 %v2115, %v2115
        %v2117 = vsel %vm1035, %v2116, 0.0
        %2118 = vadd.xlane.f32.xlu0 %v2117
        %v2119 = vpop.xlane.xlu0 %2118
        %v2120 = vmul.f32 %v2119, %v1879
        %v2121 = vadd.f32 %v2120, 1e-05
        %v2122 = vrsqrt.pop %v2121
        %v2123 = vmul.f32 %v2115, %v2122
        %v2125 = vlaneseq
        %v2126 = vshrl.u32 %v2125, 7
        %v2127 = vsub.s32 0, %v2126
        %v2128 = vrot.slane %v2109, %v2127
        %v2130 = vmul.f32 %v2123, %v2128
        %v2132 = vlaneseq
        %v2133 = vshrl.u32 %v2132, 7
        %v2134 = vsub.s32 0, %v2133
        %v2135 = vrot.slane %v2110, %v2134
        %v2137 = vadd.f32 %v2130, %v2135
        %s2138 = scalar_lea.vmem %s8, 32
        %v2139 = vld [vmem:[%s2138] sm:$0xff]
        %v2140 = vld [vmem:[%s2138 + $0x8] sm:$0xff]
        %v2141 = vld [vmem:[%s2138 + $0x10] sm:$0xff]
        %v2142 = vld [vmem:[%s2138 + $0x18] sm:$0xff]
        %s2143 = scalar_lea.vmem %s9, 1
        %v2144 = vld [vmem:[%s2143] sm:$0x1]
        %v2146 = vlaneseq
        %v2147 = vshrl.u32 %v2146, 7
        %v2148 = vsub.s32 0, %v2147
        %v2149 = vrot.slane %v2144, %v2148
        %v2152 = vsel %vm1035, %v2137, 0
        %2154 = vmatprep.subr.mxu0 0.0
        %2155 = vmatpush1.msra.mxu0 0.0
        %2156 = vmatprep.subr.mxu0 0.0
        %2157 = vmatpush1.msra.mxu0 0.0
        %2158 = vmatprep.subr.mxu0 0.0
        %2159 = vmatpush1.msra.mxu0 0.0
        %2160 = vmatprep.subr.mxu0 0.0
        %2161 = vmatpush1.msra.mxu0 0.0
        %2162 = vmatprep.subr.mxu0 0.0
        %2163 = vmatpush1.msra.mxu0 0.0
        %2164 = vmatprep.subr.mxu0 0.0
        %2165 = vmatpush1.msra.mxu0 0.0
        %2166 = vmatprep.subr.mxu0 0.0
        %2167 = vmatpush1.msra.mxu0 0.0
        %2168 = vmatprep.subr.mxu0 0.0
        %2169 = vmatpush1.msra.mxu0 0.0
        %2170 = vmatprep.subr.mxu0 0.0
        %2171 = vmatpush1.msra.mxu0 0.0
        %2172 = vmatprep.subr.mxu0 0.0
        %2173 = vmatpush1.msra.mxu0 0.0
        %2174 = vmatprep.subr.mxu0 0.0
        %2175 = vmatpush1.msra.mxu0 0.0
        %2176 = vmatprep.subr.mxu0 0.0
        %2177 = vmatpush1.msra.mxu0 0.0
        %2178 = vmatprep.subr.mxu0 0.0
        %2179 = vmatpush1.msra.mxu0 %v2142
        %2180 = vmatprep.subr.mxu0 0.0
        %2181 = vmatpush1.msra.mxu0 %v2141
        %2182 = vmatprep.subr.mxu0 0.0
        %2183 = vmatpush1.msra.mxu0 %v2140
        %2184 = vmatprep.subr.mxu0 0.0
        %2185 = vmatpush1.msra.mxu0 %v2139
        %2186 = vmatprep.subr.mxu0 0.0
        %2187 = vmatpush2.msra.mxu0 0.0
        %2188 = vmatprep.subr.mxu0 0.0
        %2189 = vmatpush2.msra.mxu0 0.0
        %2190 = vmatprep.subr.mxu0 0.0
        %2191 = vmatpush2.msra.mxu0 0.0
        %2192 = vmatprep.subr.mxu0 0.0
        %2193 = vmatpush2.msra.mxu0 0.0
        %2194 = vmatprep.subr.mxu0 0.0
        %2195 = vmatpush2.msra.mxu0 0.0
        %2196 = vmatprep.subr.mxu0 0.0
        %2197 = vmatpush2.msra.mxu0 0.0
        %2198 = vmatprep.subr.mxu0 0.0
        %2199 = vmatpush2.msra.mxu0 0.0
        %2200 = vmatprep.subr.mxu0 0.0
        %2201 = vmatpush2.msra.mxu0 0.0
        %2202 = vmatprep.subr.mxu0 0.0
        %2203 = vmatpush2.msra.mxu0 0.0
        %2204 = vmatprep.subr.mxu0 0.0
        %2205 = vmatpush2.msra.mxu0 0.0
        %2206 = vmatprep.subr.mxu0 0.0
        %2207 = vmatpush2.msra.mxu0 0.0
        %2208 = vmatprep.subr.mxu0 0.0
        %2209 = vmatpush2.msra.mxu0 0.0
        %2210 = vmatprep.subr.mxu0 0.0
        %2211 = vmatpush2.msra.mxu0 0.0
        %2212 = vmatprep.subr.mxu0 0.0
        %2213 = vmatpush2.msra.mxu0 0.0
        %2214 = vmatprep.subr.mxu0 0.0
        %2215 = vmatpush2.msra.mxu0 0.0
        %2216 = vmatprep.subr.mxu0 0.0
        %2217 = vmatpush2.msra.mxu0 0.0
        %2218 = vmatprep.mubr.f32.mxu0 0.0
        %2219 = vmatmul.mubr.f32.gmra.mxu0 %v2152
        %v2220 = vpop.f32.mrf.mxu0
        %v2221 = vadd.f32 %v2149, %v2220
        %v2222 = vpop.f32.mrf.mxu0
        %2223 = vdwg.mxu0
        %2225 = vrot.lane.b32.xlu0 %v2221, 120
        %v2226 = vpop.permute.xlu0 %2225
        %2227 = vrot.lane.b32.xlu0 %v2221, 112
        %v2228 = vpop.permute.xlu0 %2227
        %2229 = vrot.lane.b32.xlu0 %v2221, 104
        %v2230 = vpop.permute.xlu0 %2229
        %2231 = vrot.lane.b32.xlu0 %v2221, 96
        %v2232 = vpop.permute.xlu0 %2231
        %v2233 = vsel %vm1118, %v2221, 0
        %v2235 = vsel %vm1118, %v2232, 0
        %2237 = vmatprep.subr.mxu0 0.0
        %2238 = vmatpush1.xpose.msra.mxu0 0.0
        %2239 = vmatprep.subr.mxu0 0.0
        %2240 = vmatpush1.xpose.msra.mxu0 0.0
        %2241 = vmatprep.subr.mxu0 0.0
        %2242 = vmatpush1.xpose.msra.mxu0 0.0
        %2243 = vmatprep.subr.mxu0 0.0
        %2244 = vmatpush1.xpose.msra.mxu0 0.0
        %2245 = vmatprep.subr.mxu0 0.0
        %2246 = vmatpush1.xpose.msra.mxu0 0.0
        %2247 = vmatprep.subr.mxu0 0.0
        %2248 = vmatpush1.xpose.msra.mxu0 0.0
        %2249 = vmatprep.subr.mxu0 0.0
        %2250 = vmatpush1.xpose.msra.mxu0 0.0
        %2251 = vmatprep.subr.mxu0 0.0
        %2252 = vmatpush1.xpose.msra.mxu0 0.0
        %2253 = vmatprep.subr.mxu0 0.0
        %2254 = vmatpush1.xpose.msra.mxu0 0.0
        %2255 = vmatprep.subr.mxu0 0.0
        %2256 = vmatpush1.xpose.msra.mxu0 0.0
        %2257 = vmatprep.subr.mxu0 0.0
        %2258 = vmatpush1.xpose.msra.mxu0 0.0
        %2259 = vmatprep.subr.mxu0 0.0
        %2260 = vmatpush1.xpose.msra.mxu0 0.0
        %2261 = vmatprep.subr.mxu0 0.0
        %2262 = vmatpush1.xpose.msra.mxu0 0.0
        %2263 = vmatprep.subr.mxu0 0.0
        %2264 = vmatpush1.xpose.msra.mxu0 0.0
        %2265 = vmatprep.subr.mxu0 0.0
        %2266 = vmatpush1.xpose.msra.mxu0 0.0
        %2267 = vmatprep.subr.mxu0 0.0
        %2268 = vmatpush1.xpose.msra.mxu0 %v2235
        %2269 = vmatprep.subr.mxu0 0.0
        %2270 = vmatpush2.xpose.msra.mxu0 0.0
        %2271 = vmatprep.subr.mxu0 0.0
        %2272 = vmatpush2.xpose.msra.mxu0 0.0
        %2273 = vmatprep.subr.mxu0 0.0
        %2274 = vmatpush2.xpose.msra.mxu0 0.0
        %2275 = vmatprep.subr.mxu0 0.0
        %2276 = vmatpush2.xpose.msra.mxu0 0.0
        %2277 = vmatprep.subr.mxu0 0.0
        %2278 = vmatpush2.xpose.msra.mxu0 0.0
        %2279 = vmatprep.subr.mxu0 0.0
        %2280 = vmatpush2.xpose.msra.mxu0 0.0
        %2281 = vmatprep.subr.mxu0 0.0
        %2282 = vmatpush2.xpose.msra.mxu0 0.0
        %2283 = vmatprep.subr.mxu0 0.0
        %2284 = vmatpush2.xpose.msra.mxu0 0.0
        %2285 = vmatprep.subr.mxu0 0.0
        %2286 = vmatpush2.xpose.msra.mxu0 0.0
        %2287 = vmatprep.subr.mxu0 0.0
        %2288 = vmatpush2.xpose.msra.mxu0 0.0
        %2289 = vmatprep.subr.mxu0 0.0
        %2290 = vmatpush2.xpose.msra.mxu0 0.0
        %2291 = vmatprep.subr.mxu0 0.0
        %2292 = vmatpush2.xpose.msra.mxu0 0.0
        %2293 = vmatprep.subr.mxu0 0.0
        %2294 = vmatpush2.xpose.msra.mxu0 0.0
        %2295 = vmatprep.subr.mxu0 0.0
        %2296 = vmatpush2.xpose.msra.mxu0 0.0
        %2297 = vmatprep.subr.mxu0 0.0
        %2298 = vmatpush2.xpose.msra.mxu0 0.0
        %2299 = vmatprep.subr.mxu0 0.0
        %2300 = vmatpush2.xpose.msra.mxu0 0.0
        %2301 = vmatprep.mubr.f32.mxu0 0.0
        %2302 = vmatmul.mubr.f32.gmra.mxu0 %v2233
        %v2303 = vpop.f32.mrf.mxu0
        %v2304 = vadd.f32 0.0, %v2303
        %v2305 = vpop.f32.mrf.mxu0
        %2306 = vdwg.mxu0
        %2307 = vrot.lane.b32.xlu0 %v2226, 96
        %v2308 = vpop.permute.xlu0 %2307
        %v2309 = vsel %vm1118, %v2226, 0
        %v2311 = vsel %vm1118, %v2308, 0
        %2313 = vmatprep.subr.mxu0 0.0
        %2314 = vmatpush1.xpose.msra.mxu0 0.0
        %2315 = vmatprep.subr.mxu0 0.0
        %2316 = vmatpush1.xpose.msra.mxu0 0.0
        %2317 = vmatprep.subr.mxu0 0.0
        %2318 = vmatpush1.xpose.msra.mxu0 0.0
        %2319 = vmatprep.subr.mxu0 0.0
        %2320 = vmatpush1.xpose.msra.mxu0 0.0
        %2321 = vmatprep.subr.mxu0 0.0
        %2322 = vmatpush1.xpose.msra.mxu0 0.0
        %2323 = vmatprep.subr.mxu0 0.0
        %2324 = vmatpush1.xpose.msra.mxu0 0.0
        %2325 = vmatprep.subr.mxu0 0.0
        %2326 = vmatpush1.xpose.msra.mxu0 0.0
        %2327 = vmatprep.subr.mxu0 0.0
        %2328 = vmatpush1.xpose.msra.mxu0 0.0
        %2329 = vmatprep.subr.mxu0 0.0
        %2330 = vmatpush1.xpose.msra.mxu0 0.0
        %2331 = vmatprep.subr.mxu0 0.0
        %2332 = vmatpush1.xpose.msra.mxu0 0.0
        %2333 = vmatprep.subr.mxu0 0.0
        %2334 = vmatpush1.xpose.msra.mxu0 0.0
        %2335 = vmatprep.subr.mxu0 0.0
        %2336 = vmatpush1.xpose.msra.mxu0 0.0
        %2337 = vmatprep.subr.mxu0 0.0
        %2338 = vmatpush1.xpose.msra.mxu0 0.0
        %2339 = vmatprep.subr.mxu0 0.0
        %2340 = vmatpush1.xpose.msra.mxu0 0.0
        %2341 = vmatprep.subr.mxu0 0.0
        %2342 = vmatpush1.xpose.msra.mxu0 0.0
        %2343 = vmatprep.subr.mxu0 0.0
        %2344 = vmatpush1.xpose.msra.mxu0 %v2311
        %2345 = vmatprep.subr.mxu0 0.0
        %2346 = vmatpush2.xpose.msra.mxu0 0.0
        %2347 = vmatprep.subr.mxu0 0.0
        %2348 = vmatpush2.xpose.msra.mxu0 0.0
        %2349 = vmatprep.subr.mxu0 0.0
        %2350 = vmatpush2.xpose.msra.mxu0 0.0
        %2351 = vmatprep.subr.mxu0 0.0
        %2352 = vmatpush2.xpose.msra.mxu0 0.0
        %2353 = vmatprep.subr.mxu0 0.0
        %2354 = vmatpush2.xpose.msra.mxu0 0.0
        %2355 = vmatprep.subr.mxu0 0.0
        %2356 = vmatpush2.xpose.msra.mxu0 0.0
        %2357 = vmatprep.subr.mxu0 0.0
        %2358 = vmatpush2.xpose.msra.mxu0 0.0
        %2359 = vmatprep.subr.mxu0 0.0
        %2360 = vmatpush2.xpose.msra.mxu0 0.0
        %2361 = vmatprep.subr.mxu0 0.0
        %2362 = vmatpush2.xpose.msra.mxu0 0.0
        %2363 = vmatprep.subr.mxu0 0.0
        %2364 = vmatpush2.xpose.msra.mxu0 0.0
        %2365 = vmatprep.subr.mxu0 0.0
        %2366 = vmatpush2.xpose.msra.mxu0 0.0
        %2367 = vmatprep.subr.mxu0 0.0
        %2368 = vmatpush2.xpose.msra.mxu0 0.0
        %2369 = vmatprep.subr.mxu0 0.0
        %2370 = vmatpush2.xpose.msra.mxu0 0.0
        %2371 = vmatprep.subr.mxu0 0.0
        %2372 = vmatpush2.xpose.msra.mxu0 0.0
        %2373 = vmatprep.subr.mxu0 0.0
        %2374 = vmatpush2.xpose.msra.mxu0 0.0
        %2375 = vmatprep.subr.mxu0 0.0
        %2376 = vmatpush2.xpose.msra.mxu0 0.0
        %2377 = vmatprep.mubr.f32.mxu0 0.0
        %2378 = vmatmul.mubr.f32.gmra.mxu0 %v2309
        %v2379 = vpop.f32.mrf.mxu0
        %v2380 = vadd.f32 0.0, %v2379
        %v2381 = vpop.f32.mrf.mxu0
        %2382 = vdwg.mxu0
        %2383 = vrot.lane.b32.xlu0 %v2228, 96
        %v2384 = vpop.permute.xlu0 %2383
        %v2385 = vsel %vm1118, %v2228, 0
        %v2387 = vsel %vm1118, %v2384, 0
        %2389 = vmatprep.subr.mxu0 0.0
        %2390 = vmatpush1.xpose.msra.mxu0 0.0
        %2391 = vmatprep.subr.mxu0 0.0
        %2392 = vmatpush1.xpose.msra.mxu0 0.0
        %2393 = vmatprep.subr.mxu0 0.0
        %2394 = vmatpush1.xpose.msra.mxu0 0.0
        %2395 = vmatprep.subr.mxu0 0.0
        %2396 = vmatpush1.xpose.msra.mxu0 0.0
        %2397 = vmatprep.subr.mxu0 0.0
        %2398 = vmatpush1.xpose.msra.mxu0 0.0
        %2399 = vmatprep.subr.mxu0 0.0
        %2400 = vmatpush1.xpose.msra.mxu0 0.0
        %2401 = vmatprep.subr.mxu0 0.0
        %2402 = vmatpush1.xpose.msra.mxu0 0.0
        %2403 = vmatprep.subr.mxu0 0.0
        %2404 = vmatpush1.xpose.msra.mxu0 0.0
        %2405 = vmatprep.subr.mxu0 0.0
        %2406 = vmatpush1.xpose.msra.mxu0 0.0
        %2407 = vmatprep.subr.mxu0 0.0
        %2408 = vmatpush1.xpose.msra.mxu0 0.0
        %2409 = vmatprep.subr.mxu0 0.0
        %2410 = vmatpush1.xpose.msra.mxu0 0.0
        %2411 = vmatprep.subr.mxu0 0.0
        %2412 = vmatpush1.xpose.msra.mxu0 0.0
        %2413 = vmatprep.subr.mxu0 0.0
        %2414 = vmatpush1.xpose.msra.mxu0 0.0
        %2415 = vmatprep.subr.mxu0 0.0
        %2416 = vmatpush1.xpose.msra.mxu0 0.0
        %2417 = vmatprep.subr.mxu0 0.0
        %2418 = vmatpush1.xpose.msra.mxu0 0.0
        %2419 = vmatprep.subr.mxu0 0.0
        %2420 = vmatpush1.xpose.msra.mxu0 %v2387
        %2421 = vmatprep.subr.mxu0 0.0
        %2422 = vmatpush2.xpose.msra.mxu0 0.0
        %2423 = vmatprep.subr.mxu0 0.0
        %2424 = vmatpush2.xpose.msra.mxu0 0.0
        %2425 = vmatprep.subr.mxu0 0.0
        %2426 = vmatpush2.xpose.msra.mxu0 0.0
        %2427 = vmatprep.subr.mxu0 0.0
        %2428 = vmatpush2.xpose.msra.mxu0 0.0
        %2429 = vmatprep.subr.mxu0 0.0
        %2430 = vmatpush2.xpose.msra.mxu0 0.0
        %2431 = vmatprep.subr.mxu0 0.0
        %2432 = vmatpush2.xpose.msra.mxu0 0.0
        %2433 = vmatprep.subr.mxu0 0.0
        %2434 = vmatpush2.xpose.msra.mxu0 0.0
        %2435 = vmatprep.subr.mxu0 0.0
        %2436 = vmatpush2.xpose.msra.mxu0 0.0
        %2437 = vmatprep.subr.mxu0 0.0
        %2438 = vmatpush2.xpose.msra.mxu0 0.0
        %2439 = vmatprep.subr.mxu0 0.0
        %2440 = vmatpush2.xpose.msra.mxu0 0.0
        %2441 = vmatprep.subr.mxu0 0.0
        %2442 = vmatpush2.xpose.msra.mxu0 0.0
        %2443 = vmatprep.subr.mxu0 0.0
        %2444 = vmatpush2.xpose.msra.mxu0 0.0
        %2445 = vmatprep.subr.mxu0 0.0
        %2446 = vmatpush2.xpose.msra.mxu0 0.0
        %2447 = vmatprep.subr.mxu0 0.0
        %2448 = vmatpush2.xpose.msra.mxu0 0.0
        %2449 = vmatprep.subr.mxu0 0.0
        %2450 = vmatpush2.xpose.msra.mxu0 0.0
        %2451 = vmatprep.subr.mxu0 0.0
        %2452 = vmatpush2.xpose.msra.mxu0 0.0
        %2453 = vmatprep.mubr.f32.mxu0 0.0
        %2454 = vmatmul.mubr.f32.gmra.mxu0 %v2385
        %v2455 = vpop.f32.mrf.mxu0
        %v2456 = vadd.f32 0.0, %v2455
        %v2457 = vpop.f32.mrf.mxu0
        %2458 = vdwg.mxu0
        %2459 = vrot.lane.b32.xlu0 %v2230, 96
        %v2460 = vpop.permute.xlu0 %2459
        %v2461 = vsel %vm1118, %v2230, 0
        %v2463 = vsel %vm1118, %v2460, 0
        %2465 = vmatprep.subr.mxu0 0.0
        %2466 = vmatpush1.xpose.msra.mxu0 0.0
        %2467 = vmatprep.subr.mxu0 0.0
        %2468 = vmatpush1.xpose.msra.mxu0 0.0
        %2469 = vmatprep.subr.mxu0 0.0
        %2470 = vmatpush1.xpose.msra.mxu0 0.0
        %2471 = vmatprep.subr.mxu0 0.0
        %2472 = vmatpush1.xpose.msra.mxu0 0.0
        %2473 = vmatprep.subr.mxu0 0.0
        %2474 = vmatpush1.xpose.msra.mxu0 0.0
        %2475 = vmatprep.subr.mxu0 0.0
        %2476 = vmatpush1.xpose.msra.mxu0 0.0
        %2477 = vmatprep.subr.mxu0 0.0
        %2478 = vmatpush1.xpose.msra.mxu0 0.0
        %2479 = vmatprep.subr.mxu0 0.0
        %2480 = vmatpush1.xpose.msra.mxu0 0.0
        %2481 = vmatprep.subr.mxu0 0.0
        %2482 = vmatpush1.xpose.msra.mxu0 0.0
        %2483 = vmatprep.subr.mxu0 0.0
        %2484 = vmatpush1.xpose.msra.mxu0 0.0
        %2485 = vmatprep.subr.mxu0 0.0
        %2486 = vmatpush1.xpose.msra.mxu0 0.0
        %2487 = vmatprep.subr.mxu0 0.0
        %2488 = vmatpush1.xpose.msra.mxu0 0.0
        %2489 = vmatprep.subr.mxu0 0.0
        %2490 = vmatpush1.xpose.msra.mxu0 0.0
        %2491 = vmatprep.subr.mxu0 0.0
        %2492 = vmatpush1.xpose.msra.mxu0 0.0
        %2493 = vmatprep.subr.mxu0 0.0
        %2494 = vmatpush1.xpose.msra.mxu0 0.0
        %2495 = vmatprep.subr.mxu0 0.0
        %2496 = vmatpush1.xpose.msra.mxu0 %v2463
        %2497 = vmatprep.subr.mxu0 0.0
        %2498 = vmatpush2.xpose.msra.mxu0 0.0
        %2499 = vmatprep.subr.mxu0 0.0
        %2500 = vmatpush2.xpose.msra.mxu0 0.0
        %2501 = vmatprep.subr.mxu0 0.0
        %2502 = vmatpush2.xpose.msra.mxu0 0.0
        %2503 = vmatprep.subr.mxu0 0.0
        %2504 = vmatpush2.xpose.msra.mxu0 0.0
        %2505 = vmatprep.subr.mxu0 0.0
        %2506 = vmatpush2.xpose.msra.mxu0 0.0
        %2507 = vmatprep.subr.mxu0 0.0
        %2508 = vmatpush2.xpose.msra.mxu0 0.0
        %2509 = vmatprep.subr.mxu0 0.0
        %2510 = vmatpush2.xpose.msra.mxu0 0.0
        %2511 = vmatprep.subr.mxu0 0.0
        %2512 = vmatpush2.xpose.msra.mxu0 0.0
        %2513 = vmatprep.subr.mxu0 0.0
        %2514 = vmatpush2.xpose.msra.mxu0 0.0
        %2515 = vmatprep.subr.mxu0 0.0
        %2516 = vmatpush2.xpose.msra.mxu0 0.0
        %2517 = vmatprep.subr.mxu0 0.0
        %2518 = vmatpush2.xpose.msra.mxu0 0.0
        %2519 = vmatprep.subr.mxu0 0.0
        %2520 = vmatpush2.xpose.msra.mxu0 0.0
        %2521 = vmatprep.subr.mxu0 0.0
        %2522 = vmatpush2.xpose.msra.mxu0 0.0
        %2523 = vmatprep.subr.mxu0 0.0
        %2524 = vmatpush2.xpose.msra.mxu0 0.0
        %2525 = vmatprep.subr.mxu0 0.0
        %2526 = vmatpush2.xpose.msra.mxu0 0.0
        %2527 = vmatprep.subr.mxu0 0.0
        %2528 = vmatpush2.xpose.msra.mxu0 0.0
        %2529 = vmatprep.mubr.f32.mxu0 0.0
        %2530 = vmatmul.mubr.f32.gmra.mxu0 %v2461
        %v2531 = vpop.f32.mrf.mxu0
        %v2532 = vadd.f32 0.0, %v2531
        %v2533 = vpop.f32.mrf.mxu0
        %2534 = vdwg.mxu0
        %v2535 = vmul.f32 %v2304, 0.35355338
        %v2536 = vmul.f32 %v2380, 0.35355338
        %v2537 = vmul.f32 %v2456, 0.35355338
        %v2538 = vmul.f32 %v2532, 0.35355338
        %v2539 = vsel %vm1118, %v2535, -inf
        %2540 = vmax.xlane.f32.xlu0 %v2539
        %v2541 = vpop.xlane.xlu0 %2540
        %v2542 = vsel %vm1118, %v2536, -inf
        %2543 = vmax.xlane.f32.xlu0 %v2542
        %v2544 = vpop.xlane.xlu0 %2543
        %v2545 = vsel %vm1118, %v2537, -inf
        %2546 = vmax.xlane.f32.xlu0 %v2545
        %v2547 = vpop.xlane.xlu0 %2546
        %v2548 = vsel %vm1118, %v2538, -inf
        %2549 = vmax.xlane.f32.xlu0 %v2548
        %v2550 = vpop.xlane.xlu0 %2549
        %v2551 = vsub.f32 %v2535, %v2541
        %v2552 = vsub.f32 %v2536, %v2544
        %v2553 = vsub.f32 %v2537, %v2547
        %v2554 = vsub.f32 %v2538, %v2550
        %v2555 = vmul.f32 %v2551, 1.442695
        %v2556 = vpow.pop %v2555
        %v2557 = vmul.f32 %v2552, 1.442695
        %v2558 = vpow.pop %v2557
        %v2559 = vmul.f32 %v2553, 1.442695
        %v2560 = vpow.pop %v2559
        %v2561 = vmul.f32 %v2554, 1.442695
        %v2562 = vpow.pop %v2561
        %v2563 = vsel %vm1118, %v2556, 0.0
        %2564 = vadd.xlane.f32.xlu0 %v2563
        %v2565 = vpop.xlane.xlu0 %2564
        %v2566 = vsel %vm1118, %v2558, 0.0
        %2567 = vadd.xlane.f32.xlu0 %v2566
        %v2568 = vpop.xlane.xlu0 %2567
        %v2569 = vsel %vm1118, %v2560, 0.0
        %2570 = vadd.xlane.f32.xlu0 %v2569
        %v2571 = vpop.xlane.xlu0 %2570
        %v2572 = vsel %vm1118, %v2562, 0.0
        %2573 = vadd.xlane.f32.xlu0 %v2572
        %v2574 = vpop.xlane.xlu0 %2573
        %2575 = vrot.lane.b32.xlu0 %v2221, 64
        %v2576 = vpop.permute.xlu0 %2575
        %v2579 = vsel %vm1118, %v2556, 0
        %2581 = vmatprep.subr.mxu0 0.0
        %2582 = vmatpush1.msra.mxu0 0.0
        %2583 = vmatprep.subr.mxu0 0.0
        %2584 = vmatpush1.msra.mxu0 0.0
        %2585 = vmatprep.subr.mxu0 0.0
        %2586 = vmatpush1.msra.mxu0 0.0
        %2587 = vmatprep.subr.mxu0 0.0
        %2588 = vmatpush1.msra.mxu0 0.0
        %2589 = vmatprep.subr.mxu0 0.0
        %2590 = vmatpush1.msra.mxu0 0.0
        %2591 = vmatprep.subr.mxu0 0.0
        %2592 = vmatpush1.msra.mxu0 0.0
        %2593 = vmatprep.subr.mxu0 0.0
        %2594 = vmatpush1.msra.mxu0 0.0
        %2595 = vmatprep.subr.mxu0 0.0
        %2596 = vmatpush1.msra.mxu0 0.0
        %2597 = vmatprep.subr.mxu0 0.0
        %2598 = vmatpush1.msra.mxu0 0.0
        %2599 = vmatprep.subr.mxu0 0.0
        %2600 = vmatpush1.msra.mxu0 0.0
        %2601 = vmatprep.subr.mxu0 0.0
        %2602 = vmatpush1.msra.mxu0 0.0
        %2603 = vmatprep.subr.mxu0 0.0
        %2604 = vmatpush1.msra.mxu0 0.0
        %2605 = vmatprep.subr.mxu0 0.0
        %2606 = vmatpush1.msra.mxu0 0.0
        %2607 = vmatprep.subr.mxu0 0.0
        %2608 = vmatpush1.msra.mxu0 0.0
        %2609 = vmatprep.subr.mxu0 0.0
        %2610 = vmatpush1.msra.mxu0 0.0
        %2611 = vmatprep.subr.mxu0 0.0
        %2612 = vmatpush1.msra.mxu0 %v2576
        %2613 = vmatprep.subr.mxu0 0.0
        %2614 = vmatpush2.msra.mxu0 0.0
        %2615 = vmatprep.subr.mxu0 0.0
        %2616 = vmatpush2.msra.mxu0 0.0
        %2617 = vmatprep.subr.mxu0 0.0
        %2618 = vmatpush2.msra.mxu0 0.0
        %2619 = vmatprep.subr.mxu0 0.0
        %2620 = vmatpush2.msra.mxu0 0.0
        %2621 = vmatprep.subr.mxu0 0.0
        %2622 = vmatpush2.msra.mxu0 0.0
        %2623 = vmatprep.subr.mxu0 0.0
        %2624 = vmatpush2.msra.mxu0 0.0
        %2625 = vmatprep.subr.mxu0 0.0
        %2626 = vmatpush2.msra.mxu0 0.0
        %2627 = vmatprep.subr.mxu0 0.0
        %2628 = vmatpush2.msra.mxu0 0.0
        %2629 = vmatprep.subr.mxu0 0.0
        %2630 = vmatpush2.msra.mxu0 0.0
        %2631 = vmatprep.subr.mxu0 0.0
        %2632 = vmatpush2.msra.mxu0 0.0
        %2633 = vmatprep.subr.mxu0 0.0
        %2634 = vmatpush2.msra.mxu0 0.0
        %2635 = vmatprep.subr.mxu0 0.0
        %2636 = vmatpush2.msra.mxu0 0.0
        %2637 = vmatprep.subr.mxu0 0.0
        %2638 = vmatpush2.msra.mxu0 0.0
        %2639 = vmatprep.subr.mxu0 0.0
        %2640 = vmatpush2.msra.mxu0 0.0
        %2641 = vmatprep.subr.mxu0 0.0
        %2642 = vmatpush2.msra.mxu0 0.0
        %2643 = vmatprep.subr.mxu0 0.0
        %2644 = vmatpush2.msra.mxu0 0.0
        %2645 = vmatprep.mubr.f32.mxu0 0.0
        %2646 = vmatmul.mubr.f32.gmra.mxu0 %v2579
        %v2647 = vpop.f32.mrf.mxu0
        %v2648 = vadd.f32 0.0, %v2647
        %v2649 = vpop.f32.mrf.mxu0
        %2650 = vdwg.mxu0
        %2651 = vrot.lane.b32.xlu0 %v2226, 64
        %v2652 = vpop.permute.xlu0 %2651
        %v2655 = vsel %vm1118, %v2558, 0
        %2657 = vmatprep.subr.mxu0 0.0
        %2658 = vmatpush1.msra.mxu0 0.0
        %2659 = vmatprep.subr.mxu0 0.0
        %2660 = vmatpush1.msra.mxu0 0.0
        %2661 = vmatprep.subr.mxu0 0.0
        %2662 = vmatpush1.msra.mxu0 0.0
        %2663 = vmatprep.subr.mxu0 0.0
        %2664 = vmatpush1.msra.mxu0 0.0
        %2665 = vmatprep.subr.mxu0 0.0
        %2666 = vmatpush1.msra.mxu0 0.0
        %2667 = vmatprep.subr.mxu0 0.0
        %2668 = vmatpush1.msra.mxu0 0.0
        %2669 = vmatprep.subr.mxu0 0.0
        %2670 = vmatpush1.msra.mxu0 0.0
        %2671 = vmatprep.subr.mxu0 0.0
        %2672 = vmatpush1.msra.mxu0 0.0
        %2673 = vmatprep.subr.mxu0 0.0
        %2674 = vmatpush1.msra.mxu0 0.0
        %2675 = vmatprep.subr.mxu0 0.0
        %2676 = vmatpush1.msra.mxu0 0.0
        %2677 = vmatprep.subr.mxu0 0.0
        %2678 = vmatpush1.msra.mxu0 0.0
        %2679 = vmatprep.subr.mxu0 0.0
        %2680 = vmatpush1.msra.mxu0 0.0
        %2681 = vmatprep.subr.mxu0 0.0
        %2682 = vmatpush1.msra.mxu0 0.0
        %2683 = vmatprep.subr.mxu0 0.0
        %2684 = vmatpush1.msra.mxu0 0.0
        %2685 = vmatprep.subr.mxu0 0.0
        %2686 = vmatpush1.msra.mxu0 0.0
        %2687 = vmatprep.subr.mxu0 0.0
        %2688 = vmatpush1.msra.mxu0 %v2652
        %2689 = vmatprep.subr.mxu0 0.0
        %2690 = vmatpush2.msra.mxu0 0.0
        %2691 = vmatprep.subr.mxu0 0.0
        %2692 = vmatpush2.msra.mxu0 0.0
        %2693 = vmatprep.subr.mxu0 0.0
        %2694 = vmatpush2.msra.mxu0 0.0
        %2695 = vmatprep.subr.mxu0 0.0
        %2696 = vmatpush2.msra.mxu0 0.0
        %2697 = vmatprep.subr.mxu0 0.0
        %2698 = vmatpush2.msra.mxu0 0.0
        %2699 = vmatprep.subr.mxu0 0.0
        %2700 = vmatpush2.msra.mxu0 0.0
        %2701 = vmatprep.subr.mxu0 0.0
        %2702 = vmatpush2.msra.mxu0 0.0
        %2703 = vmatprep.subr.mxu0 0.0
        %2704 = vmatpush2.msra.mxu0 0.0
        %2705 = vmatprep.subr.mxu0 0.0
        %2706 = vmatpush2.msra.mxu0 0.0
        %2707 = vmatprep.subr.mxu0 0.0
        %2708 = vmatpush2.msra.mxu0 0.0
        %2709 = vmatprep.subr.mxu0 0.0
        %2710 = vmatpush2.msra.mxu0 0.0
        %2711 = vmatprep.subr.mxu0 0.0
        %2712 = vmatpush2.msra.mxu0 0.0
        %2713 = vmatprep.subr.mxu0 0.0
        %2714 = vmatpush2.msra.mxu0 0.0
        %2715 = vmatprep.subr.mxu0 0.0
        %2716 = vmatpush2.msra.mxu0 0.0
        %2717 = vmatprep.subr.mxu0 0.0
        %2718 = vmatpush2.msra.mxu0 0.0
        %2719 = vmatprep.subr.mxu0 0.0
        %2720 = vmatpush2.msra.mxu0 0.0
        %2721 = vmatprep.mubr.f32.mxu0 0.0
        %2722 = vmatmul.mubr.f32.gmra.mxu0 %v2655
        %v2723 = vpop.f32.mrf.mxu0
        %v2724 = vadd.f32 0.0, %v2723
        %v2725 = vpop.f32.mrf.mxu0
        %2726 = vdwg.mxu0
        %2727 = vrot.lane.b32.xlu0 %v2228, 64
        %v2728 = vpop.permute.xlu0 %2727
        %v2731 = vsel %vm1118, %v2560, 0
        %2733 = vmatprep.subr.mxu0 0.0
        %2734 = vmatpush1.msra.mxu0 0.0
        %2735 = vmatprep.subr.mxu0 0.0
        %2736 = vmatpush1.msra.mxu0 0.0
        %2737 = vmatprep.subr.mxu0 0.0
        %2738 = vmatpush1.msra.mxu0 0.0
        %2739 = vmatprep.subr.mxu0 0.0
        %2740 = vmatpush1.msra.mxu0 0.0
        %2741 = vmatprep.subr.mxu0 0.0
        %2742 = vmatpush1.msra.mxu0 0.0
        %2743 = vmatprep.subr.mxu0 0.0
        %2744 = vmatpush1.msra.mxu0 0.0
        %2745 = vmatprep.subr.mxu0 0.0
        %2746 = vmatpush1.msra.mxu0 0.0
        %2747 = vmatprep.subr.mxu0 0.0
        %2748 = vmatpush1.msra.mxu0 0.0
        %2749 = vmatprep.subr.mxu0 0.0
        %2750 = vmatpush1.msra.mxu0 0.0
        %2751 = vmatprep.subr.mxu0 0.0
        %2752 = vmatpush1.msra.mxu0 0.0
        %2753 = vmatprep.subr.mxu0 0.0
        %2754 = vmatpush1.msra.mxu0 0.0
        %2755 = vmatprep.subr.mxu0 0.0
        %2756 = vmatpush1.msra.mxu0 0.0
        %2757 = vmatprep.subr.mxu0 0.0
        %2758 = vmatpush1.msra.mxu0 0.0
        %2759 = vmatprep.subr.mxu0 0.0
        %2760 = vmatpush1.msra.mxu0 0.0
        %2761 = vmatprep.subr.mxu0 0.0
        %2762 = vmatpush1.msra.mxu0 0.0
        %2763 = vmatprep.subr.mxu0 0.0
        %2764 = vmatpush1.msra.mxu0 %v2728
        %2765 = vmatprep.subr.mxu0 0.0
        %2766 = vmatpush2.msra.mxu0 0.0
        %2767 = vmatprep.subr.mxu0 0.0
        %2768 = vmatpush2.msra.mxu0 0.0
        %2769 = vmatprep.subr.mxu0 0.0
        %2770 = vmatpush2.msra.mxu0 0.0
        %2771 = vmatprep.subr.mxu0 0.0
        %2772 = vmatpush2.msra.mxu0 0.0
        %2773 = vmatprep.subr.mxu0 0.0
        %2774 = vmatpush2.msra.mxu0 0.0
        %2775 = vmatprep.subr.mxu0 0.0
        %2776 = vmatpush2.msra.mxu0 0.0
        %2777 = vmatprep.subr.mxu0 0.0
        %2778 = vmatpush2.msra.mxu0 0.0
        %2779 = vmatprep.subr.mxu0 0.0
        %2780 = vmatpush2.msra.mxu0 0.0
        %2781 = vmatprep.subr.mxu0 0.0
        %2782 = vmatpush2.msra.mxu0 0.0
        %2783 = vmatprep.subr.mxu0 0.0
        %2784 = vmatpush2.msra.mxu0 0.0
        %2785 = vmatprep.subr.mxu0 0.0
        %2786 = vmatpush2.msra.mxu0 0.0
        %2787 = vmatprep.subr.mxu0 0.0
        %2788 = vmatpush2.msra.mxu0 0.0
        %2789 = vmatprep.subr.mxu0 0.0
        %2790 = vmatpush2.msra.mxu0 0.0
        %2791 = vmatprep.subr.mxu0 0.0
        %2792 = vmatpush2.msra.mxu0 0.0
        %2793 = vmatprep.subr.mxu0 0.0
        %2794 = vmatpush2.msra.mxu0 0.0
        %2795 = vmatprep.subr.mxu0 0.0
        %2796 = vmatpush2.msra.mxu0 0.0
        %2797 = vmatprep.mubr.f32.mxu0 0.0
        %2798 = vmatmul.mubr.f32.gmra.mxu0 %v2731
        %v2799 = vpop.f32.mrf.mxu0
        %v2800 = vadd.f32 0.0, %v2799
        %v2801 = vpop.f32.mrf.mxu0
        %2802 = vdwg.mxu0
        %2803 = vrot.lane.b32.xlu0 %v2230, 64
        %v2804 = vpop.permute.xlu0 %2803
        %v2807 = vsel %vm1118, %v2562, 0
        %2809 = vmatprep.subr.mxu0 0.0
        %2810 = vmatpush1.msra.mxu0 0.0
        %2811 = vmatprep.subr.mxu0 0.0
        %2812 = vmatpush1.msra.mxu0 0.0
        %2813 = vmatprep.subr.mxu0 0.0
        %2814 = vmatpush1.msra.mxu0 0.0
        %2815 = vmatprep.subr.mxu0 0.0
        %2816 = vmatpush1.msra.mxu0 0.0
        %2817 = vmatprep.subr.mxu0 0.0
        %2818 = vmatpush1.msra.mxu0 0.0
        %2819 = vmatprep.subr.mxu0 0.0
        %2820 = vmatpush1.msra.mxu0 0.0
        %2821 = vmatprep.subr.mxu0 0.0
        %2822 = vmatpush1.msra.mxu0 0.0
        %2823 = vmatprep.subr.mxu0 0.0
        %2824 = vmatpush1.msra.mxu0 0.0
        %2825 = vmatprep.subr.mxu0 0.0
        %2826 = vmatpush1.msra.mxu0 0.0
        %2827 = vmatprep.subr.mxu0 0.0
        %2828 = vmatpush1.msra.mxu0 0.0
        %2829 = vmatprep.subr.mxu0 0.0
        %2830 = vmatpush1.msra.mxu0 0.0
        %2831 = vmatprep.subr.mxu0 0.0
        %2832 = vmatpush1.msra.mxu0 0.0
        %2833 = vmatprep.subr.mxu0 0.0
        %2834 = vmatpush1.msra.mxu0 0.0
        %2835 = vmatprep.subr.mxu0 0.0
        %2836 = vmatpush1.msra.mxu0 0.0
        %2837 = vmatprep.subr.mxu0 0.0
        %2838 = vmatpush1.msra.mxu0 0.0
        %2839 = vmatprep.subr.mxu0 0.0
        %2840 = vmatpush1.msra.mxu0 %v2804
        %2841 = vmatprep.subr.mxu0 0.0
        %2842 = vmatpush2.msra.mxu0 0.0
        %2843 = vmatprep.subr.mxu0 0.0
        %2844 = vmatpush2.msra.mxu0 0.0
        %2845 = vmatprep.subr.mxu0 0.0
        %2846 = vmatpush2.msra.mxu0 0.0
        %2847 = vmatprep.subr.mxu0 0.0
        %2848 = vmatpush2.msra.mxu0 0.0
        %2849 = vmatprep.subr.mxu0 0.0
        %2850 = vmatpush2.msra.mxu0 0.0
        %2851 = vmatprep.subr.mxu0 0.0
        %2852 = vmatpush2.msra.mxu0 0.0
        %2853 = vmatprep.subr.mxu0 0.0
        %2854 = vmatpush2.msra.mxu0 0.0
        %2855 = vmatprep.subr.mxu0 0.0
        %2856 = vmatpush2.msra.mxu0 0.0
        %2857 = vmatprep.subr.mxu0 0.0
        %2858 = vmatpush2.msra.mxu0 0.0
        %2859 = vmatprep.subr.mxu0 0.0
        %2860 = vmatpush2.msra.mxu0 0.0
        %2861 = vmatprep.subr.mxu0 0.0
        %2862 = vmatpush2.msra.mxu0 0.0
        %2863 = vmatprep.subr.mxu0 0.0
        %2864 = vmatpush2.msra.mxu0 0.0
        %2865 = vmatprep.subr.mxu0 0.0
        %2866 = vmatpush2.msra.mxu0 0.0
        %2867 = vmatprep.subr.mxu0 0.0
        %2868 = vmatpush2.msra.mxu0 0.0
        %2869 = vmatprep.subr.mxu0 0.0
        %2870 = vmatpush2.msra.mxu0 0.0
        %2871 = vmatprep.subr.mxu0 0.0
        %2872 = vmatpush2.msra.mxu0 0.0
        %2873 = vmatprep.mubr.f32.mxu0 0.0
        %2874 = vmatmul.mubr.f32.gmra.mxu0 %v2807
        %v2875 = vpop.f32.mrf.mxu0
        %v2876 = vadd.f32 0.0, %v2875
        %v2877 = vpop.f32.mrf.mxu0
        %2878 = vdwg.mxu0
        %v2879 = vrcp.pop %v2565
        %v2880 = vrcp.pop %v2568
        %v2881 = vrcp.pop %v2571
        %v2882 = vrcp.pop %v2574
        %v2883 = vmul.f32 %v2648, %v2879
        %v2884 = vmul.f32 %v2724, %v2880
        %v2885 = vmul.f32 %v2800, %v2881
        %v2886 = vmul.f32 %v2876, %v2882
        %2888 = vrot.lane.b32.xlu0 %v2884, 8
        %v2889 = vpop.permute.xlu0 %2888
        %2892 = vrot.lane.b32.xlu0 %v2885, 16
        %v2893 = vpop.permute.xlu0 %2892
        %2896 = vrot.lane.b32.xlu0 %v2886, 24
        %v2897 = vpop.permute.xlu0 %2896
        %v2899 = vsel %vm1118, %v2883, %v2889
        %v2900 = vsel %vm841, %v2899, %v2893
        %v2901 = vsel %vm1787, %v2900, %v2897
        %s2902 = scalar_lea.vmem %s10, 32
        %v2903 = vld [vmem:[%s2902] sm:$0xff]
        %v2904 = vld [vmem:[%s2902 + $0x8] sm:$0xff]
        %v2905 = vld [vmem:[%s2902 + $0x10] sm:$0xff]
        %v2906 = vld [vmem:[%s2902 + $0x18] sm:$0xff]
        %s2907 = scalar_lea.vmem %s11, 1
        %v2908 = vld [vmem:[%s2907] sm:$0x1]
        %v2910 = vlaneseq
        %v2911 = vshrl.u32 %v2910, 7
        %v2912 = vsub.s32 0, %v2911
        %v2913 = vrot.slane %v2908, %v2912
        %v2916 = vsel %vm1035, %v2901, 0
        %2918 = vmatprep.subr.mxu0 0.0
        %2919 = vmatpush1.msra.mxu0 0.0
        %2920 = vmatprep.subr.mxu0 0.0
        %2921 = vmatpush1.msra.mxu0 0.0
        %2922 = vmatprep.subr.mxu0 0.0
        %2923 = vmatpush1.msra.mxu0 0.0
        %2924 = vmatprep.subr.mxu0 0.0
        %2925 = vmatpush1.msra.mxu0 0.0
        %2926 = vmatprep.subr.mxu0 0.0
        %2927 = vmatpush1.msra.mxu0 0.0
        %2928 = vmatprep.subr.mxu0 0.0
        %2929 = vmatpush1.msra.mxu0 0.0
        %2930 = vmatprep.subr.mxu0 0.0
        %2931 = vmatpush1.msra.mxu0 0.0
        %2932 = vmatprep.subr.mxu0 0.0
        %2933 = vmatpush1.msra.mxu0 0.0
        %2934 = vmatprep.subr.mxu0 0.0
        %2935 = vmatpush1.msra.mxu0 0.0
        %2936 = vmatprep.subr.mxu0 0.0
        %2937 = vmatpush1.msra.mxu0 0.0
        %2938 = vmatprep.subr.mxu0 0.0
        %2939 = vmatpush1.msra.mxu0 0.0
        %2940 = vmatprep.subr.mxu0 0.0
        %2941 = vmatpush1.msra.mxu0 0.0
        %2942 = vmatprep.subr.mxu0 0.0
        %2943 = vmatpush1.msra.mxu0 %v2906
        %2944 = vmatprep.subr.mxu0 0.0
        %2945 = vmatpush1.msra.mxu0 %v2905
        %2946 = vmatprep.subr.mxu0 0.0
        %2947 = vmatpush1.msra.mxu0 %v2904
        %2948 = vmatprep.subr.mxu0 0.0
        %2949 = vmatpush1.msra.mxu0 %v2903
        %2950 = vmatprep.subr.mxu0 0.0
        %2951 = vmatpush2.msra.mxu0 0.0
        %2952 = vmatprep.subr.mxu0 0.0
        %2953 = vmatpush2.msra.mxu0 0.0
        %2954 = vmatprep.subr.mxu0 0.0
        %2955 = vmatpush2.msra.mxu0 0.0
        %2956 = vmatprep.subr.mxu0 0.0
        %2957 = vmatpush2.msra.mxu0 0.0
        %2958 = vmatprep.subr.mxu0 0.0
        %2959 = vmatpush2.msra.mxu0 0.0
        %2960 = vmatprep.subr.mxu0 0.0
        %2961 = vmatpush2.msra.mxu0 0.0
        %2962 = vmatprep.subr.mxu0 0.0
        %2963 = vmatpush2.msra.mxu0 0.0
        %2964 = vmatprep.subr.mxu0 0.0
        %2965 = vmatpush2.msra.mxu0 0.0
        %2966 = vmatprep.subr.mxu0 0.0
        %2967 = vmatpush2.msra.mxu0 0.0
        %2968 = vmatprep.subr.mxu0 0.0
        %2969 = vmatpush2.msra.mxu0 0.0
        %2970 = vmatprep.subr.mxu0 0.0
        %2971 = vmatpush2.msra.mxu0 0.0
        %2972 = vmatprep.subr.mxu0 0.0
        %2973 = vmatpush2.msra.mxu0 0.0
        %2974 = vmatprep.subr.mxu0 0.0
        %2975 = vmatpush2.msra.mxu0 0.0
        %2976 = vmatprep.subr.mxu0 0.0
        %2977 = vmatpush2.msra.mxu0 0.0
        %2978 = vmatprep.subr.mxu0 0.0
        %2979 = vmatpush2.msra.mxu0 0.0
        %2980 = vmatprep.subr.mxu0 0.0
        %2981 = vmatpush2.msra.mxu0 0.0
        %2982 = vmatprep.mubr.f32.mxu0 0.0
        %2983 = vmatmul.mubr.f32.gmra.mxu0 %v2916
        %v2984 = vpop.f32.mrf.mxu0
        %v2985 = vadd.f32 %v2913, %v2984
        %v2986 = vpop.f32.mrf.mxu0
        %2987 = vdwg.mxu0
        %v2988 = vadd.f32 %v2137, %v2985
        %s2989 = scalar_lea.vmem %s12, 1
        %v2990 = vld [vmem:[%s2989] sm:$0x1]
        %s2991 = scalar_lea.vmem %s13, 1
        %v2992 = vld [vmem:[%s2991] sm:$0x1]
        %v2993 = vsel %vm1035, %v2988, 0.0
        %2994 = vadd.xlane.f32.xlu0 %v2993
        %v2995 = vpop.xlane.xlu0 %2994
        %v2996 = vmul.f32 %v2995, %v1879
        %v2997 = vsub.f32 %v2988, %v2996
        %v2998 = vmul.f32 %v2997, %v2997
        %v2999 = vsel %vm1035, %v2998, 0.0
        %3000 = vadd.xlane.f32.xlu0 %v2999
        %v3001 = vpop.xlane.xlu0 %3000
        %v3002 = vmul.f32 %v3001, %v1879
        %v3003 = vadd.f32 %v3002, 1e-05
        %v3004 = vrsqrt.pop %v3003
        %v3005 = vmul.f32 %v2997, %v3004
        %v3007 = vlaneseq
        %v3008 = vshrl.u32 %v3007, 7
        %v3009 = vsub.s32 0, %v3008
        %v3010 = vrot.slane %v2990, %v3009
        %v3012 = vmul.f32 %v3005, %v3010
        %v3014 = vlaneseq
        %v3015 = vshrl.u32 %v3014, 7
        %v3016 = vsub.s32 0, %v3015
        %v3017 = vrot.slane %v2992, %v3016
        %v3019 = vadd.f32 %v3012, %v3017
        %s3020 = scalar_lea.vmem %s14, 32
        %v3021 = vld [vmem:[%s3020] sm:$0xff]
        %v3022 = vld [vmem:[%s3020 + $0x8] sm:$0xff]
        %v3023 = vld [vmem:[%s3020 + $0x10] sm:$0xff]
        %v3024 = vld [vmem:[%s3020 + $0x18] sm:$0xff]
        %s3025 = scalar_lea.vmem %s15, 1
        %v3026 = vld [vmem:[%s3025] sm:$0x1]
        %v3028 = vlaneseq
        %v3029 = vshrl.u32 %v3028, 7
        %v3030 = vsub.s32 0, %v3029
        %v3031 = vrot.slane %v3026, %v3030
        %v3034 = vsel %vm1035, %v3019, 0
        %3036 = vmatprep.subr.mxu0 0.0
        %3037 = vmatpush1.msra.mxu0 0.0
        %3038 = vmatprep.subr.mxu0 0.0
        %3039 = vmatpush1.msra.mxu0 0.0
        %3040 = vmatprep.subr.mxu0 0.0
        %3041 = vmatpush1.msra.mxu0 0.0
        %3042 = vmatprep.subr.mxu0 0.0
        %3043 = vmatpush1.msra.mxu0 0.0
        %3044 = vmatprep.subr.mxu0 0.0
        %3045 = vmatpush1.msra.mxu0 0.0
        %3046 = vmatprep.subr.mxu0 0.0
        %3047 = vmatpush1.msra.mxu0 0.0
        %3048 = vmatprep.subr.mxu0 0.0
        %3049 = vmatpush1.msra.mxu0 0.0
        %3050 = vmatprep.subr.mxu0 0.0
        %3051 = vmatpush1.msra.mxu0 0.0
        %3052 = vmatprep.subr.mxu0 0.0
        %3053 = vmatpush1.msra.mxu0 0.0
        %3054 = vmatprep.subr.mxu0 0.0
        %3055 = vmatpush1.msra.mxu0 0.0
        %3056 = vmatprep.subr.mxu0 0.0
        %3057 = vmatpush1.msra.mxu0 0.0
        %3058 = vmatprep.subr.mxu0 0.0
        %3059 = vmatpush1.msra.mxu0 0.0
        %3060 = vmatprep.subr.mxu0 0.0
        %3061 = vmatpush1.msra.mxu0 %v3024
        %3062 = vmatprep.subr.mxu0 0.0
        %3063 = vmatpush1.msra.mxu0 %v3023
        %3064 = vmatprep.subr.mxu0 0.0
        %3065 = vmatpush1.msra.mxu0 %v3022
        %3066 = vmatprep.subr.mxu0 0.0
        %3067 = vmatpush1.msra.mxu0 %v3021
        %3068 = vmatprep.subr.mxu0 0.0
        %3069 = vmatpush2.msra.mxu0 0.0
        %3070 = vmatprep.subr.mxu0 0.0
        %3071 = vmatpush2.msra.mxu0 0.0
        %3072 = vmatprep.subr.mxu0 0.0
        %3073 = vmatpush2.msra.mxu0 0.0
        %3074 = vmatprep.subr.mxu0 0.0
        %3075 = vmatpush2.msra.mxu0 0.0
        %3076 = vmatprep.subr.mxu0 0.0
        %3077 = vmatpush2.msra.mxu0 0.0
        %3078 = vmatprep.subr.mxu0 0.0
        %3079 = vmatpush2.msra.mxu0 0.0
        %3080 = vmatprep.subr.mxu0 0.0
        %3081 = vmatpush2.msra.mxu0 0.0
        %3082 = vmatprep.subr.mxu0 0.0
        %3083 = vmatpush2.msra.mxu0 0.0
        %3084 = vmatprep.subr.mxu0 0.0
        %3085 = vmatpush2.msra.mxu0 0.0
        %3086 = vmatprep.subr.mxu0 0.0
        %3087 = vmatpush2.msra.mxu0 0.0
        %3088 = vmatprep.subr.mxu0 0.0
        %3089 = vmatpush2.msra.mxu0 0.0
        %3090 = vmatprep.subr.mxu0 0.0
        %3091 = vmatpush2.msra.mxu0 0.0
        %3092 = vmatprep.subr.mxu0 0.0
        %3093 = vmatpush2.msra.mxu0 0.0
        %3094 = vmatprep.subr.mxu0 0.0
        %3095 = vmatpush2.msra.mxu0 0.0
        %3096 = vmatprep.subr.mxu0 0.0
        %3097 = vmatpush2.msra.mxu0 0.0
        %3098 = vmatprep.subr.mxu0 0.0
        %3099 = vmatpush2.msra.mxu0 0.0
        %3100 = vmatprep.mubr.f32.mxu0 0.0
        %3101 = vmatmul.mubr.f32.gmra.mxu0 %v3034
        %v3102 = vpop.f32.mrf.mxu0
        %v3103 = vadd.f32 %v3031, %v3102
        %v3104 = vpop.f32.mrf.mxu0
        %3105 = vdwg.mxu0
        %v3106 = vmul.f32 %v3103, 0.70710677
        %vm3107 = vcmp.ge.f32.partialorder %v3106, 0.0
        %v3108 = vsel %vm3107, 1.0, -1.0
        %v3109 = vand.u32 2147483647, %v3106
        %v3110 = vmul.f32 %v3109, 0.3275911
        %v3111 = vadd.f32 %v3110, 1.0
        %v3112 = vrcp.pop %v3111
        %v3113 = vmul.f32 1.0, %v3112
        %v3114 = vmul.f32 %v3113, 1.0614054
        %v3115 = vadd.f32 %v3114, -1.4531521
        %v3116 = vmul.f32 %v3113, %v3115
        %v3117 = vadd.f32 %v3116, 1.4214138
        %v3118 = vmul.f32 %v3113, %v3117
        %v3119 = vadd.f32 %v3118, -0.28449672
        %v3120 = vmul.f32 %v3113, %v3119
        %v3121 = vadd.f32 %v3120, 0.2548296
        %v3122 = vmul.f32 %v3113, %v3121
        %v3123 = vsub.f32 0.0, %v3109
        %v3124 = vmul.f32 %v3123, %v3109
        %v3125 = vmul.f32 %v3124, 1.442695
        %v3126 = vpow.pop %v3125
        %v3127 = vmul.f32 %v3122, %v3126
        %v3128 = vsub.f32 1.0, %v3127
        %v3129 = vmul.f32 %v3108, %v3128
        %v3130 = vmul.f32 %v3103, 0.5
        %v3131 = vadd.f32 %v3129, 1.0
        %v3132 = vmul.f32 %v3130, %v3131
        %s3133 = scalar_lea.vmem %s16, 128
        %v3134 = vld [vmem:[%s3133] sm:$0xff]
        %v3135 = vld [vmem:[%s3133 + $0x8] sm:$0xff]
        %v3136 = vld [vmem:[%s3133 + $0x10] sm:$0xff]
        %v3137 = vld [vmem:[%s3133 + $0x18] sm:$0xff]
        %v3138 = vld [vmem:[%s3133 + $0x20] sm:$0xff]
        %v3139 = vld [vmem:[%s3133 + $0x28] sm:$0xff]
        %v3140 = vld [vmem:[%s3133 + $0x30] sm:$0xff]
        %v3141 = vld [vmem:[%s3133 + $0x38] sm:$0xff]
        %v3142 = vld [vmem:[%s3133 + $0x40] sm:$0xff]
        %v3143 = vld [vmem:[%s3133 + $0x48] sm:$0xff]
        %v3144 = vld [vmem:[%s3133 + $0x50] sm:$0xff]
        %v3145 = vld [vmem:[%s3133 + $0x58] sm:$0xff]
        %v3146 = vld [vmem:[%s3133 + $0x60] sm:$0xff]
        %v3147 = vld [vmem:[%s3133 + $0x68] sm:$0xff]
        %v3148 = vld [vmem:[%s3133 + $0x70] sm:$0xff]
        %v3149 = vld [vmem:[%s3133 + $0x78] sm:$0xff]
        %s3150 = scalar_lea.vmem %s17, 1
        %v3151 = vld [vmem:[%s3150] sm:$0x1]
        %v3153 = vlaneseq
        %v3154 = vshrl.u32 %v3153, 7
        %v3155 = vsub.s32 0, %v3154
        %v3156 = vrot.slane %v3151, %v3155
        %3158 = vmatprep.subr.mxu0 0.0
        %3159 = vmatpush1.msra.mxu0 %v3149
        %3160 = vmatprep.subr.mxu0 0.0
        %3161 = vmatpush1.msra.mxu0 %v3148
        %3162 = vmatprep.subr.mxu0 0.0
        %3163 = vmatpush1.msra.mxu0 %v3147
        %3164 = vmatprep.subr.mxu0 0.0
        %3165 = vmatpush1.msra.mxu0 %v3146
        %3166 = vmatprep.subr.mxu0 0.0
        %3167 = vmatpush1.msra.mxu0 %v3145
        %3168 = vmatprep.subr.mxu0 0.0
        %3169 = vmatpush1.msra.mxu0 %v3144
        %3170 = vmatprep.subr.mxu0 0.0
        %3171 = vmatpush1.msra.mxu0 %v3143
        %3172 = vmatprep.subr.mxu0 0.0
        %3173 = vmatpush1.msra.mxu0 %v3142
        %3174 = vmatprep.subr.mxu0 0.0
        %3175 = vmatpush1.msra.mxu0 %v3141
        %3176 = vmatprep.subr.mxu0 0.0
        %3177 = vmatpush1.msra.mxu0 %v3140
        %3178 = vmatprep.subr.mxu0 0.0
        %3179 = vmatpush1.msra.mxu0 %v3139
        %3180 = vmatprep.subr.mxu0 0.0
        %3181 = vmatpush1.msra.mxu0 %v3138
        %3182 = vmatprep.subr.mxu0 0.0
        %3183 = vmatpush1.msra.mxu0 %v3137
        %3184 = vmatprep.subr.mxu0 0.0
        %3185 = vmatpush1.msra.mxu0 %v3136
        %3186 = vmatprep.subr.mxu0 0.0
        %3187 = vmatpush1.msra.mxu0 %v3135
        %3188 = vmatprep.subr.mxu0 0.0
        %3189 = vmatpush1.msra.mxu0 %v3134
        %3190 = vmatprep.subr.mxu0 0.0
        %3191 = vmatpush2.msra.mxu0 0.0
        %3192 = vmatprep.subr.mxu0 0.0
        %3193 = vmatpush2.msra.mxu0 0.0
        %3194 = vmatprep.subr.mxu0 0.0
        %3195 = vmatpush2.msra.mxu0 0.0
        %3196 = vmatprep.subr.mxu0 0.0
        %3197 = vmatpush2.msra.mxu0 0.0
        %3198 = vmatprep.subr.mxu0 0.0
        %3199 = vmatpush2.msra.mxu0 0.0
        %3200 = vmatprep.subr.mxu0 0.0
        %3201 = vmatpush2.msra.mxu0 0.0
        %3202 = vmatprep.subr.mxu0 0.0
        %3203 = vmatpush2.msra.mxu0 0.0
        %3204 = vmatprep.subr.mxu0 0.0
        %3205 = vmatpush2.msra.mxu0 0.0
        %3206 = vmatprep.subr.mxu0 0.0
        %3207 = vmatpush2.msra.mxu0 0.0
        %3208 = vmatprep.subr.mxu0 0.0
        %3209 = vmatpush2.msra.mxu0 0.0
        %3210 = vmatprep.subr.mxu0 0.0
        %3211 = vmatpush2.msra.mxu0 0.0
        %3212 = vmatprep.subr.mxu0 0.0
        %3213 = vmatpush2.msra.mxu0 0.0
        %3214 = vmatprep.subr.mxu0 0.0
        %3215 = vmatpush2.msra.mxu0 0.0
        %3216 = vmatprep.subr.mxu0 0.0
        %3217 = vmatpush2.msra.mxu0 0.0
        %3218 = vmatprep.subr.mxu0 0.0
        %3219 = vmatpush2.msra.mxu0 0.0
        %3220 = vmatprep.subr.mxu0 0.0
        %3221 = vmatpush2.msra.mxu0 0.0
        %3222 = vmatprep.mubr.f32.mxu0 0.0
        %3223 = vmatmul.mubr.f32.gmra.mxu0 %v3132
        %v3224 = vpop.f32.mrf.mxu0
        %v3225 = vadd.f32 %v3156, %v3224
        %v3226 = vpop.f32.mrf.mxu0
        %3227 = vdwg.mxu0
        %v3228 = vadd.f32 %v3019, %v3225
        %s3229 = scalar_lea.vmem %s18, 1
        %v3230 = vld [vmem:[%s3229] sm:$0x1]
        %s3231 = scalar_lea.vmem %s19, 1
        %v3232 = vld [vmem:[%s3231] sm:$0x1]
        %v3233 = vsel %vm1035, %v3228, 0.0
        %3234 = vadd.xlane.f32.xlu0 %v3233
        %v3235 = vpop.xlane.xlu0 %3234
        %v3236 = vmul.f32 %v3235, %v1879
        %v3237 = vsub.f32 %v3228, %v3236
        %v3238 = vmul.f32 %v3237, %v3237
        %v3239 = vsel %vm1035, %v3238, 0.0
        %3240 = vadd.xlane.f32.xlu0 %v3239
        %v3241 = vpop.xlane.xlu0 %3240
        %v3242 = vmul.f32 %v3241, %v1879
        %v3243 = vadd.f32 %v3242, 1e-05
        %v3244 = vrsqrt.pop %v3243
        %v3245 = vmul.f32 %v3237, %v3244
        %v3247 = vlaneseq
        %v3248 = vshrl.u32 %v3247, 7
        %v3249 = vsub.s32 0, %v3248
        %v3250 = vrot.slane %v3230, %v3249
        %v3252 = vmul.f32 %v3245, %v3250
        %v3254 = vlaneseq
        %v3255 = vshrl.u32 %v3254, 7
        %v3256 = vsub.s32 0, %v3255
        %v3257 = vrot.slane %v3232, %v3256
        %v3259 = vadd.f32 %v3252, %v3257
        %v3260 = vadd.f32 %v3259, %v1023
        %v3261 = vld [vmem:[%s20] sm:$0xff]
        %v3262 = vld [vmem:[%s20 + $0x8] sm:$0xff]
        %v3263 = vld [vmem:[%s20 + $0x10] sm:$0xff]
        %v3264 = vld [vmem:[%s20 + $0x18] sm:$0xff]
        %v3265 = vld [vmem:[%s21] sm:$0x1]
        %v3267 = vrot.slane %v3260, 7
        %v3268 = vsel %vm1035, %v3267, 0
        %3270 = vmatprep.subr.mxu0 0.0
        %3271 = vmatpush1.msra.mxu0 0.0
        %3272 = vmatprep.subr.mxu0 0.0
        %3273 = vmatpush1.msra.mxu0 0.0
        %3274 = vmatprep.subr.mxu0 0.0
        %3275 = vmatpush1.msra.mxu0 0.0
        %3276 = vmatprep.subr.mxu0 0.0
        %3277 = vmatpush1.msra.mxu0 0.0
        %3278 = vmatprep.subr.mxu0 0.0
        %3279 = vmatpush1.msra.mxu0 0.0
        %3280 = vmatprep.subr.mxu0 0.0
        %3281 = vmatpush1.msra.mxu0 0.0
        %3282 = vmatprep.subr.mxu0 0.0
        %3283 = vmatpush1.msra.mxu0 0.0
        %3284 = vmatprep.subr.mxu0 0.0
        %3285 = vmatpush1.msra.mxu0 0.0
        %3286 = vmatprep.subr.mxu0 0.0
        %3287 = vmatpush1.msra.mxu0 0.0
        %3288 = vmatprep.subr.mxu0 0.0
        %3289 = vmatpush1.msra.mxu0 0.0
        %3290 = vmatprep.subr.mxu0 0.0
        %3291 = vmatpush1.msra.mxu0 0.0
        %3292 = vmatprep.subr.mxu0 0.0
        %3293 = vmatpush1.msra.mxu0 0.0
        %3294 = vmatprep.subr.mxu0 0.0
        %3295 = vmatpush1.msra.mxu0 %v3264
        %3296 = vmatprep.subr.mxu0 0.0
        %3297 = vmatpush1.msra.mxu0 %v3263
        %3298 = vmatprep.subr.mxu0 0.0
        %3299 = vmatpush1.msra.mxu0 %v3262
        %3300 = vmatprep.subr.mxu0 0.0
        %3301 = vmatpush1.msra.mxu0 %v3261
        %3302 = vmatprep.subr.mxu0 0.0
        %3303 = vmatpush2.msra.mxu0 0.0
        %3304 = vmatprep.subr.mxu0 0.0
        %3305 = vmatpush2.msra.mxu0 0.0
        %3306 = vmatprep.subr.mxu0 0.0
        %3307 = vmatpush2.msra.mxu0 0.0
        %3308 = vmatprep.subr.mxu0 0.0
        %3309 = vmatpush2.msra.mxu0 0.0
        %3310 = vmatprep.subr.mxu0 0.0
        %3311 = vmatpush2.msra.mxu0 0.0
        %3312 = vmatprep.subr.mxu0 0.0
        %3313 = vmatpush2.msra.mxu0 0.0
        %3314 = vmatprep.subr.mxu0 0.0
        %3315 = vmatpush2.msra.mxu0 0.0
        %3316 = vmatprep.subr.mxu0 0.0
        %3317 = vmatpush2.msra.mxu0 0.0
        %3318 = vmatprep.subr.mxu0 0.0
        %3319 = vmatpush2.msra.mxu0 0.0
        %3320 = vmatprep.subr.mxu0 0.0
        %3321 = vmatpush2.msra.mxu0 0.0
        %3322 = vmatprep.subr.mxu0 0.0
        %3323 = vmatpush2.msra.mxu0 0.0
        %3324 = vmatprep.subr.mxu0 0.0
        %3325 = vmatpush2.msra.mxu0 0.0
        %3326 = vmatprep.subr.mxu0 0.0
        %3327 = vmatpush2.msra.mxu0 0.0
        %3328 = vmatprep.subr.mxu0 0.0
        %3329 = vmatpush2.msra.mxu0 0.0
        %3330 = vmatprep.subr.mxu0 0.0
        %3331 = vmatpush2.msra.mxu0 0.0
        %3332 = vmatprep.subr.mxu0 0.0
        %3333 = vmatpush2.msra.mxu0 0.0
        %3334 = vmatprep.mubr.f32.mxu0 0.0
        %3335 = vmatmul.mubr.f32.gmra.mxu0 %v3268
        %v3336 = vpop.f32.mrf.mxu0
        %v3337 = vadd.f32 %v3265, %v3336
        %v3338 = vpop.f32.mrf.mxu0
        %3339 = vdwg.mxu0
        %v3340 = vmul.f32 %v3337, 0.70710677
        %vm3341 = vcmp.ge.f32.partialorder %v3340, 0.0
        %v3342 = vsel %vm3341, 1.0, -1.0
        %v3343 = vand.u32 2147483647, %v3340
        %v3344 = vmul.f32 %v3343, 0.3275911
        %v3345 = vadd.f32 %v3344, 1.0
        %v3346 = vrcp.pop %v3345
        %v3347 = vmul.f32 1.0, %v3346
        %v3348 = vmul.f32 %v3347, 1.0614054
        %v3349 = vadd.f32 %v3348, -1.4531521
        %v3350 = vmul.f32 %v3347, %v3349
        %v3351 = vadd.f32 %v3350, 1.4214138
        %v3352 = vmul.f32 %v3347, %v3351
        %v3353 = vadd.f32 %v3352, -0.28449672
        %v3354 = vmul.f32 %v3347, %v3353
        %v3355 = vadd.f32 %v3354, 0.2548296
        %v3356 = vmul.f32 %v3347, %v3355
        %v3357 = vsub.f32 0.0, %v3343
        %v3358 = vmul.f32 %v3357, %v3343
        %v3359 = vmul.f32 %v3358, 1.442695
        %v3360 = vpow.pop %v3359
        %v3361 = vmul.f32 %v3356, %v3360
        %v3362 = vsub.f32 1.0, %v3361
        %v3363 = vmul.f32 %v3342, %v3362
        %v3364 = vmul.f32 %v3337, 0.5
        %v3365 = vadd.f32 %v3363, 1.0
        %v3366 = vmul.f32 %v3364, %v3365
        %v3367 = vld [vmem:[%s22] sm:$0xff]
        %v3368 = vld [vmem:[%s22 + $0x8] sm:$0xff]
        %v3369 = vld [vmem:[%s23] sm:$0x1]
        %v3371 = vsel %vm841, %v3366, 0
        %3373 = vmatprep.subr.mxu0 0.0
        %3374 = vmatpush1.msra.mxu0 0.0
        %3375 = vmatprep.subr.mxu0 0.0
        %3376 = vmatpush1.msra.mxu0 0.0
        %3377 = vmatprep.subr.mxu0 0.0
        %3378 = vmatpush1.msra.mxu0 0.0
        %3379 = vmatprep.subr.mxu0 0.0
        %3380 = vmatpush1.msra.mxu0 0.0
        %3381 = vmatprep.subr.mxu0 0.0
        %3382 = vmatpush1.msra.mxu0 0.0
        %3383 = vmatprep.subr.mxu0 0.0
        %3384 = vmatpush1.msra.mxu0 0.0
        %3385 = vmatprep.subr.mxu0 0.0
        %3386 = vmatpush1.msra.mxu0 0.0
        %3387 = vmatprep.subr.mxu0 0.0
        %3388 = vmatpush1.msra.mxu0 0.0
        %3389 = vmatprep.subr.mxu0 0.0
        %3390 = vmatpush1.msra.mxu0 0.0
        %3391 = vmatprep.subr.mxu0 0.0
        %3392 = vmatpush1.msra.mxu0 0.0
        %3393 = vmatprep.subr.mxu0 0.0
        %3394 = vmatpush1.msra.mxu0 0.0
        %3395 = vmatprep.subr.mxu0 0.0
        %3396 = vmatpush1.msra.mxu0 0.0
        %3397 = vmatprep.subr.mxu0 0.0
        %3398 = vmatpush1.msra.mxu0 0.0
        %3399 = vmatprep.subr.mxu0 0.0
        %3400 = vmatpush1.msra.mxu0 0.0
        %3401 = vmatprep.subr.mxu0 0.0
        %3402 = vmatpush1.msra.mxu0 %v3368
        %3403 = vmatprep.subr.mxu0 0.0
        %3404 = vmatpush1.msra.mxu0 %v3367
        %3405 = vmatprep.subr.mxu0 0.0
        %3406 = vmatpush2.msra.mxu0 0.0
        %3407 = vmatprep.subr.mxu0 0.0
        %3408 = vmatpush2.msra.mxu0 0.0
        %3409 = vmatprep.subr.mxu0 0.0
        %3410 = vmatpush2.msra.mxu0 0.0
        %3411 = vmatprep.subr.mxu0 0.0
        %3412 = vmatpush2.msra.mxu0 0.0
        %3413 = vmatprep.subr.mxu0 0.0
        %3414 = vmatpush2.msra.mxu0 0.0
        %3415 = vmatprep.subr.mxu0 0.0
        %3416 = vmatpush2.msra.mxu0 0.0
        %3417 = vmatprep.subr.mxu0 0.0
        %3418 = vmatpush2.msra.mxu0 0.0
        %3419 = vmatprep.subr.mxu0 0.0
        %3420 = vmatpush2.msra.mxu0 0.0
        %3421 = vmatprep.subr.mxu0 0.0
        %3422 = vmatpush2.msra.mxu0 0.0
        %3423 = vmatprep.subr.mxu0 0.0
        %3424 = vmatpush2.msra.mxu0 0.0
        %3425 = vmatprep.subr.mxu0 0.0
        %3426 = vmatpush2.msra.mxu0 0.0
        %3427 = vmatprep.subr.mxu0 0.0
        %3428 = vmatpush2.msra.mxu0 0.0
        %3429 = vmatprep.subr.mxu0 0.0
        %3430 = vmatpush2.msra.mxu0 0.0
        %3431 = vmatprep.subr.mxu0 0.0
        %3432 = vmatpush2.msra.mxu0 0.0
        %3433 = vmatprep.subr.mxu0 0.0
        %3434 = vmatpush2.msra.mxu0 0.0
        %3435 = vmatprep.subr.mxu0 0.0
        %3436 = vmatpush2.msra.mxu0 0.0
        %3437 = vmatprep.mubr.f32.mxu0 0.0
        %3438 = vmatmul.mubr.f32.gmra.mxu0 %v3371
        %v3439 = vpop.f32.mrf.mxu0
        %v3440 = vadd.f32 %v3369, %v3439
        %v3441 = vpop.f32.mrf.mxu0
        %3442 = vdwg.mxu0
        %vm3443 = vcmask 16384
        %3444 = vst.msk [vmem:[%s727] sm:$0x1] %vm3443, %v3440
        %s3445 = sand.u32 %s555, 1
        %s3446 = scalar_lea.sflag [#allocation3], %s3445
        %s3447 = sand.u32 %s555, 1
        %s3448 = scalar_lea.vmem [#allocation2], %s3447
        // Predicated region
        $region117: #{hybrid_cnn_transformer_forward.1} parent=115 // pred_check
          %p3449 = pneg %p565
        $region118: #{hybrid_cnn_transformer_forward.1} parent=115 // pred_check_branch
          %3451 = sbr.rel (%p3449) target = $region120
        $region119: #{hybrid_cnn_transformer_forward.1} parent=115 // pred_region
          %s3453 = ssub.s32 16, 16
          %3454 = vsyncadd %s3446, %s3453
          %s3455 = smul.addr %s38, 16
          %s3456 = scalar_lea.hbm %s24, %s3455
          %s3458 = sshll.u32 %s3448, 4
          %s3459 = int_to_ptr.vmem [resolvable:$true] %s3458
          %3461 = dma.vmem_to_hbm [thread:$0]  %s3459, 16, %s3456, %s3446
        $region120: #{hybrid_cnn_transformer_forward.1} parent=115 // pred_fallthru
          _
      $region116: #{hybrid_cnn_transformer_forward.1} parent=5 // pred_fallthru
        _
      %p3462 = scmp.le.s32.totalorder 2, %s33
      // Predicated region
      $region121: #{hybrid_cnn_transformer_forward.1} parent=5 // pred_check
        %p3463 = pneg %p3462
      $region122: #{hybrid_cnn_transformer_forward.1} parent=5 // pred_check_branch
        %3465 = sbr.rel (%p3463) target = $region124
      $region123: #{hybrid_cnn_transformer_forward.1} parent=5 // pred_region
        %s3466 = ssub.s32 %s33, 2
        // Predicated region
        $region125: #{hybrid_cnn_transformer_forward.1} parent=123 // pred_check
          %p3467 = pneg %p571
        $region126: #{hybrid_cnn_transformer_forward.1} parent=123 // pred_check_branch
          %3469 = sbr.rel (%p3467) target = $region128
        $region127: #{hybrid_cnn_transformer_forward.1} parent=123 // pred_region
          %s3470 = sand.u32 %s556, 1
          %s3471 = scalar_lea.sflag [#allocation3], %s3470
          %s3472 = sand.u32 %s556, 1
          %s3473 = scalar_lea.vmem [#allocation2], %s3472
          %3474 = dma.done %s3471, 16
        $region128: #{hybrid_cnn_transformer_forward.1} parent=123 // pred_fallthru
          _
      $region124: #{hybrid_cnn_transformer_forward.1} parent=5 // pred_fallthru
        _
    $region6: #{hybrid_cnn_transformer_forward.1} parent=1 // loop_footer
      %s37 = sadd.s32 1, %s33
    $region7: #{hybrid_cnn_transformer_forward.1} parent=1 // loop_footer_branch
      %32 = sbr.rel target = $region3
    $region8: #{hybrid_cnn_transformer_forward.1} parent=1 // loop_exit
      _
    %3475 = vsyncpa [#allocation3], 1
    %s3476 = scalar_lea.sflag [#allocation3], 1
    %3477 = vsyncpa %s3476, 1

</llo_original>
